<compile_context>
chip_gen: v5e
topology: v5e:2x2
jax: 0.10.0
libtpu: 0.0.40
codegen_flags: <defaults>
</compile_context>

<pallas_src>
import functools

import numpy as np
import jax
import jax.numpy as jnp
from jax import lax
from jax.experimental import pallas as pl
from jax.experimental.pallas import tpu as pltpu

ATOM_FDIM = 16   # atom_fdim
BOND_FDIM = 24   # bond_fdim (input_dim of W_i since atom_messages=False)
HIDDEN = 32      # args.hidden_size
DEPTH = 3        # args.depth
H_PAD = 128      # lane-padded feature / hidden width


def _round_up(x, m):
    return ((x + m - 1) // m) * m


# ----------------------------------------------------------------------------- kernel
def mpn_kernel(a2b_ref, b2a_ref, brev_ref,                     # int32, SMEM
               f_atoms_ref, f_bonds_ref,                       # bf16,  VMEM
               wi_t_ref, wh_t_ref, wo_a_t_ref, wo_m_t_ref,     # bf16,  VMEM
               b_o_ref, mol_ref,                               # f32,   VMEM
               out_ref,                                        # f32,   VMEM
               msg_ref, new_ref, amsg_ref,                     # f32 scratch
               *, depth, max_nb):
    n_atoms_pad = amsg_ref.shape[0]
    n_bonds_pad = msg_ref.shape[0]
    dot = functools.partial(jnp.dot, preferred_element_type=jnp.float32)

    wh_t = wh_t_ref[...]                        # (H_PAD, H_PAD) bf16, loaded once

    # input = self.W_i(f_bonds)  (bias=False);  message = act_func(input)
    inp = dot(f_bonds_ref[...], wi_t_ref[...])  # f32 (NB_pad, H_PAD)
    msg_ref[...] = jnp.maximum(inp, 0.0)

    def neighbor_sum(src_ref, dst_ref):
        # dst[a] = sum_j src[a2b[a, j]]   (index_select_ND(message, a2b).sum(1))
        # Padding slots hold bond index 0; mask them explicitly so correctness
        # does not rely on message[0] staying exactly zero (robust to bias=True).
        def body(a, carry):
            acc = jnp.zeros((1, src_ref.shape[1]), jnp.float32)
            for j in range(max_nb):
                b = a2b_ref[a * max_nb + j]
                row = src_ref[pl.ds(b, 1), :]
                acc = acc + jnp.where(b > 0, row, 0.0)
            dst_ref[pl.ds(a, 1), :] = acc
            return carry
        lax.fori_loop(0, n_atoms_pad, body, 0, unroll=True)

    # depth is tiny (3) -> statically unrolled Python loop.
    # TODO(synk): for large depth switch to lax.fori_loop(..., unroll=True).
    for _ in range(depth - 1):
        neighbor_sum(msg_ref, amsg_ref)

        # message = a_message[b2a] - message[b2revb]   (row gathers, no one-hots)
        def gather_body(b, carry):
            src_a = b2a_ref[b]
            rev_b = brev_ref[b]
            new_ref[pl.ds(b, 1), :] = (amsg_ref[pl.ds(src_a, 1), :]
                                       - msg_ref[pl.ds(rev_b, 1), :])
            return carry
        lax.fori_loop(0, n_bonds_pad, gather_body, 0, unroll=True)

        # message = act_func(input + W_h(message));  dropout(p=0.0) is identity
        hm = dot(new_ref[...].astype(jnp.bfloat16), wh_t)
        msg_ref[...] = jnp.maximum(inp + hm, 0.0)

    # final aggregation + W_o(cat([f_atoms, a_message], dim=1)) + bias (f32)
    neighbor_sum(msg_ref, amsg_ref)
    atom_hiddens = (dot(f_atoms_ref[...], wo_a_t_ref[...])
                    + dot(amsg_ref[...].astype(jnp.bfloat16), wo_m_t_ref[...])
                    + b_o_ref[...])

    # readout: per-molecule mean over atoms (aggregation='mean'), kept in f32
    out_ref[...] = dot(mol_ref[...], atom_hiddens)


# ----------------------------------------------------------------------------- jitted pallas_call
@functools.partial(jax.jit, static_argnames=("depth", "max_nb"))
def _mpn_pallas(a2b_flat, b2a, b2revb, f_atoms, f_bonds,
                wi_t, wh_t, wo_a_t, wo_m_t, b_o, mol_w, *, depth, max_nb):
    n_bonds_pad, h_pad = f_bonds.shape
    n_atoms_pad = f_atoms.shape[0]
    n_mols_pad = mol_w.shape[0]
    smem = pl.BlockSpec(memory_space=pltpu.MemorySpace.SMEM)
    vmem = pl.BlockSpec(memory_space=pltpu.MemorySpace.VMEM)
    return pl.pallas_call(
        functools.partial(mpn_kernel, depth=depth, max_nb=max_nb),
        out_shape=jax.ShapeDtypeStruct((n_mols_pad, h_pad), jnp.float32),
        in_specs=[smem, smem, smem] + [vmem] * 8,
        out_specs=vmem,
        scratch_shapes=[
            pltpu.VMEM((n_bonds_pad, h_pad), jnp.float32),   # current message
            pltpu.VMEM((n_bonds_pad, h_pad), jnp.float32),   # gathered new message
            pltpu.VMEM((n_atoms_pad, h_pad), jnp.float32),   # per-atom neighbor sum
        ],
    )(a2b_flat, b2a, b2revb, f_atoms, f_bonds,
      wi_t, wh_t, wo_a_t, wo_m_t, b_o, mol_w)


# ----------------------------------------------------------------------------- wrapper
def mpn_encoder_forward(f_atoms, f_bonds, a2b, b2a, b2revb, a_scope, params):
    W_i, W_h, W_o, b_o = [np.asarray(p, np.float32) for p in params]
    f_atoms = np.asarray(f_atoms, np.float32)
    f_bonds = np.asarray(f_bonds, np.float32)
    a2b = np.asarray(a2b, np.int32)
    b2a = np.asarray(b2a, np.int32)
    b2revb = np.asarray(b2revb, np.int32)

    n_atoms, atom_fdim = f_atoms.shape
    n_bonds, bond_fdim = f_bonds.shape
    n_mols = len(a_scope)
    hidden = W_h.shape[0]
    max_nb = a2b.shape[1]
    assert W_o.shape[1] == atom_fdim + hidden, "W_o column layout mismatch"

    na_p = _round_up(n_atoms, 16)
    nb_p = _round_up(n_bonds, 16)
    nm_p = _round_up(n_mols, 8)

    # features: zero-padded to (rows x 128 lanes), bf16 for the MXU
    fa = np.zeros((na_p, H_PAD), np.float32); fa[:n_atoms, :atom_fdim] = f_atoms
    fb = np.zeros((nb_p, H_PAD), np.float32); fb[:n_bonds, :bond_fdim] = f_bonds

    # index arrays -> int32 SMEM inputs (padding index 0 == chemprop zero row)
    a2b_flat = np.zeros((na_p * max_nb,), np.int32)
    a2b_flat[:n_atoms * max_nb] = a2b.reshape(-1)
    b2a_p = np.zeros((nb_p,), np.int32); b2a_p[:n_bonds] = b2a
    brev_p = np.zeros((nb_p,), np.int32); brev_p[:n_bonds] = b2revb

    # weights: transposed, zero-padded to (128, 128); W_o split so no concat
    wi_t = np.zeros((H_PAD, H_PAD), np.float32); wi_t[:bond_fdim, :hidden] = W_i.T
    wh_t = np.zeros((H_PAD, H_PAD), np.float32); wh_t[:hidden, :hidden] = W_h.T
    wo_a_t = np.zeros((H_PAD, H_PAD), np.float32)
    wo_a_t[:atom_fdim, :hidden] = W_o[:, :atom_fdim].T
    wo_m_t = np.zeros((H_PAD, H_PAD), np.float32)
    wo_m_t[:hidden, :hidden] = W_o[:, atom_fdim:].T
    b_o_p = np.zeros((1, H_PAD), np.float32); b_o_p[0, :hidden] = b_o

    # mean-readout weights (f32: 1/size is not bf16-exact); vectorized build
    starts = np.asarray([s for s, _ in a_scope], np.int64)
    sizes = np.asarray([sz for _, sz in a_scope], np.int64)
    atom_idx = np.arange(na_p)
    in_mol = ((atom_idx[None, :] >= starts[:, None])
              & (atom_idx[None, :] < (starts + sizes)[:, None]))
    mol_w = np.zeros((nm_p, na_p), np.float32)
    mol_w[:n_mols] = in_mol.astype(np.float32) / np.maximum(sizes, 1)[:, None]
    # a_size == 0 -> all-zero row == cached_zero_vector

    out = _mpn_pallas(
        jnp.asarray(a2b_flat), jnp.asarray(b2a_p), jnp.asarray(brev_p),
        jnp.asarray(fa, jnp.bfloat16), jnp.asarray(fb, jnp.bfloat16),
        jnp.asarray(wi_t, jnp.bfloat16), jnp.asarray(wh_t, jnp.bfloat16),
        jnp.asarray(wo_a_t, jnp.bfloat16), jnp.asarray(wo_m_t, jnp.bfloat16),
        jnp.asarray(b_o_p), jnp.asarray(mol_w),
        depth=DEPTH, max_nb=max_nb)
    mol_vecs = out[:n_mols, :hidden]

    # fp_method='molecular' -> cov_vecs and asize_vecs stay empty lists.
    # TODO(synk): cov_func_padding / padding for fp_method in
    # {'atomic','hybrid_dim0','hybrid_dim1'} (per-molecule data-dependent shapes)
    # and the ConcreteDropout mc_dropout branch are not implemented.
    return mol_vecs, [], []


# ----------------------------------------------------------------------------- reference (numpy, mirrors torch)
def ref_forward(f_atoms, f_bonds, a2b, b2a, b2revb, a_scope, params):
    W_i, W_h, W_o, b_o = [np.asarray(p, np.float32) for p in params]
    f_atoms, f_bonds = np.asarray(f_atoms), np.asarray(f_bonds)
    inp = f_bonds @ W_i.T
    message = np.maximum(inp, 0.0)
    for _ in range(DEPTH - 1):
        a_msg = message[np.asarray(a2b)].sum(axis=1)       # index_select_ND + sum
        message = a_msg[np.asarray(b2a)] - message[np.asarray(b2revb)]
        message = message @ W_h.T
        message = np.maximum(inp + message, 0.0)
    a_msg = message[np.asarray(a2b)].sum(axis=1)
    a_input = np.concatenate([f_atoms, a_msg], axis=1)
    atom_h = a_input @ W_o.T + b_o
    return np.stack([atom_h[s:s + sz].sum(axis=0) / sz for s, sz in a_scope])


# ----------------------------------------------------------------------------- main
if __name__ == "__main__":
    key = jax.random.PRNGKey(0)
    k1, k2, k3, k4, k5, k6 = jax.random.split(key, 6)

    # two "molecules", each a 4-atom ring; atom/bond index 0 is the zero padding row
    edges = [(1, 2), (2, 3), (3, 4), (4, 1), (5, 6), (6, 7), (7, 8), (8, 5)]
    bonds = [(0, 0)]
    for (u, v) in edges:
        bonds.append((u, v))
        bonds.append((v, u))
    n_atoms, n_bonds = 9, len(bonds)          # 9, 17

    b2a = np.array([u for (u, _) in bonds], np.int32)
    b2revb = np.zeros(n_bonds, np.int32)
    for k in range(len(edges)):
        b2revb[2 * k + 1] = 2 * k + 2
        b2revb[2 * k + 2] = 2 * k + 1
    max_nb = 2
    a2b = np.zeros((n_atoms, max_nb), np.int32)
    for a in range(1, n_atoms):
        incoming = [b for b in range(1, n_bonds) if bonds[b][1] == a]
        a2b[a, :len(incoming)] = incoming
    a_scope = [(1, 4), (5, 4)]

    f_atoms = 0.5 * jax.random.normal(k1, (n_atoms, ATOM_FDIM), jnp.float32)
    f_atoms = f_atoms.at[0].set(0.0)          # padding atom row is zeros
    f_bonds = 0.5 * jax.random.normal(k2, (n_bonds, BOND_FDIM), jnp.float32)
    f_bonds = f_bonds.at[0].set(0.0)          # padding bond row is zeros

    W_i = 0.1 * jax.random.normal(k3, (HIDDEN, BOND_FDIM), jnp.float32)
    W_h = 0.1 * jax.random.normal(k4, (HIDDEN, HIDDEN), jnp.float32)
    W_o = 0.1 * jax.random.normal(k5, (HIDDEN, ATOM_FDIM + HIDDEN), jnp.float32)
    b_o = 0.1 * jax.random.normal(k6, (HIDDEN,), jnp.float32)
    params = (W_i, W_h, W_o, b_o)

    mol_vecs, cov_vecs, asize_vecs = mpn_encoder_forward(
        f_atoms, f_bonds, a2b, b2a, b2revb, a_scope, params)
    mol_vecs = jax.block_until_ready(mol_vecs)

    ref = ref_forward(f_atoms, f_bonds, a2b, b2a, b2revb, a_scope, params)
    assert mol_vecs.shape == (len(a_scope), HIDDEN)
    # bf16 MXU operands vs f32 numpy reference -> relaxed tolerance
    np.testing.assert_allclose(np.asarray(mol_vecs, np.float32), ref,
                               rtol=1e-2, atol=1e-2)
    print("KERNEL_OK")
</pallas_src>

<mosaic_0001>
module attributes {stable_mosaic.version = 11 : i64} {
  func.func @mpn_kernel(%arg0: memref<32xi32, #tpu.memory_space<smem>>, %arg1: memref<32xi32, #tpu.memory_space<smem>>, %arg2: memref<32xi32, #tpu.memory_space<smem>>, %arg3: memref<16x128xbf16, #tpu.memory_space<vmem>>, %arg4: memref<32x128xbf16, #tpu.memory_space<vmem>>, %arg5: memref<128x128xbf16, #tpu.memory_space<vmem>>, %arg6: memref<128x128xbf16, #tpu.memory_space<vmem>>, %arg7: memref<128x128xbf16, #tpu.memory_space<vmem>>, %arg8: memref<128x128xbf16, #tpu.memory_space<vmem>>, %arg9: memref<1x128xf32, #tpu.memory_space<vmem>>, %arg10: memref<8x16xf32, #tpu.memory_space<vmem>>, %arg11: memref<8x128xf32, #tpu.memory_space<vmem>>, %arg12: memref<32x128xf32, #tpu.memory_space<vmem>>, %arg13: memref<32x128xf32, #tpu.memory_space<vmem>>, %arg14: memref<16x128xf32, #tpu.memory_space<vmem>>) attributes {dimension_semantics = [], scalar_prefetch = 0 : i64, scratch_operands = 3 : i64, tpu.core_type = #tpu.core_type<tc>} {
    %c0 = arith.constant 0 : index
    %c0_0 = arith.constant 0 : index
    %0 = vector.load %arg6[%c0, %c0_0] : memref<128x128xbf16, #tpu.memory_space<vmem>>, vector<128x128xbf16>
    %c0_1 = arith.constant 0 : index
    %c0_2 = arith.constant 0 : index
    %1 = vector.load %arg4[%c0_1, %c0_2] : memref<32x128xbf16, #tpu.memory_space<vmem>>, vector<32x128xbf16>
    %c0_3 = arith.constant 0 : index
    %c0_4 = arith.constant 0 : index
    %2 = vector.load %arg5[%c0_3, %c0_4] : memref<128x128xbf16, #tpu.memory_space<vmem>>, vector<128x128xbf16>
    %cst = arith.constant dense<0.000000e+00> : vector<32x128xf32>
    %3 = tpu.matmul %1, %2, %cst {dimension_numbers = #tpu.dot_dimension_numbers<[1], [0], [0], [1], [0, 0, 1, 1], [], []>} : vector<32x128xbf16>, vector<128x128xbf16>, vector<32x128xf32> -> vector<32x128xf32>
    %cst_5 = arith.constant 0.000000e+00 : f32
    %4 = vector.broadcast %cst_5 : f32 to vector<32x128xf32>
    %5 = arith.maximumf %3, %4 : vector<32x128xf32>
    %c0_6 = arith.constant 0 : index
    %c0_7 = arith.constant 0 : index
    %6 = vector.load %arg12[%c0_6, %c0_7] : memref<32x128xf32, #tpu.memory_space<vmem>>, vector<32x128xf32>
    tpu.vector_store %arg12[%c0_6, %c0_7], %5 {strides = array<i32>} : memref<32x128xf32, #tpu.memory_space<vmem>>, vector<32x128xf32>,
    %c0_i32 = arith.constant 0 : i32
    %cst_8 = arith.constant 0.000000e+00 : f32
    %7 = vector.broadcast %cst_8 : f32 to vector<1x128xf32>
    %c2_i32 = arith.constant 2 : i32
    %8 = arith.muli %c0_i32, %c2_i32 : i32
    %c0_i32_9 = arith.constant 0 : i32
    %9 = arith.addi %8, %c0_i32_9 : i32
    %10 = arith.index_cast %9 : i32 to index
    %11 = memref.load %arg0[%10] : memref<32xi32, #tpu.memory_space<smem>>
    %12 = arith.index_cast %11 : i32 to index
    %c0_10 = arith.constant 0 : index
    %13 = vector.load %arg12[%12, %c0_10] : memref<32x128xf32, #tpu.memory_space<vmem>>, vector<1x128xf32>
    %c0_i32_11 = arith.constant 0 : i32
    %14 = arith.cmpi sgt, %11, %c0_i32_11 : i32
    %cst_12 = arith.constant 0.000000e+00 : f32
    %15 = vector.broadcast %cst_12 : f32 to vector<1x128xf32>
    %16 = arith.select %14, %13, %15 : vector<1x128xf32>
    %17 = arith.addf %7, %16 : vector<1x128xf32>
    %c2_i32_13 = arith.constant 2 : i32
    %18 = arith.muli %c0_i32, %c2_i32_13 : i32
    %c1_i32 = arith.constant 1 : i32
    %19 = arith.addi %18, %c1_i32 : i32
    %20 = arith.index_cast %19 : i32 to index
    %21 = memref.load %arg0[%20] : memref<32xi32, #tpu.memory_space<smem>>
    %22 = arith.index_cast %21 : i32 to index
    %c0_14 = arith.constant 0 : index
    %23 = vector.load %arg12[%22, %c0_14] : memref<32x128xf32, #tpu.memory_space<vmem>>, vector<1x128xf32>
    %c0_i32_15 = arith.constant 0 : i32
    %24 = arith.cmpi sgt, %21, %c0_i32_15 : i32
    %cst_16 = arith.constant 0.000000e+00 : f32
    %25 = vector.broadcast %cst_16 : f32 to vector<1x128xf32>
    %26 = arith.select %24, %23, %25 : vector<1x128xf32>
    %27 = arith.addf %17, %26 : vector<1x128xf32>
    %28 = arith.index_cast %c0_i32 : i32 to index
    %c0_17 = arith.constant 0 : index
    %29 = vector.load %arg14[%28, %c0_17] : memref<16x128xf32, #tpu.memory_space<vmem>>, vector<1x128xf32>
    tpu.vector_store %arg14[%28, %c0_17], %27 {strides = array<i32>} : memref<16x128xf32, #tpu.memory_space<vmem>>, vector<1x128xf32>,
    %c1_i32_18 = arith.constant 1 : i32
    %cst_19 = arith.constant 0.000000e+00 : f32
    %30 = vector.broadcast %cst_19 : f32 to vector<1x128xf32>
    %c2_i32_20 = arith.constant 2 : i32
    %31 = arith.muli %c1_i32_18, %c2_i32_20 : i32
    %c0_i32_21 = arith.constant 0 : i32
    %32 = arith.addi %31, %c0_i32_21 : i32
    %33 = arith.index_cast %32 : i32 to index
    %34 = memref.load %arg0[%33] : memref<32xi32, #tpu.memory_space<smem>>
    %35 = arith.index_cast %34 : i32 to index
    %c0_22 = arith.constant 0 : index
    %36 = vector.load %arg12[%35, %c0_22] : memref<32x128xf32, #tpu.memory_space<vmem>>, vector<1x128xf32>
    %c0_i32_23 = arith.constant 0 : i32
    %37 = arith.cmpi sgt, %34, %c0_i32_23 : i32
    %cst_24 = arith.constant 0.000000e+00 : f32
    %38 = vector.broadcast %cst_24 : f32 to vector<1x128xf32>
    %39 = arith.select %37, %36, %38 : vector<1x128xf32>
    %40 = arith.addf %30, %39 : vector<1x128xf32>
    %c2_i32_25 = arith.constant 2 : i32
    %41 = arith.muli %c1_i32_18, %c2_i32_25 : i32
    %c1_i32_26 = arith.constant 1 : i32
    %42 = arith.addi %41, %c1_i32_26 : i32
    %43 = arith.index_cast %42 : i32 to index
    %44 = memref.load %arg0[%43] : memref<32xi32, #tpu.memory_space<smem>>
    %45 = arith.index_cast %44 : i32 to index
    %c0_27 = arith.constant 0 : index
    %46 = vector.load %arg12[%45, %c0_27] : memref<32x128xf32, #tpu.memory_space<vmem>>, vector<1x128xf32>
    %c0_i32_28 = arith.constant 0 : i32
    %47 = arith.cmpi sgt, %44, %c0_i32_28 : i32
    %cst_29 = arith.constant 0.000000e+00 : f32
    %48 = vector.broadcast %cst_29 : f32 to vector<1x128xf32>
    %49 = arith.select %47, %46, %48 : vector<1x128xf32>
    %50 = arith.addf %40, %49 : vector<1x128xf32>
    %51 = arith.index_cast %c1_i32_18 : i32 to index
    %c0_30 = arith.constant 0 : index
    %52 = vector.load %arg14[%51, %c0_30] : memref<16x128xf32, #tpu.memory_space<vmem>>, vector<1x128xf32>
    tpu.vector_store %arg14[%51, %c0_30], %50 {strides = array<i32>} : memref<16x128xf32, #tpu.memory_space<vmem>>, vector<1x128xf32>,
    %c2_i32_31 = arith.constant 2 : i32
    %cst_32 = arith.constant 0.000000e+00 : f32
    %53 = vector.broadcast %cst_32 : f32 to vector<1x128xf32>
    %c2_i32_33 = arith.constant 2 : i32
    %54 = arith.muli %c2_i32_31, %c2_i32_33 : i32
    %c0_i32_34 = arith.constant 0 : i32
    %55 = arith.addi %54, %c0_i32_34 : i32
    %56 = arith.index_cast %55 : i32 to index
    %57 = memref.load %arg0[%56] : memref<32xi32, #tpu.memory_space<smem>>
    %58 = arith.index_cast %57 : i32 to index
    %c0_35 = arith.constant 0 : index
    %59 = vector.load %arg12[%58, %c0_35] : memref<32x128xf32, #tpu.memory_space<vmem>>, vector<1x128xf32>
    %c0_i32_36 = arith.constant 0 : i32
    %60 = arith.cmpi sgt, %57, %c0_i32_36 : i32
    %cst_37 = arith.constant 0.000000e+00 : f32
    %61 = vector.broadcast %cst_37 : f32 to vector<1x128xf32>
    %62 = arith.select %60, %59, %61 : vector<1x128xf32>
    %63 = arith.addf %53, %62 : vector<1x128xf32>
    %c2_i32_38 = arith.constant 2 : i32
    %64 = arith.muli %c2_i32_31, %c2_i32_38 : i32
    %c1_i32_39 = arith.constant 1 : i32
    %65 = arith.addi %64, %c1_i32_39 : i32
    %66 = arith.index_cast %65 : i32 to index
    %67 = memref.load %arg0[%66] : memref<32xi32, #tpu.memory_space<smem>>
    %68 = arith.index_cast %67 : i32 to index
    %c0_40 = arith.constant 0 : index
    %69 = vector.load %arg12[%68, %c0_40] : memref<32x128xf32, #tpu.memory_space<vmem>>, vector<1x128xf32>
    %c0_i32_41 = arith.constant 0 : i32
    %70 = arith.cmpi sgt, %67, %c0_i32_41 : i32
    %cst_42 = arith.constant 0.000000e+00 : f32
    %71 = vector.broadcast %cst_42 : f32 to vector<1x128xf32>
    %72 = arith.select %70, %69, %71 : vector<1x128xf32>
    %73 = arith.addf %63, %72 : vector<1x128xf32>
    %74 = arith.index_cast %c2_i32_31 : i32 to index
    %c0_43 = arith.constant 0 : index
    %75 = vector.load %arg14[%74, %c0_43] : memref<16x128xf32, #tpu.memory_space<vmem>>, vector<1x128xf32>
    tpu.vector_store %arg14[%74, %c0_43], %73 {strides = array<i32>} : memref<16x128xf32, #tpu.memory_space<vmem>>, vector<1x128xf32>,
    %c3_i32 = arith.constant 3 : i32
    %cst_44 = arith.constant 0.000000e+00 : f32
    %76 = vector.broadcast %cst_44 : f32 to vector<1x128xf32>
    %c2_i32_45 = arith.constant 2 : i32
    %77 = arith.muli %c3_i32, %c2_i32_45 : i32
    %c0_i32_46 = arith.constant 0 : i32
    %78 = arith.addi %77, %c0_i32_46 : i32
    %79 = arith.index_cast %78 : i32 to index
    %80 = memref.load %arg0[%79] : memref<32xi32, #tpu.memory_space<smem>>
    %81 = arith.index_cast %80 : i32 to index
    %c0_47 = arith.constant 0 : index
    %82 = vector.load %arg12[%81, %c0_47] : memref<32x128xf32, #tpu.memory_space<vmem>>, vector<1x128xf32>
    %c0_i32_48 = arith.constant 0 : i32
    %83 = arith.cmpi sgt, %80, %c0_i32_48 : i32
    %cst_49 = arith.constant 0.000000e+00 : f32
    %84 = vector.broadcast %cst_49 : f32 to vector<1x128xf32>
    %85 = arith.select %83, %82, %84 : vector<1x128xf32>
    %86 = arith.addf %76, %85 : vector<1x128xf32>
    %c2_i32_50 = arith.constant 2 : i32
    %87 = arith.muli %c3_i32, %c2_i32_50 : i32
    %c1_i32_51 = arith.constant 1 : i32
    %88 = arith.addi %87, %c1_i32_51 : i32
    %89 = arith.index_cast %88 : i32 to index
    %90 = memref.load %arg0[%89] : memref<32xi32, #tpu.memory_space<smem>>
    %91 = arith.index_cast %90 : i32 to index
    %c0_52 = arith.constant 0 : index
    %92 = vector.load %arg12[%91, %c0_52] : memref<32x128xf32, #tpu.memory_space<vmem>>, vector<1x128xf32>
    %c0_i32_53 = arith.constant 0 : i32
    %93 = arith.cmpi sgt, %90, %c0_i32_53 : i32
    %cst_54 = arith.constant 0.000000e+00 : f32
    %94 = vector.broadcast %cst_54 : f32 to vector<1x128xf32>
    %95 = arith.select %93, %92, %94 : vector<1x128xf32>
    %96 = arith.addf %86, %95 : vector<1x128xf32>
    %97 = arith.index_cast %c3_i32 : i32 to index
    %c0_55 = arith.constant 0 : index
    %98 = vector.load %arg14[%97, %c0_55] : memref<16x128xf32, #tpu.memory_space<vmem>>, vector<1x128xf32>
    tpu.vector_store %arg14[%97, %c0_55], %96 {strides = array<i32>} : memref<16x128xf32, #tpu.memory_space<vmem>>, vector<1x128xf32>,
    %c4_i32 = arith.constant 4 : i32
    %cst_56 = arith.constant 0.000000e+00 : f32
    %99 = vector.broadcast %cst_56 : f32 to vector<1x128xf32>
    %c2_i32_57 = arith.constant 2 : i32
    %100 = arith.muli %c4_i32, %c2_i32_57 : i32
    %c0_i32_58 = arith.constant 0 : i32
    %101 = arith.addi %100, %c0_i32_58 : i32
    %102 = arith.index_cast %101 : i32 to index
    %103 = memref.load %arg0[%102] : memref<32xi32, #tpu.memory_space<smem>>
    %104 = arith.index_cast %103 : i32 to index
    %c0_59 = arith.constant 0 : index
    %105 = vector.load %arg12[%104, %c0_59] : memref<32x128xf32, #tpu.memory_space<vmem>>, vector<1x128xf32>
    %c0_i32_60 = arith.constant 0 : i32
    %106 = arith.cmpi sgt, %103, %c0_i32_60 : i32
    %cst_61 = arith.constant 0.000000e+00 : f32
    %107 = vector.broadcast %cst_61 : f32 to vector<1x128xf32>
    %108 = arith.select %106, %105, %107 : vector<1x128xf32>
    %109 = arith.addf %99, %108 : vector<1x128xf32>
    %c2_i32_62 = arith.constant 2 : i32
    %110 = arith.muli %c4_i32, %c2_i32_62 : i32
    %c1_i32_63 = arith.constant 1 : i32
    %111 = arith.addi %110, %c1_i32_63 : i32
    %112 = arith.index_cast %111 : i32 to index
    %113 = memref.load %arg0[%112] : memref<32xi32, #tpu.memory_space<smem>>
    %114 = arith.index_cast %113 : i32 to index
    %c0_64 = arith.constant 0 : index
    %115 = vector.load %arg12[%114, %c0_64] : memref<32x128xf32, #tpu.memory_space<vmem>>, vector<1x128xf32>
    %c0_i32_65 = arith.constant 0 : i32
    %116 = arith.cmpi sgt, %113, %c0_i32_65 : i32
    %cst_66 = arith.constant 0.000000e+00 : f32
    %117 = vector.broadcast %cst_66 : f32 to vector<1x128xf32>
    %118 = arith.select %116, %115, %117 : vector<1x128xf32>
    %119 = arith.addf %109, %118 : vector<1x128xf32>
    %120 = arith.index_cast %c4_i32 : i32 to index
    %c0_67 = arith.constant 0 : index
    %121 = vector.load %arg14[%120, %c0_67] : memref<16x128xf32, #tpu.memory_space<vmem>>, vector<1x128xf32>
    tpu.vector_store %arg14[%120, %c0_67], %119 {strides = array<i32>} : memref<16x128xf32, #tpu.memory_space<vmem>>, vector<1x128xf32>,
    %c5_i32 = arith.constant 5 : i32
    %cst_68 = arith.constant 0.000000e+00 : f32
    %122 = vector.broadcast %cst_68 : f32 to vector<1x128xf32>
    %c2_i32_69 = arith.constant 2 : i32
    %123 = arith.muli %c5_i32, %c2_i32_69 : i32
    %c0_i32_70 = arith.constant 0 : i32
    %124 = arith.addi %123, %c0_i32_70 : i32
    %125 = arith.index_cast %124 : i32 to index
    %126 = memref.load %arg0[%125] : memref<32xi32, #tpu.memory_space<smem>>
    %127 = arith.index_cast %126 : i32 to index
    %c0_71 = arith.constant 0 : index
    %128 = vector.load %arg12[%127, %c0_71] : memref<32x128xf32, #tpu.memory_space<vmem>>, vector<1x128xf32>
    %c0_i32_72 = arith.constant 0 : i32
    %129 = arith.cmpi sgt, %126, %c0_i32_72 : i32
    %cst_73 = arith.constant 0.000000e+00 : f32
    %130 = vector.broadcast %cst_73 : f32 to vector<1x128xf32>
    %131 = arith.select %129, %128, %130 : vector<1x128xf32>
    %132 = arith.addf %122, %131 : vector<1x128xf32>
    %c2_i32_74 = arith.constant 2 : i32
    %133 = arith.muli %c5_i32, %c2_i32_74 : i32
    %c1_i32_75 = arith.constant 1 : i32
    %134 = arith.addi %133, %c1_i32_75 : i32
    %135 = arith.index_cast %134 : i32 to index
    %136 = memref.load %arg0[%135] : memref<32xi32, #tpu.memory_space<smem>>
    %137 = arith.index_cast %136 : i32 to index
    %c0_76 = arith.constant 0 : index
    %138 = vector.load %arg12[%137, %c0_76] : memref<32x128xf32, #tpu.memory_space<vmem>>, vector<1x128xf32>
    %c0_i32_77 = arith.constant 0 : i32
    %139 = arith.cmpi sgt, %136, %c0_i32_77 : i32
    %cst_78 = arith.constant 0.000000e+00 : f32
    %140 = vector.broadcast %cst_78 : f32 to vector<1x128xf32>
    %141 = arith.select %139, %138, %140 : vector<1x128xf32>
    %142 = arith.addf %132, %141 : vector<1x128xf32>
    %143 = arith.index_cast %c5_i32 : i32 to index
    %c0_79 = arith.constant 0 : index
    %144 = vector.load %arg14[%143, %c0_79] : memref<16x128xf32, #tpu.memory_space<vmem>>, vector<1x128xf32>
    tpu.vector_store %arg14[%143, %c0_79], %142 {strides = array<i32>} : memref<16x128xf32, #tpu.memory_space<vmem>>, vector<1x128xf32>,
    %c6_i32 = arith.constant 6 : i32
    %cst_80 = arith.constant 0.000000e+00 : f32
    %145 = vector.broadcast %cst_80 : f32 to vector<1x128xf32>
    %c2_i32_81 = arith.constant 2 : i32
    %146 = arith.muli %c6_i32, %c2_i32_81 : i32
    %c0_i32_82 = arith.constant 0 : i32
    %147 = arith.addi %146, %c0_i32_82 : i32
    %148 = arith.index_cast %147 : i32 to index
    %149 = memref.load %arg0[%148] : memref<32xi32, #tpu.memory_space<smem>>
    %150 = arith.index_cast %149 : i32 to index
    %c0_83 = arith.constant 0 : index
    %151 = vector.load %arg12[%150, %c0_83] : memref<32x128xf32, #tpu.memory_space<vmem>>, vector<1x128xf32>
    %c0_i32_84 = arith.constant 0 : i32
    %152 = arith.cmpi sgt, %149, %c0_i32_84 : i32
    %cst_85 = arith.constant 0.000000e+00 : f32
    %153 = vector.broadcast %cst_85 : f32 to vector<1x128xf32>
    %154 = arith.select %152, %151, %153 : vector<1x128xf32>
    %155 = arith.addf %145, %154 : vector<1x128xf32>
    %c2_i32_86 = arith.constant 2 : i32
    %156 = arith.muli %c6_i32, %c2_i32_86 : i32
    %c1_i32_87 = arith.constant 1 : i32
    %157 = arith.addi %156, %c1_i32_87 : i32
    %158 = arith.index_cast %157 : i32 to index
    %159 = memref.load %arg0[%158] : memref<32xi32, #tpu.memory_space<smem>>
    %160 = arith.index_cast %159 : i32 to index
    %c0_88 = arith.constant 0 : index
    %161 = vector.load %arg12[%160, %c0_88] : memref<32x128xf32, #tpu.memory_space<vmem>>, vector<1x128xf32>
    %c0_i32_89 = arith.constant 0 : i32
    %162 = arith.cmpi sgt, %159, %c0_i32_89 : i32
    %cst_90 = arith.constant 0.000000e+00 : f32
    %163 = vector.broadcast %cst_90 : f32 to vector<1x128xf32>
    %164 = arith.select %162, %161, %163 : vector<1x128xf32>
    %165 = arith.addf %155, %164 : vector<1x128xf32>
    %166 = arith.index_cast %c6_i32 : i32 to index
    %c0_91 = arith.constant 0 : index
    %167 = vector.load %arg14[%166, %c0_91] : memref<16x128xf32, #tpu.memory_space<vmem>>, vector<1x128xf32>
    tpu.vector_store %arg14[%166, %c0_91], %165 {strides = array<i32>} : memref<16x128xf32, #tpu.memory_space<vmem>>, vector<1x128xf32>,
    %c7_i32 = arith.constant 7 : i32
    %cst_92 = arith.constant 0.000000e+00 : f32
    %168 = vector.broadcast %cst_92 : f32 to vector<1x128xf32>
    %c2_i32_93 = arith.constant 2 : i32
    %169 = arith.muli %c7_i32, %c2_i32_93 : i32
    %c0_i32_94 = arith.constant 0 : i32
    %170 = arith.addi %169, %c0_i32_94 : i32
    %171 = arith.index_cast %170 : i32 to index
    %172 = memref.load %arg0[%171] : memref<32xi32, #tpu.memory_space<smem>>
    %173 = arith.index_cast %172 : i32 to index
    %c0_95 = arith.constant 0 : index
    %174 = vector.load %arg12[%173, %c0_95] : memref<32x128xf32, #tpu.memory_space<vmem>>, vector<1x128xf32>
    %c0_i32_96 = arith.constant 0 : i32
    %175 = arith.cmpi sgt, %172, %c0_i32_96 : i32
    %cst_97 = arith.constant 0.000000e+00 : f32
    %176 = vector.broadcast %cst_97 : f32 to vector<1x128xf32>
    %177 = arith.select %175, %174, %176 : vector<1x128xf32>
    %178 = arith.addf %168, %177 : vector<1x128xf32>
    %c2_i32_98 = arith.constant 2 : i32
    %179 = arith.muli %c7_i32, %c2_i32_98 : i32
    %c1_i32_99 = arith.constant 1 : i32
    %180 = arith.addi %179, %c1_i32_99 : i32
    %181 = arith.index_cast %180 : i32 to index
    %182 = memref.load %arg0[%181] : memref<32xi32, #tpu.memory_space<smem>>
    %183 = arith.index_cast %182 : i32 to index
    %c0_100 = arith.constant 0 : index
    %184 = vector.load %arg12[%183, %c0_100] : memref<32x128xf32, #tpu.memory_space<vmem>>, vector<1x128xf32>
    %c0_i32_101 = arith.constant 0 : i32
    %185 = arith.cmpi sgt, %182, %c0_i32_101 : i32
    %cst_102 = arith.constant 0.000000e+00 : f32
    %186 = vector.broadcast %cst_102 : f32 to vector<1x128xf32>
    %187 = arith.select %185, %184, %186 : vector<1x128xf32>
    %188 = arith.addf %178, %187 : vector<1x128xf32>
    %189 = arith.index_cast %c7_i32 : i32 to index
    %c0_103 = arith.constant 0 : index
    %190 = vector.load %arg14[%189, %c0_103] : memref<16x128xf32, #tpu.memory_space<vmem>>, vector<1x128xf32>
    tpu.vector_store %arg14[%189, %c0_103], %188 {strides = array<i32>} : memref<16x128xf32, #tpu.memory_space<vmem>>, vector<1x128xf32>,
    %c8_i32 = arith.constant 8 : i32
    %cst_104 = arith.constant 0.000000e+00 : f32
    %191 = vector.broadcast %cst_104 : f32 to vector<1x128xf32>
    %c2_i32_105 = arith.constant 2 : i32
    %192 = arith.muli %c8_i32, %c2_i32_105 : i32
    %c0_i32_106 = arith.constant 0 : i32
    %193 = arith.addi %192, %c0_i32_106 : i32
    %194 = arith.index_cast %193 : i32 to index
    %195 = memref.load %arg0[%194] : memref<32xi32, #tpu.memory_space<smem>>
    %196 = arith.index_cast %195 : i32 to index
    %c0_107 = arith.constant 0 : index
    %197 = vector.load %arg12[%196, %c0_107] : memref<32x128xf32, #tpu.memory_space<vmem>>, vector<1x128xf32>
    %c0_i32_108 = arith.constant 0 : i32
    %198 = arith.cmpi sgt, %195, %c0_i32_108 : i32
    %cst_109 = arith.constant 0.000000e+00 : f32
    %199 = vector.broadcast %cst_109 : f32 to vector<1x128xf32>
    %200 = arith.select %198, %197, %199 : vector<1x128xf32>
    %201 = arith.addf %191, %200 : vector<1x128xf32>
    %c2_i32_110 = arith.constant 2 : i32
    %202 = arith.muli %c8_i32, %c2_i32_110 : i32
    %c1_i32_111 = arith.constant 1 : i32
    %203 = arith.addi %202, %c1_i32_111 : i32
    %204 = arith.index_cast %203 : i32 to index
    %205 = memref.load %arg0[%204] : memref<32xi32, #tpu.memory_space<smem>>
    %206 = arith.index_cast %205 : i32 to index
    %c0_112 = arith.constant 0 : index
    %207 = vector.load %arg12[%206, %c0_112] : memref<32x128xf32, #tpu.memory_space<vmem>>, vector<1x128xf32>
    %c0_i32_113 = arith.constant 0 : i32
    %208 = arith.cmpi sgt, %205, %c0_i32_113 : i32
    %cst_114 = arith.constant 0.000000e+00 : f32
    %209 = vector.broadcast %cst_114 : f32 to vector<1x128xf32>
    %210 = arith.select %208, %207, %209 : vector<1x128xf32>
    %211 = arith.addf %201, %210 : vector<1x128xf32>
    %212 = arith.index_cast %c8_i32 : i32 to index
    %c0_115 = arith.constant 0 : index
    %213 = vector.load %arg14[%212, %c0_115] : memref<16x128xf32, #tpu.memory_space<vmem>>, vector<1x128xf32>
    tpu.vector_store %arg14[%212, %c0_115], %211 {strides = array<i32>} : memref<16x128xf32, #tpu.memory_space<vmem>>, vector<1x128xf32>,
    %c9_i32 = arith.constant 9 : i32
    %cst_116 = arith.constant 0.000000e+00 : f32
    %214 = vector.broadcast %cst_116 : f32 to vector<1x128xf32>
    %c2_i32_117 = arith.constant 2 : i32
    %215 = arith.muli %c9_i32, %c2_i32_117 : i32
    %c0_i32_118 = arith.constant 0 : i32
    %216 = arith.addi %215, %c0_i32_118 : i32
    %217 = arith.index_cast %216 : i32 to index
    %218 = memref.load %arg0[%217] : memref<32xi32, #tpu.memory_space<smem>>
    %219 = arith.index_cast %218 : i32 to index
    %c0_119 = arith.constant 0 : index
    %220 = vector.load %arg12[%219, %c0_119] : memref<32x128xf32, #tpu.memory_space<vmem>>, vector<1x128xf32>
    %c0_i32_120 = arith.constant 0 : i32
    %221 = arith.cmpi sgt, %218, %c0_i32_120 : i32
    %cst_121 = arith.constant 0.000000e+00 : f32
    %222 = vector.broadcast %cst_121 : f32 to vector<1x128xf32>
    %223 = arith.select %221, %220, %222 : vector<1x128xf32>
    %224 = arith.addf %214, %223 : vector<1x128xf32>
    %c2_i32_122 = arith.constant 2 : i32
    %225 = arith.muli %c9_i32, %c2_i32_122 : i32
    %c1_i32_123 = arith.constant 1 : i32
    %226 = arith.addi %225, %c1_i32_123 : i32
    %227 = arith.index_cast %226 : i32 to index
    %228 = memref.load %arg0[%227] : memref<32xi32, #tpu.memory_space<smem>>
    %229 = arith.index_cast %228 : i32 to index
    %c0_124 = arith.constant 0 : index
    %230 = vector.load %arg12[%229, %c0_124] : memref<32x128xf32, #tpu.memory_space<vmem>>, vector<1x128xf32>
    %c0_i32_125 = arith.constant 0 : i32
    %231 = arith.cmpi sgt, %228, %c0_i32_125 : i32
    %cst_126 = arith.constant 0.000000e+00 : f32
    %232 = vector.broadcast %cst_126 : f32 to vector<1x128xf32>
    %233 = arith.select %231, %230, %232 : vector<1x128xf32>
    %234 = arith.addf %224, %233 : vector<1x128xf32>
    %235 = arith.index_cast %c9_i32 : i32 to index
    %c0_127 = arith.constant 0 : index
    %236 = vector.load %arg14[%235, %c0_127] : memref<16x128xf32, #tpu.memory_space<vmem>>, vector<1x128xf32>
    tpu.vector_store %arg14[%235, %c0_127], %234 {strides = array<i32>} : memref<16x128xf32, #tpu.memory_space<vmem>>, vector<1x128xf32>,
    %c10_i32 = arith.constant 10 : i32
    %cst_128 = arith.constant 0.000000e+00 : f32
    %237 = vector.broadcast %cst_128 : f32 to vector<1x128xf32>
    %c2_i32_129 = arith.constant 2 : i32
    %238 = arith.muli %c10_i32, %c2_i32_129 : i32
    %c0_i32_130 = arith.constant 0 : i32
    %239 = arith.addi %238, %c0_i32_130 : i32
    %240 = arith.index_cast %239 : i32 to index
    %241 = memref.load %arg0[%240] : memref<32xi32, #tpu.memory_space<smem>>
    %242 = arith.index_cast %241 : i32 to index
    %c0_131 = arith.constant 0 : index
    %243 = vector.load %arg12[%242, %c0_131] : memref<32x128xf32, #tpu.memory_space<vmem>>, vector<1x128xf32>
    %c0_i32_132 = arith.constant 0 : i32
    %244 = arith.cmpi sgt, %241, %c0_i32_132 : i32
    %cst_133 = arith.constant 0.000000e+00 : f32
    %245 = vector.broadcast %cst_133 : f32 to vector<1x128xf32>
    %246 = arith.select %244, %243, %245 : vector<1x128xf32>
    %247 = arith.addf %237, %246 : vector<1x128xf32>
    %c2_i32_134 = arith.constant 2 : i32
    %248 = arith.muli %c10_i32, %c2_i32_134 : i32
    %c1_i32_135 = arith.constant 1 : i32
    %249 = arith.addi %248, %c1_i32_135 : i32
    %250 = arith.index_cast %249 : i32 to index
    %251 = memref.load %arg0[%250] : memref<32xi32, #tpu.memory_space<smem>>
    %252 = arith.index_cast %251 : i32 to index
    %c0_136 = arith.constant 0 : index
    %253 = vector.load %arg12[%252, %c0_136] : memref<32x128xf32, #tpu.memory_space<vmem>>, vector<1x128xf32>
    %c0_i32_137 = arith.constant 0 : i32
    %254 = arith.cmpi sgt, %251, %c0_i32_137 : i32
    %cst_138 = arith.constant 0.000000e+00 : f32
    %255 = vector.broadcast %cst_138 : f32 to vector<1x128xf32>
    %256 = arith.select %254, %253, %255 : vector<1x128xf32>
    %257 = arith.addf %247, %256 : vector<1x128xf32>
    %258 = arith.index_cast %c10_i32 : i32 to index
    %c0_139 = arith.constant 0 : index
    %259 = vector.load %arg14[%258, %c0_139] : memref<16x128xf32, #tpu.memory_space<vmem>>, vector<1x128xf32>
    tpu.vector_store %arg14[%258, %c0_139], %257 {strides = array<i32>} : memref<16x128xf32, #tpu.memory_space<vmem>>, vector<1x128xf32>,
    %c11_i32 = arith.constant 11 : i32
    %cst_140 = arith.constant 0.000000e+00 : f32
    %260 = vector.broadcast %cst_140 : f32 to vector<1x128xf32>
    %c2_i32_141 = arith.constant 2 : i32
    %261 = arith.muli %c11_i32, %c2_i32_141 : i32
    %c0_i32_142 = arith.constant 0 : i32
    %262 = arith.addi %261, %c0_i32_142 : i32
    %263 = arith.index_cast %262 : i32 to index
    %264 = memref.load %arg0[%263] : memref<32xi32, #tpu.memory_space<smem>>
    %265 = arith.index_cast %264 : i32 to index
    %c0_143 = arith.constant 0 : index
    %266 = vector.load %arg12[%265, %c0_143] : memref<32x128xf32, #tpu.memory_space<vmem>>, vector<1x128xf32>
    %c0_i32_144 = arith.constant 0 : i32
    %267 = arith.cmpi sgt, %264, %c0_i32_144 : i32
    %cst_145 = arith.constant 0.000000e+00 : f32
    %268 = vector.broadcast %cst_145 : f32 to vector<1x128xf32>
    %269 = arith.select %267, %266, %268 : vector<1x128xf32>
    %270 = arith.addf %260, %269 : vector<1x128xf32>
    %c2_i32_146 = arith.constant 2 : i32
    %271 = arith.muli %c11_i32, %c2_i32_146 : i32
    %c1_i32_147 = arith.constant 1 : i32
    %272 = arith.addi %271, %c1_i32_147 : i32
    %273 = arith.index_cast %272 : i32 to index
    %274 = memref.load %arg0[%273] : memref<32xi32, #tpu.memory_space<smem>>
    %275 = arith.index_cast %274 : i32 to index
    %c0_148 = arith.constant 0 : index
    %276 = vector.load %arg12[%275, %c0_148] : memref<32x128xf32, #tpu.memory_space<vmem>>, vector<1x128xf32>
    %c0_i32_149 = arith.constant 0 : i32
    %277 = arith.cmpi sgt, %274, %c0_i32_149 : i32
    %cst_150 = arith.constant 0.000000e+00 : f32
    %278 = vector.broadcast %cst_150 : f32 to vector<1x128xf32>
    %279 = arith.select %277, %276, %278 : vector<1x128xf32>
    %280 = arith.addf %270, %279 : vector<1x128xf32>
    %281 = arith.index_cast %c11_i32 : i32 to index
    %c0_151 = arith.constant 0 : index
    %282 = vector.load %arg14[%281, %c0_151] : memref<16x128xf32, #tpu.memory_space<vmem>>, vector<1x128xf32>
    tpu.vector_store %arg14[%281, %c0_151], %280 {strides = array<i32>} : memref<16x128xf32, #tpu.memory_space<vmem>>, vector<1x128xf32>,
    %c12_i32 = arith.constant 12 : i32
    %cst_152 = arith.constant 0.000000e+00 : f32
    %283 = vector.broadcast %cst_152 : f32 to vector<1x128xf32>
    %c2_i32_153 = arith.constant 2 : i32
    %284 = arith.muli %c12_i32, %c2_i32_153 : i32
    %c0_i32_154 = arith.constant 0 : i32
    %285 = arith.addi %284, %c0_i32_154 : i32
    %286 = arith.index_cast %285 : i32 to index
    %287 = memref.load %arg0[%286] : memref<32xi32, #tpu.memory_space<smem>>
    %288 = arith.index_cast %287 : i32 to index
    %c0_155 = arith.constant 0 : index
    %289 = vector.load %arg12[%288, %c0_155] : memref<32x128xf32, #tpu.memory_space<vmem>>, vector<1x128xf32>
    %c0_i32_156 = arith.constant 0 : i32
    %290 = arith.cmpi sgt, %287, %c0_i32_156 : i32
    %cst_157 = arith.constant 0.000000e+00 : f32
    %291 = vector.broadcast %cst_157 : f32 to vector<1x128xf32>
    %292 = arith.select %290, %289, %291 : vector<1x128xf32>
    %293 = arith.addf %283, %292 : vector<1x128xf32>
    %c2_i32_158 = arith.constant 2 : i32
    %294 = arith.muli %c12_i32, %c2_i32_158 : i32
    %c1_i32_159 = arith.constant 1 : i32
    %295 = arith.addi %294, %c1_i32_159 : i32
    %296 = arith.index_cast %295 : i32 to index
    %297 = memref.load %arg0[%296] : memref<32xi32, #tpu.memory_space<smem>>
    %298 = arith.index_cast %297 : i32 to index
    %c0_160 = arith.constant 0 : index
    %299 = vector.load %arg12[%298, %c0_160] : memref<32x128xf32, #tpu.memory_space<vmem>>, vector<1x128xf32>
    %c0_i32_161 = arith.constant 0 : i32
    %300 = arith.cmpi sgt, %297, %c0_i32_161 : i32
    %cst_162 = arith.constant 0.000000e+00 : f32
    %301 = vector.broadcast %cst_162 : f32 to vector<1x128xf32>
    %302 = arith.select %300, %299, %301 : vector<1x128xf32>
    %303 = arith.addf %293, %302 : vector<1x128xf32>
    %304 = arith.index_cast %c12_i32 : i32 to index
    %c0_163 = arith.constant 0 : index
    %305 = vector.load %arg14[%304, %c0_163] : memref<16x128xf32, #tpu.memory_space<vmem>>, vector<1x128xf32>
    tpu.vector_store %arg14[%304, %c0_163], %303 {strides = array<i32>} : memref<16x128xf32, #tpu.memory_space<vmem>>, vector<1x128xf32>,
    %c13_i32 = arith.constant 13 : i32
    %cst_164 = arith.constant 0.000000e+00 : f32
    %306 = vector.broadcast %cst_164 : f32 to vector<1x128xf32>
    %c2_i32_165 = arith.constant 2 : i32
    %307 = arith.muli %c13_i32, %c2_i32_165 : i32
    %c0_i32_166 = arith.constant 0 : i32
    %308 = arith.addi %307, %c0_i32_166 : i32
    %309 = arith.index_cast %308 : i32 to index
    %310 = memref.load %arg0[%309] : memref<32xi32, #tpu.memory_space<smem>>
    %311 = arith.index_cast %310 : i32 to index
    %c0_167 = arith.constant 0 : index
    %312 = vector.load %arg12[%311, %c0_167] : memref<32x128xf32, #tpu.memory_space<vmem>>, vector<1x128xf32>
    %c0_i32_168 = arith.constant 0 : i32
    %313 = arith.cmpi sgt, %310, %c0_i32_168 : i32
    %cst_169 = arith.constant 0.000000e+00 : f32
    %314 = vector.broadcast %cst_169 : f32 to vector<1x128xf32>
    %315 = arith.select %313, %312, %314 : vector<1x128xf32>
    %316 = arith.addf %306, %315 : vector<1x128xf32>
    %c2_i32_170 = arith.constant 2 : i32
    %317 = arith.muli %c13_i32, %c2_i32_170 : i32
    %c1_i32_171 = arith.constant 1 : i32
    %318 = arith.addi %317, %c1_i32_171 : i32
    %319 = arith.index_cast %318 : i32 to index
    %320 = memref.load %arg0[%319] : memref<32xi32, #tpu.memory_space<smem>>
    %321 = arith.index_cast %320 : i32 to index
    %c0_172 = arith.constant 0 : index
    %322 = vector.load %arg12[%321, %c0_172] : memref<32x128xf32, #tpu.memory_space<vmem>>, vector<1x128xf32>
    %c0_i32_173 = arith.constant 0 : i32
    %323 = arith.cmpi sgt, %320, %c0_i32_173 : i32
    %cst_174 = arith.constant 0.000000e+00 : f32
    %324 = vector.broadcast %cst_174 : f32 to vector<1x128xf32>
    %325 = arith.select %323, %322, %324 : vector<1x128xf32>
    %326 = arith.addf %316, %325 : vector<1x128xf32>
    %327 = arith.index_cast %c13_i32 : i32 to index
    %c0_175 = arith.constant 0 : index
    %328 = vector.load %arg14[%327, %c0_175] : memref<16x128xf32, #tpu.memory_space<vmem>>, vector<1x128xf32>
    tpu.vector_store %arg14[%327, %c0_175], %326 {strides = array<i32>} : memref<16x128xf32, #tpu.memory_space<vmem>>, vector<1x128xf32>,
    %c14_i32 = arith.constant 14 : i32
    %cst_176 = arith.constant 0.000000e+00 : f32
    %329 = vector.broadcast %cst_176 : f32 to vector<1x128xf32>
    %c2_i32_177 = arith.constant 2 : i32
    %330 = arith.muli %c14_i32, %c2_i32_177 : i32
    %c0_i32_178 = arith.constant 0 : i32
    %331 = arith.addi %330, %c0_i32_178 : i32
    %332 = arith.index_cast %331 : i32 to index
    %333 = memref.load %arg0[%332] : memref<32xi32, #tpu.memory_space<smem>>
    %334 = arith.index_cast %333 : i32 to index
    %c0_179 = arith.constant 0 : index
    %335 = vector.load %arg12[%334, %c0_179] : memref<32x128xf32, #tpu.memory_space<vmem>>, vector<1x128xf32>
    %c0_i32_180 = arith.constant 0 : i32
    %336 = arith.cmpi sgt, %333, %c0_i32_180 : i32
    %cst_181 = arith.constant 0.000000e+00 : f32
    %337 = vector.broadcast %cst_181 : f32 to vector<1x128xf32>
    %338 = arith.select %336, %335, %337 : vector<1x128xf32>
    %339 = arith.addf %329, %338 : vector<1x128xf32>
    %c2_i32_182 = arith.constant 2 : i32
    %340 = arith.muli %c14_i32, %c2_i32_182 : i32
    %c1_i32_183 = arith.constant 1 : i32
    %341 = arith.addi %340, %c1_i32_183 : i32
    %342 = arith.index_cast %341 : i32 to index
    %343 = memref.load %arg0[%342] : memref<32xi32, #tpu.memory_space<smem>>
    %344 = arith.index_cast %343 : i32 to index
    %c0_184 = arith.constant 0 : index
    %345 = vector.load %arg12[%344, %c0_184] : memref<32x128xf32, #tpu.memory_space<vmem>>, vector<1x128xf32>
    %c0_i32_185 = arith.constant 0 : i32
    %346 = arith.cmpi sgt, %343, %c0_i32_185 : i32
    %cst_186 = arith.constant 0.000000e+00 : f32
    %347 = vector.broadcast %cst_186 : f32 to vector<1x128xf32>
    %348 = arith.select %346, %345, %347 : vector<1x128xf32>
    %349 = arith.addf %339, %348 : vector<1x128xf32>
    %350 = arith.index_cast %c14_i32 : i32 to index
    %c0_187 = arith.constant 0 : index
    %351 = vector.load %arg14[%350, %c0_187] : memref<16x128xf32, #tpu.memory_space<vmem>>, vector<1x128xf32>
    tpu.vector_store %arg14[%350, %c0_187], %349 {strides = array<i32>} : memref<16x128xf32, #tpu.memory_space<vmem>>, vector<1x128xf32>,
    %c15_i32 = arith.constant 15 : i32
    %cst_188 = arith.constant 0.000000e+00 : f32
    %352 = vector.broadcast %cst_188 : f32 to vector<1x128xf32>
    %c2_i32_189 = arith.constant 2 : i32
    %353 = arith.muli %c15_i32, %c2_i32_189 : i32
    %c0_i32_190 = arith.constant 0 : i32
    %354 = arith.addi %353, %c0_i32_190 : i32
    %355 = arith.index_cast %354 : i32 to index
    %356 = memref.load %arg0[%355] : memref<32xi32, #tpu.memory_space<smem>>
    %357 = arith.index_cast %356 : i32 to index
    %c0_191 = arith.constant 0 : index
    %358 = vector.load %arg12[%357, %c0_191] : memref<32x128xf32, #tpu.memory_space<vmem>>, vector<1x128xf32>
    %c0_i32_192 = arith.constant 0 : i32
    %359 = arith.cmpi sgt, %356, %c0_i32_192 : i32
    %cst_193 = arith.constant 0.000000e+00 : f32
    %360 = vector.broadcast %cst_193 : f32 to vector<1x128xf32>
    %361 = arith.select %359, %358, %360 : vector<1x128xf32>
    %362 = arith.addf %352, %361 : vector<1x128xf32>
    %c2_i32_194 = arith.constant 2 : i32
    %363 = arith.muli %c15_i32, %c2_i32_194 : i32
    %c1_i32_195 = arith.constant 1 : i32
    %364 = arith.addi %363, %c1_i32_195 : i32
    %365 = arith.index_cast %364 : i32 to index
    %366 = memref.load %arg0[%365] : memref<32xi32, #tpu.memory_space<smem>>
    %367 = arith.index_cast %366 : i32 to index
    %c0_196 = arith.constant 0 : index
    %368 = vector.load %arg12[%367, %c0_196] : memref<32x128xf32, #tpu.memory_space<vmem>>, vector<1x128xf32>
    %c0_i32_197 = arith.constant 0 : i32
    %369 = arith.cmpi sgt, %366, %c0_i32_197 : i32
    %cst_198 = arith.constant 0.000000e+00 : f32
    %370 = vector.broadcast %cst_198 : f32 to vector<1x128xf32>
    %371 = arith.select %369, %368, %370 : vector<1x128xf32>
    %372 = arith.addf %362, %371 : vector<1x128xf32>
    %373 = arith.index_cast %c15_i32 : i32 to index
    %c0_199 = arith.constant 0 : index
    %374 = vector.load %arg14[%373, %c0_199] : memref<16x128xf32, #tpu.memory_space<vmem>>, vector<1x128xf32>
    tpu.vector_store %arg14[%373, %c0_199], %372 {strides = array<i32>} : memref<16x128xf32, #tpu.memory_space<vmem>>, vector<1x128xf32>,
    %c16_i32 = arith.constant 16 : i32
    %c0_i32_200 = arith.constant 0 : i32
    %375 = arith.index_cast %c0_i32_200 : i32 to index
    %376 = memref.load %arg1[%375] : memref<32xi32, #tpu.memory_space<smem>>
    %377 = arith.index_cast %c0_i32_200 : i32 to index
    %378 = memref.load %arg2[%377] : memref<32xi32, #tpu.memory_space<smem>>
    %379 = arith.index_cast %376 : i32 to index
    %c0_201 = arith.constant 0 : index
    %380 = vector.load %arg14[%379, %c0_201] : memref<16x128xf32, #tpu.memory_space<vmem>>, vector<1x128xf32>
    %381 = arith.index_cast %378 : i32 to index
    %c0_202 = arith.constant 0 : index
    %382 = vector.load %arg12[%381, %c0_202] : memref<32x128xf32, #tpu.memory_space<vmem>>, vector<1x128xf32>
    %383 = arith.subf %380, %382 : vector<1x128xf32>
    %384 = arith.index_cast %c0_i32_200 : i32 to index
    %c0_203 = arith.constant 0 : index
    %385 = vector.load %arg13[%384, %c0_203] : memref<32x128xf32, #tpu.memory_space<vmem>>, vector<1x128xf32>
    tpu.vector_store %arg13[%384, %c0_203], %383 {strides = array<i32>} : memref<32x128xf32, #tpu.memory_space<vmem>>, vector<1x128xf32>,
    %c1_i32_204 = arith.constant 1 : i32
    %386 = arith.index_cast %c1_i32_204 : i32 to index
    %387 = memref.load %arg1[%386] : memref<32xi32, #tpu.memory_space<smem>>
    %388 = arith.index_cast %c1_i32_204 : i32 to index
    %389 = memref.load %arg2[%388] : memref<32xi32, #tpu.memory_space<smem>>
    %390 = arith.index_cast %387 : i32 to index
    %c0_205 = arith.constant 0 : index
    %391 = vector.load %arg14[%390, %c0_205] : memref<16x128xf32, #tpu.memory_space<vmem>>, vector<1x128xf32>
    %392 = arith.index_cast %389 : i32 to index
    %c0_206 = arith.constant 0 : index
    %393 = vector.load %arg12[%392, %c0_206] : memref<32x128xf32, #tpu.memory_space<vmem>>, vector<1x128xf32>
    %394 = arith.subf %391, %393 : vector<1x128xf32>
    %395 = arith.index_cast %c1_i32_204 : i32 to index
    %c0_207 = arith.constant 0 : index
    %396 = vector.load %arg13[%395, %c0_207] : memref<32x128xf32, #tpu.memory_space<vmem>>, vector<1x128xf32>
    tpu.vector_store %arg13[%395, %c0_207], %394 {strides = array<i32>} : memref<32x128xf32, #tpu.memory_space<vmem>>, vector<1x128xf32>,
    %c2_i32_208 = arith.constant 2 : i32
    %397 = arith.index_cast %c2_i32_208 : i32 to index
    %398 = memref.load %arg1[%397] : memref<32xi32, #tpu.memory_space<smem>>
    %399 = arith.index_cast %c2_i32_208 : i32 to index
    %400 = memref.load %arg2[%399] : memref<32xi32, #tpu.memory_space<smem>>
    %401 = arith.index_cast %398 : i32 to index
    %c0_209 = arith.constant 0 : index
    %402 = vector.load %arg14[%401, %c0_209] : memref<16x128xf32, #tpu.memory_space<vmem>>, vector<1x128xf32>
    %403 = arith.index_cast %400 : i32 to index
    %c0_210 = arith.constant 0 : index
    %404 = vector.load %arg12[%403, %c0_210] : memref<32x128xf32, #tpu.memory_space<vmem>>, vector<1x128xf32>
    %405 = arith.subf %402, %404 : vector<1x128xf32>
    %406 = arith.index_cast %c2_i32_208 : i32 to index
    %c0_211 = arith.constant 0 : index
    %407 = vector.load %arg13[%406, %c0_211] : memref<32x128xf32, #tpu.memory_space<vmem>>, vector<1x128xf32>
    tpu.vector_store %arg13[%406, %c0_211], %405 {strides = array<i32>} : memref<32x128xf32, #tpu.memory_space<vmem>>, vector<1x128xf32>,
    %c3_i32_212 = arith.constant 3 : i32
    %408 = arith.index_cast %c3_i32_212 : i32 to index
    %409 = memref.load %arg1[%408] : memref<32xi32, #tpu.memory_space<smem>>
    %410 = arith.index_cast %c3_i32_212 : i32 to index
    %411 = memref.load %arg2[%410] : memref<32xi32, #tpu.memory_space<smem>>
    %412 = arith.index_cast %409 : i32 to index
    %c0_213 = arith.constant 0 : index
    %413 = vector.load %arg14[%412, %c0_213] : memref<16x128xf32, #tpu.memory_space<vmem>>, vector<1x128xf32>
    %414 = arith.index_cast %411 : i32 to index
    %c0_214 = arith.constant 0 : index
    %415 = vector.load %arg12[%414, %c0_214] : memref<32x128xf32, #tpu.memory_space<vmem>>, vector<1x128xf32>
    %416 = arith.subf %413, %415 : vector<1x128xf32>
    %417 = arith.index_cast %c3_i32_212 : i32 to index
    %c0_215 = arith.constant 0 : index
    %418 = vector.load %arg13[%417, %c0_215] : memref<32x128xf32, #tpu.memory_space<vmem>>, vector<1x128xf32>
    tpu.vector_store %arg13[%417, %c0_215], %416 {strides = array<i32>} : memref<32x128xf32, #tpu.memory_space<vmem>>, vector<1x128xf32>,
    %c4_i32_216 = arith.constant 4 : i32
    %419 = arith.index_cast %c4_i32_216 : i32 to index
    %420 = memref.load %arg1[%419] : memref<32xi32, #tpu.memory_space<smem>>
    %421 = arith.index_cast %c4_i32_216 : i32 to index
    %422 = memref.load %arg2[%421] : memref<32xi32, #tpu.memory_space<smem>>
    %423 = arith.index_cast %420 : i32 to index
    %c0_217 = arith.constant 0 : index
    %424 = vector.load %arg14[%423, %c0_217] : memref<16x128xf32, #tpu.memory_space<vmem>>, vector<1x128xf32>
    %425 = arith.index_cast %422 : i32 to index
    %c0_218 = arith.constant 0 : index
    %426 = vector.load %arg12[%425, %c0_218] : memref<32x128xf32, #tpu.memory_space<vmem>>, vector<1x128xf32>
    %427 = arith.subf %424, %426 : vector<1x128xf32>
    %428 = arith.index_cast %c4_i32_216 : i32 to index
    %c0_219 = arith.constant 0 : index
    %429 = vector.load %arg13[%428, %c0_219] : memref<32x128xf32, #tpu.memory_space<vmem>>, vector<1x128xf32>
    tpu.vector_store %arg13[%428, %c0_219], %427 {strides = array<i32>} : memref<32x128xf32, #tpu.memory_space<vmem>>, vector<1x128xf32>,
    %c5_i32_220 = arith.constant 5 : i32
    %430 = arith.index_cast %c5_i32_220 : i32 to index
    %431 = memref.load %arg1[%430] : memref<32xi32, #tpu.memory_space<smem>>
    %432 = arith.index_cast %c5_i32_220 : i32 to index
    %433 = memref.load %arg2[%432] : memref<32xi32, #tpu.memory_space<smem>>
    %434 = arith.index_cast %431 : i32 to index
    %c0_221 = arith.constant 0 : index
    %435 = vector.load %arg14[%434, %c0_221] : memref<16x128xf32, #tpu.memory_space<vmem>>, vector<1x128xf32>
    %436 = arith.index_cast %433 : i32 to index
    %c0_222 = arith.constant 0 : index
    %437 = vector.load %arg12[%436, %c0_222] : memref<32x128xf32, #tpu.memory_space<vmem>>, vector<1x128xf32>
    %438 = arith.subf %435, %437 : vector<1x128xf32>
    %439 = arith.index_cast %c5_i32_220 : i32 to index
    %c0_223 = arith.constant 0 : index
    %440 = vector.load %arg13[%439, %c0_223] : memref<32x128xf32, #tpu.memory_space<vmem>>, vector<1x128xf32>
    tpu.vector_store %arg13[%439, %c0_223], %438 {strides = array<i32>} : memref<32x128xf32, #tpu.memory_space<vmem>>, vector<1x128xf32>,
    %c6_i32_224 = arith.constant 6 : i32
    %441 = arith.index_cast %c6_i32_224 : i32 to index
    %442 = memref.load %arg1[%441] : memref<32xi32, #tpu.memory_space<smem>>
    %443 = arith.index_cast %c6_i32_224 : i32 to index
    %444 = memref.load %arg2[%443] : memref<32xi32, #tpu.memory_space<smem>>
    %445 = arith.index_cast %442 : i32 to index
    %c0_225 = arith.constant 0 : index
    %446 = vector.load %arg14[%445, %c0_225] : memref<16x128xf32, #tpu.memory_space<vmem>>, vector<1x128xf32>
    %447 = arith.index_cast %444 : i32 to index
    %c0_226 = arith.constant 0 : index
    %448 = vector.load %arg12[%447, %c0_226] : memref<32x128xf32, #tpu.memory_space<vmem>>, vector<1x128xf32>
    %449 = arith.subf %446, %448 : vector<1x128xf32>
    %450 = arith.index_cast %c6_i32_224 : i32 to index
    %c0_227 = arith.constant 0 : index
    %451 = vector.load %arg13[%450, %c0_227] : memref<32x128xf32, #tpu.memory_space<vmem>>, vector<1x128xf32>
    tpu.vector_store %arg13[%450, %c0_227], %449 {strides = array<i32>} : memref<32x128xf32, #tpu.memory_space<vmem>>, vector<1x128xf32>,
    %c7_i32_228 = arith.constant 7 : i32
    %452 = arith.index_cast %c7_i32_228 : i32 to index
    %453 = memref.load %arg1[%452] : memref<32xi32, #tpu.memory_space<smem>>
    %454 = arith.index_cast %c7_i32_228 : i32 to index
    %455 = memref.load %arg2[%454] : memref<32xi32, #tpu.memory_space<smem>>
    %456 = arith.index_cast %453 : i32 to index
    %c0_229 = arith.constant 0 : index
    %457 = vector.load %arg14[%456, %c0_229] : memref<16x128xf32, #tpu.memory_space<vmem>>, vector<1x128xf32>
    %458 = arith.index_cast %455 : i32 to index
    %c0_230 = arith.constant 0 : index
    %459 = vector.load %arg12[%458, %c0_230] : memref<32x128xf32, #tpu.memory_space<vmem>>, vector<1x128xf32>
    %460 = arith.subf %457, %459 : vector<1x128xf32>
    %461 = arith.index_cast %c7_i32_228 : i32 to index
    %c0_231 = arith.constant 0 : index
    %462 = vector.load %arg13[%461, %c0_231] : memref<32x128xf32, #tpu.memory_space<vmem>>, vector<1x128xf32>
    tpu.vector_store %arg13[%461, %c0_231], %460 {strides = array<i32>} : memref<32x128xf32, #tpu.memory_space<vmem>>, vector<1x128xf32>,
    %c8_i32_232 = arith.constant 8 : i32
    %463 = arith.index_cast %c8_i32_232 : i32 to index
    %464 = memref.load %arg1[%463] : memref<32xi32, #tpu.memory_space<smem>>
    %465 = arith.index_cast %c8_i32_232 : i32 to index
    %466 = memref.load %arg2[%465] : memref<32xi32, #tpu.memory_space<smem>>
    %467 = arith.index_cast %464 : i32 to index
    %c0_233 = arith.constant 0 : index
    %468 = vector.load %arg14[%467, %c0_233] : memref<16x128xf32, #tpu.memory_space<vmem>>, vector<1x128xf32>
    %469 = arith.index_cast %466 : i32 to index
    %c0_234 = arith.constant 0 : index
    %470 = vector.load %arg12[%469, %c0_234] : memref<32x128xf32, #tpu.memory_space<vmem>>, vector<1x128xf32>
    %471 = arith.subf %468, %470 : vector<1x128xf32>
    %472 = arith.index_cast %c8_i32_232 : i32 to index
    %c0_235 = arith.constant 0 : index
    %473 = vector.load %arg13[%472, %c0_235] : memref<32x128xf32, #tpu.memory_space<vmem>>, vector<1x128xf32>
    tpu.vector_store %arg13[%472, %c0_235], %471 {strides = array<i32>} : memref<32x128xf32, #tpu.memory_space<vmem>>, vector<1x128xf32>,
    %c9_i32_236 = arith.constant 9 : i32
    %474 = arith.index_cast %c9_i32_236 : i32 to index
    %475 = memref.load %arg1[%474] : memref<32xi32, #tpu.memory_space<smem>>
    %476 = arith.index_cast %c9_i32_236 : i32 to index
    %477 = memref.load %arg2[%476] : memref<32xi32, #tpu.memory_space<smem>>
    %478 = arith.index_cast %475 : i32 to index
    %c0_237 = arith.constant 0 : index
    %479 = vector.load %arg14[%478, %c0_237] : memref<16x128xf32, #tpu.memory_space<vmem>>, vector<1x128xf32>
    %480 = arith.index_cast %477 : i32 to index
    %c0_238 = arith.constant 0 : index
    %481 = vector.load %arg12[%480, %c0_238] : memref<32x128xf32, #tpu.memory_space<vmem>>, vector<1x128xf32>
    %482 = arith.subf %479, %481 : vector<1x128xf32>
    %483 = arith.index_cast %c9_i32_236 : i32 to index
    %c0_239 = arith.constant 0 : index
    %484 = vector.load %arg13[%483, %c0_239] : memref<32x128xf32, #tpu.memory_space<vmem>>, vector<1x128xf32>
    tpu.vector_store %arg13[%483, %c0_239], %482 {strides = array<i32>} : memref<32x128xf32, #tpu.memory_space<vmem>>, vector<1x128xf32>,
    %c10_i32_240 = arith.constant 10 : i32
    %485 = arith.index_cast %c10_i32_240 : i32 to index
    %486 = memref.load %arg1[%485] : memref<32xi32, #tpu.memory_space<smem>>
    %487 = arith.index_cast %c10_i32_240 : i32 to index
    %488 = memref.load %arg2[%487] : memref<32xi32, #tpu.memory_space<smem>>
    %489 = arith.index_cast %486 : i32 to index
    %c0_241 = arith.constant 0 : index
    %490 = vector.load %arg14[%489, %c0_241] : memref<16x128xf32, #tpu.memory_space<vmem>>, vector<1x128xf32>
    %491 = arith.index_cast %488 : i32 to index
    %c0_242 = arith.constant 0 : index
    %492 = vector.load %arg12[%491, %c0_242] : memref<32x128xf32, #tpu.memory_space<vmem>>, vector<1x128xf32>
    %493 = arith.subf %490, %492 : vector<1x128xf32>
    %494 = arith.index_cast %c10_i32_240 : i32 to index
    %c0_243 = arith.constant 0 : index
    %495 = vector.load %arg13[%494, %c0_243] : memref<32x128xf32, #tpu.memory_space<vmem>>, vector<1x128xf32>
    tpu.vector_store %arg13[%494, %c0_243], %493 {strides = array<i32>} : memref<32x128xf32, #tpu.memory_space<vmem>>, vector<1x128xf32>,
    %c11_i32_244 = arith.constant 11 : i32
    %496 = arith.index_cast %c11_i32_244 : i32 to index
    %497 = memref.load %arg1[%496] : memref<32xi32, #tpu.memory_space<smem>>
    %498 = arith.index_cast %c11_i32_244 : i32 to index
    %499 = memref.load %arg2[%498] : memref<32xi32, #tpu.memory_space<smem>>
    %500 = arith.index_cast %497 : i32 to index
    %c0_245 = arith.constant 0 : index
    %501 = vector.load %arg14[%500, %c0_245] : memref<16x128xf32, #tpu.memory_space<vmem>>, vector<1x128xf32>
    %502 = arith.index_cast %499 : i32 to index
    %c0_246 = arith.constant 0 : index
    %503 = vector.load %arg12[%502, %c0_246] : memref<32x128xf32, #tpu.memory_space<vmem>>, vector<1x128xf32>
    %504 = arith.subf %501, %503 : vector<1x128xf32>
    %505 = arith.index_cast %c11_i32_244 : i32 to index
    %c0_247 = arith.constant 0 : index
    %506 = vector.load %arg13[%505, %c0_247] : memref<32x128xf32, #tpu.memory_space<vmem>>, vector<1x128xf32>
    tpu.vector_store %arg13[%505, %c0_247], %504 {strides = array<i32>} : memref<32x128xf32, #tpu.memory_space<vmem>>, vector<1x128xf32>,
    %c12_i32_248 = arith.constant 12 : i32
    %507 = arith.index_cast %c12_i32_248 : i32 to index
    %508 = memref.load %arg1[%507] : memref<32xi32, #tpu.memory_space<smem>>
    %509 = arith.index_cast %c12_i32_248 : i32 to index
    %510 = memref.load %arg2[%509] : memref<32xi32, #tpu.memory_space<smem>>
    %511 = arith.index_cast %508 : i32 to index
    %c0_249 = arith.constant 0 : index
    %512 = vector.load %arg14[%511, %c0_249] : memref<16x128xf32, #tpu.memory_space<vmem>>, vector<1x128xf32>
    %513 = arith.index_cast %510 : i32 to index
    %c0_250 = arith.constant 0 : index
    %514 = vector.load %arg12[%513, %c0_250] : memref<32x128xf32, #tpu.memory_space<vmem>>, vector<1x128xf32>
    %515 = arith.subf %512, %514 : vector<1x128xf32>
    %516 = arith.index_cast %c12_i32_248 : i32 to index
    %c0_251 = arith.constant 0 : index
    %517 = vector.load %arg13[%516, %c0_251] : memref<32x128xf32, #tpu.memory_space<vmem>>, vector<1x128xf32>
    tpu.vector_store %arg13[%516, %c0_251], %515 {strides = array<i32>} : memref<32x128xf32, #tpu.memory_space<vmem>>, vector<1x128xf32>,
    %c13_i32_252 = arith.constant 13 : i32
    %518 = arith.index_cast %c13_i32_252 : i32 to index
    %519 = memref.load %arg1[%518] : memref<32xi32, #tpu.memory_space<smem>>
    %520 = arith.index_cast %c13_i32_252 : i32 to index
    %521 = memref.load %arg2[%520] : memref<32xi32, #tpu.memory_space<smem>>
    %522 = arith.index_cast %519 : i32 to index
    %c0_253 = arith.constant 0 : index
    %523 = vector.load %arg14[%522, %c0_253] : memref<16x128xf32, #tpu.memory_space<vmem>>, vector<1x128xf32>
    %524 = arith.index_cast %521 : i32 to index
    %c0_254 = arith.constant 0 : index
    %525 = vector.load %arg12[%524, %c0_254] : memref<32x128xf32, #tpu.memory_space<vmem>>, vector<1x128xf32>
    %526 = arith.subf %523, %525 : vector<1x128xf32>
    %527 = arith.index_cast %c13_i32_252 : i32 to index
    %c0_255 = arith.constant 0 : index
    %528 = vector.load %arg13[%527, %c0_255] : memref<32x128xf32, #tpu.memory_space<vmem>>, vector<1x128xf32>
    tpu.vector_store %arg13[%527, %c0_255], %526 {strides = array<i32>} : memref<32x128xf32, #tpu.memory_space<vmem>>, vector<1x128xf32>,
    %c14_i32_256 = arith.constant 14 : i32
    %529 = arith.index_cast %c14_i32_256 : i32 to index
    %530 = memref.load %arg1[%529] : memref<32xi32, #tpu.memory_space<smem>>
    %531 = arith.index_cast %c14_i32_256 : i32 to index
    %532 = memref.load %arg2[%531] : memref<32xi32, #tpu.memory_space<smem>>
    %533 = arith.index_cast %530 : i32 to index
    %c0_257 = arith.constant 0 : index
    %534 = vector.load %arg14[%533, %c0_257] : memref<16x128xf32, #tpu.memory_space<vmem>>, vector<1x128xf32>
    %535 = arith.index_cast %532 : i32 to index
    %c0_258 = arith.constant 0 : index
    %536 = vector.load %arg12[%535, %c0_258] : memref<32x128xf32, #tpu.memory_space<vmem>>, vector<1x128xf32>
    %537 = arith.subf %534, %536 : vector<1x128xf32>
    %538 = arith.index_cast %c14_i32_256 : i32 to index
    %c0_259 = arith.constant 0 : index
    %539 = vector.load %arg13[%538, %c0_259] : memref<32x128xf32, #tpu.memory_space<vmem>>, vector<1x128xf32>
    tpu.vector_store %arg13[%538, %c0_259], %537 {strides = array<i32>} : memref<32x128xf32, #tpu.memory_space<vmem>>, vector<1x128xf32>,
    %c15_i32_260 = arith.constant 15 : i32
    %540 = arith.index_cast %c15_i32_260 : i32 to index
    %541 = memref.load %arg1[%540] : memref<32xi32, #tpu.memory_space<smem>>
    %542 = arith.index_cast %c15_i32_260 : i32 to index
    %543 = memref.load %arg2[%542] : memref<32xi32, #tpu.memory_space<smem>>
    %544 = arith.index_cast %541 : i32 to index
    %c0_261 = arith.constant 0 : index
    %545 = vector.load %arg14[%544, %c0_261] : memref<16x128xf32, #tpu.memory_space<vmem>>, vector<1x128xf32>
    %546 = arith.index_cast %543 : i32 to index
    %c0_262 = arith.constant 0 : index
    %547 = vector.load %arg12[%546, %c0_262] : memref<32x128xf32, #tpu.memory_space<vmem>>, vector<1x128xf32>
    %548 = arith.subf %545, %547 : vector<1x128xf32>
    %549 = arith.index_cast %c15_i32_260 : i32 to index
    %c0_263 = arith.constant 0 : index
    %550 = vector.load %arg13[%549, %c0_263] : memref<32x128xf32, #tpu.memory_space<vmem>>, vector<1x128xf32>
    tpu.vector_store %arg13[%549, %c0_263], %548 {strides = array<i32>} : memref<32x128xf32, #tpu.memory_space<vmem>>, vector<1x128xf32>,
    %c16_i32_264 = arith.constant 16 : i32
    %551 = arith.index_cast %c16_i32_264 : i32 to index
    %552 = memref.load %arg1[%551] : memref<32xi32, #tpu.memory_space<smem>>
    %553 = arith.index_cast %c16_i32_264 : i32 to index
    %554 = memref.load %arg2[%553] : memref<32xi32, #tpu.memory_space<smem>>
    %555 = arith.index_cast %552 : i32 to index
    %c0_265 = arith.constant 0 : index
    %556 = vector.load %arg14[%555, %c0_265] : memref<16x128xf32, #tpu.memory_space<vmem>>, vector<1x128xf32>
    %557 = arith.index_cast %554 : i32 to index
    %c0_266 = arith.constant 0 : index
    %558 = vector.load %arg12[%557, %c0_266] : memref<32x128xf32, #tpu.memory_space<vmem>>, vector<1x128xf32>
    %559 = arith.subf %556, %558 : vector<1x128xf32>
    %560 = arith.index_cast %c16_i32_264 : i32 to index
    %c0_267 = arith.constant 0 : index
    %561 = vector.load %arg13[%560, %c0_267] : memref<32x128xf32, #tpu.memory_space<vmem>>, vector<1x128xf32>
    tpu.vector_store %arg13[%560, %c0_267], %559 {strides = array<i32>} : memref<32x128xf32, #tpu.memory_space<vmem>>, vector<1x128xf32>,
    %c17_i32 = arith.constant 17 : i32
    %562 = arith.index_cast %c17_i32 : i32 to index
    %563 = memref.load %arg1[%562] : memref<32xi32, #tpu.memory_space<smem>>
    %564 = arith.index_cast %c17_i32 : i32 to index
    %565 = memref.load %arg2[%564] : memref<32xi32, #tpu.memory_space<smem>>
    %566 = arith.index_cast %563 : i32 to index
    %c0_268 = arith.constant 0 : index
    %567 = vector.load %arg14[%566, %c0_268] : memref<16x128xf32, #tpu.memory_space<vmem>>, vector<1x128xf32>
    %568 = arith.index_cast %565 : i32 to index
    %c0_269 = arith.constant 0 : index
    %569 = vector.load %arg12[%568, %c0_269] : memref<32x128xf32, #tpu.memory_space<vmem>>, vector<1x128xf32>
    %570 = arith.subf %567, %569 : vector<1x128xf32>
    %571 = arith.index_cast %c17_i32 : i32 to index
    %c0_270 = arith.constant 0 : index
    %572 = vector.load %arg13[%571, %c0_270] : memref<32x128xf32, #tpu.memory_space<vmem>>, vector<1x128xf32>
    tpu.vector_store %arg13[%571, %c0_270], %570 {strides = array<i32>} : memref<32x128xf32, #tpu.memory_space<vmem>>, vector<1x128xf32>,
    %c18_i32 = arith.constant 18 : i32
    %573 = arith.index_cast %c18_i32 : i32 to index
    %574 = memref.load %arg1[%573] : memref<32xi32, #tpu.memory_space<smem>>
    %575 = arith.index_cast %c18_i32 : i32 to index
    %576 = memref.load %arg2[%575] : memref<32xi32, #tpu.memory_space<smem>>
    %577 = arith.index_cast %574 : i32 to index
    %c0_271 = arith.constant 0 : index
    %578 = vector.load %arg14[%577, %c0_271] : memref<16x128xf32, #tpu.memory_space<vmem>>, vector<1x128xf32>
    %579 = arith.index_cast %576 : i32 to index
    %c0_272 = arith.constant 0 : index
    %580 = vector.load %arg12[%579, %c0_272] : memref<32x128xf32, #tpu.memory_space<vmem>>, vector<1x128xf32>
    %581 = arith.subf %578, %580 : vector<1x128xf32>
    %582 = arith.index_cast %c18_i32 : i32 to index
    %c0_273 = arith.constant 0 : index
    %583 = vector.load %arg13[%582, %c0_273] : memref<32x128xf32, #tpu.memory_space<vmem>>, vector<1x128xf32>
    tpu.vector_store %arg13[%582, %c0_273], %581 {strides = array<i32>} : memref<32x128xf32, #tpu.memory_space<vmem>>, vector<1x128xf32>,
    %c19_i32 = arith.constant 19 : i32
    %584 = arith.index_cast %c19_i32 : i32 to index
    %585 = memref.load %arg1[%584] : memref<32xi32, #tpu.memory_space<smem>>
    %586 = arith.index_cast %c19_i32 : i32 to index
    %587 = memref.load %arg2[%586] : memref<32xi32, #tpu.memory_space<smem>>
    %588 = arith.index_cast %585 : i32 to index
    %c0_274 = arith.constant 0 : index
    %589 = vector.load %arg14[%588, %c0_274] : memref<16x128xf32, #tpu.memory_space<vmem>>, vector<1x128xf32>
    %590 = arith.index_cast %587 : i32 to index
    %c0_275 = arith.constant 0 : index
    %591 = vector.load %arg12[%590, %c0_275] : memref<32x128xf32, #tpu.memory_space<vmem>>, vector<1x128xf32>
    %592 = arith.subf %589, %591 : vector<1x128xf32>
    %593 = arith.index_cast %c19_i32 : i32 to index
    %c0_276 = arith.constant 0 : index
    %594 = vector.load %arg13[%593, %c0_276] : memref<32x128xf32, #tpu.memory_space<vmem>>, vector<1x128xf32>
    tpu.vector_store %arg13[%593, %c0_276], %592 {strides = array<i32>} : memref<32x128xf32, #tpu.memory_space<vmem>>, vector<1x128xf32>,
    %c20_i32 = arith.constant 20 : i32
    %595 = arith.index_cast %c20_i32 : i32 to index
    %596 = memref.load %arg1[%595] : memref<32xi32, #tpu.memory_space<smem>>
    %597 = arith.index_cast %c20_i32 : i32 to index
    %598 = memref.load %arg2[%597] : memref<32xi32, #tpu.memory_space<smem>>
    %599 = arith.index_cast %596 : i32 to index
    %c0_277 = arith.constant 0 : index
    %600 = vector.load %arg14[%599, %c0_277] : memref<16x128xf32, #tpu.memory_space<vmem>>, vector<1x128xf32>
    %601 = arith.index_cast %598 : i32 to index
    %c0_278 = arith.constant 0 : index
    %602 = vector.load %arg12[%601, %c0_278] : memref<32x128xf32, #tpu.memory_space<vmem>>, vector<1x128xf32>
    %603 = arith.subf %600, %602 : vector<1x128xf32>
    %604 = arith.index_cast %c20_i32 : i32 to index
    %c0_279 = arith.constant 0 : index
    %605 = vector.load %arg13[%604, %c0_279] : memref<32x128xf32, #tpu.memory_space<vmem>>, vector<1x128xf32>
    tpu.vector_store %arg13[%604, %c0_279], %603 {strides = array<i32>} : memref<32x128xf32, #tpu.memory_space<vmem>>, vector<1x128xf32>,
    %c21_i32 = arith.constant 21 : i32
    %606 = arith.index_cast %c21_i32 : i32 to index
    %607 = memref.load %arg1[%606] : memref<32xi32, #tpu.memory_space<smem>>
    %608 = arith.index_cast %c21_i32 : i32 to index
    %609 = memref.load %arg2[%608] : memref<32xi32, #tpu.memory_space<smem>>
    %610 = arith.index_cast %607 : i32 to index
    %c0_280 = arith.constant 0 : index
    %611 = vector.load %arg14[%610, %c0_280] : memref<16x128xf32, #tpu.memory_space<vmem>>, vector<1x128xf32>
    %612 = arith.index_cast %609 : i32 to index
    %c0_281 = arith.constant 0 : index
    %613 = vector.load %arg12[%612, %c0_281] : memref<32x128xf32, #tpu.memory_space<vmem>>, vector<1x128xf32>
    %614 = arith.subf %611, %613 : vector<1x128xf32>
    %615 = arith.index_cast %c21_i32 : i32 to index
    %c0_282 = arith.constant 0 : index
    %616 = vector.load %arg13[%615, %c0_282] : memref<32x128xf32, #tpu.memory_space<vmem>>, vector<1x128xf32>
    tpu.vector_store %arg13[%615, %c0_282], %614 {strides = array<i32>} : memref<32x128xf32, #tpu.memory_space<vmem>>, vector<1x128xf32>,
    %c22_i32 = arith.constant 22 : i32
    %617 = arith.index_cast %c22_i32 : i32 to index
    %618 = memref.load %arg1[%617] : memref<32xi32, #tpu.memory_space<smem>>
    %619 = arith.index_cast %c22_i32 : i32 to index
    %620 = memref.load %arg2[%619] : memref<32xi32, #tpu.memory_space<smem>>
    %621 = arith.index_cast %618 : i32 to index
    %c0_283 = arith.constant 0 : index
    %622 = vector.load %arg14[%621, %c0_283] : memref<16x128xf32, #tpu.memory_space<vmem>>, vector<1x128xf32>
    %623 = arith.index_cast %620 : i32 to index
    %c0_284 = arith.constant 0 : index
    %624 = vector.load %arg12[%623, %c0_284] : memref<32x128xf32, #tpu.memory_space<vmem>>, vector<1x128xf32>
    %625 = arith.subf %622, %624 : vector<1x128xf32>
    %626 = arith.index_cast %c22_i32 : i32 to index
    %c0_285 = arith.constant 0 : index
    %627 = vector.load %arg13[%626, %c0_285] : memref<32x128xf32, #tpu.memory_space<vmem>>, vector<1x128xf32>
    tpu.vector_store %arg13[%626, %c0_285], %625 {strides = array<i32>} : memref<32x128xf32, #tpu.memory_space<vmem>>, vector<1x128xf32>,
    %c23_i32 = arith.constant 23 : i32
    %628 = arith.index_cast %c23_i32 : i32 to index
    %629 = memref.load %arg1[%628] : memref<32xi32, #tpu.memory_space<smem>>
    %630 = arith.index_cast %c23_i32 : i32 to index
    %631 = memref.load %arg2[%630] : memref<32xi32, #tpu.memory_space<smem>>
    %632 = arith.index_cast %629 : i32 to index
    %c0_286 = arith.constant 0 : index
    %633 = vector.load %arg14[%632, %c0_286] : memref<16x128xf32, #tpu.memory_space<vmem>>, vector<1x128xf32>
    %634 = arith.index_cast %631 : i32 to index
    %c0_287 = arith.constant 0 : index
    %635 = vector.load %arg12[%634, %c0_287] : memref<32x128xf32, #tpu.memory_space<vmem>>, vector<1x128xf32>
    %636 = arith.subf %633, %635 : vector<1x128xf32>
    %637 = arith.index_cast %c23_i32 : i32 to index
    %c0_288 = arith.constant 0 : index
    %638 = vector.load %arg13[%637, %c0_288] : memref<32x128xf32, #tpu.memory_space<vmem>>, vector<1x128xf32>
    tpu.vector_store %arg13[%637, %c0_288], %636 {strides = array<i32>} : memref<32x128xf32, #tpu.memory_space<vmem>>, vector<1x128xf32>,
    %c24_i32 = arith.constant 24 : i32
    %639 = arith.index_cast %c24_i32 : i32 to index
    %640 = memref.load %arg1[%639] : memref<32xi32, #tpu.memory_space<smem>>
    %641 = arith.index_cast %c24_i32 : i32 to index
    %642 = memref.load %arg2[%641] : memref<32xi32, #tpu.memory_space<smem>>
    %643 = arith.index_cast %640 : i32 to index
    %c0_289 = arith.constant 0 : index
    %644 = vector.load %arg14[%643, %c0_289] : memref<16x128xf32, #tpu.memory_space<vmem>>, vector<1x128xf32>
    %645 = arith.index_cast %642 : i32 to index
    %c0_290 = arith.constant 0 : index
    %646 = vector.load %arg12[%645, %c0_290] : memref<32x128xf32, #tpu.memory_space<vmem>>, vector<1x128xf32>
    %647 = arith.subf %644, %646 : vector<1x128xf32>
    %648 = arith.index_cast %c24_i32 : i32 to index
    %c0_291 = arith.constant 0 : index
    %649 = vector.load %arg13[%648, %c0_291] : memref<32x128xf32, #tpu.memory_space<vmem>>, vector<1x128xf32>
    tpu.vector_store %arg13[%648, %c0_291], %647 {strides = array<i32>} : memref<32x128xf32, #tpu.memory_space<vmem>>, vector<1x128xf32>,
    %c25_i32 = arith.constant 25 : i32
    %650 = arith.index_cast %c25_i32 : i32 to index
    %651 = memref.load %arg1[%650] : memref<32xi32, #tpu.memory_space<smem>>
    %652 = arith.index_cast %c25_i32 : i32 to index
    %653 = memref.load %arg2[%652] : memref<32xi32, #tpu.memory_space<smem>>
    %654 = arith.index_cast %651 : i32 to index
    %c0_292 = arith.constant 0 : index
    %655 = vector.load %arg14[%654, %c0_292] : memref<16x128xf32, #tpu.memory_space<vmem>>, vector<1x128xf32>
    %656 = arith.index_cast %653 : i32 to index
    %c0_293 = arith.constant 0 : index
    %657 = vector.load %arg12[%656, %c0_293] : memref<32x128xf32, #tpu.memory_space<vmem>>, vector<1x128xf32>
    %658 = arith.subf %655, %657 : vector<1x128xf32>
    %659 = arith.index_cast %c25_i32 : i32 to index
    %c0_294 = arith.constant 0 : index
    %660 = vector.load %arg13[%659, %c0_294] : memref<32x128xf32, #tpu.memory_space<vmem>>, vector<1x128xf32>
    tpu.vector_store %arg13[%659, %c0_294], %658 {strides = array<i32>} : memref<32x128xf32, #tpu.memory_space<vmem>>, vector<1x128xf32>,
    %c26_i32 = arith.constant 26 : i32
    %661 = arith.index_cast %c26_i32 : i32 to index
    %662 = memref.load %arg1[%661] : memref<32xi32, #tpu.memory_space<smem>>
    %663 = arith.index_cast %c26_i32 : i32 to index
    %664 = memref.load %arg2[%663] : memref<32xi32, #tpu.memory_space<smem>>
    %665 = arith.index_cast %662 : i32 to index
    %c0_295 = arith.constant 0 : index
    %666 = vector.load %arg14[%665, %c0_295] : memref<16x128xf32, #tpu.memory_space<vmem>>, vector<1x128xf32>
    %667 = arith.index_cast %664 : i32 to index
    %c0_296 = arith.constant 0 : index
    %668 = vector.load %arg12[%667, %c0_296] : memref<32x128xf32, #tpu.memory_space<vmem>>, vector<1x128xf32>
    %669 = arith.subf %666, %668 : vector<1x128xf32>
    %670 = arith.index_cast %c26_i32 : i32 to index
    %c0_297 = arith.constant 0 : index
    %671 = vector.load %arg13[%670, %c0_297] : memref<32x128xf32, #tpu.memory_space<vmem>>, vector<1x128xf32>
    tpu.vector_store %arg13[%670, %c0_297], %669 {strides = array<i32>} : memref<32x128xf32, #tpu.memory_space<vmem>>, vector<1x128xf32>,
    %c27_i32 = arith.constant 27 : i32
    %672 = arith.index_cast %c27_i32 : i32 to index
    %673 = memref.load %arg1[%672] : memref<32xi32, #tpu.memory_space<smem>>
    %674 = arith.index_cast %c27_i32 : i32 to index
    %675 = memref.load %arg2[%674] : memref<32xi32, #tpu.memory_space<smem>>
    %676 = arith.index_cast %673 : i32 to index
    %c0_298 = arith.constant 0 : index
    %677 = vector.load %arg14[%676, %c0_298] : memref<16x128xf32, #tpu.memory_space<vmem>>, vector<1x128xf32>
    %678 = arith.index_cast %675 : i32 to index
    %c0_299 = arith.constant 0 : index
    %679 = vector.load %arg12[%678, %c0_299] : memref<32x128xf32, #tpu.memory_space<vmem>>, vector<1x128xf32>
    %680 = arith.subf %677, %679 : vector<1x128xf32>
    %681 = arith.index_cast %c27_i32 : i32 to index
    %c0_300 = arith.constant 0 : index
    %682 = vector.load %arg13[%681, %c0_300] : memref<32x128xf32, #tpu.memory_space<vmem>>, vector<1x128xf32>
    tpu.vector_store %arg13[%681, %c0_300], %680 {strides = array<i32>} : memref<32x128xf32, #tpu.memory_space<vmem>>, vector<1x128xf32>,
    %c28_i32 = arith.constant 28 : i32
    %683 = arith.index_cast %c28_i32 : i32 to index
    %684 = memref.load %arg1[%683] : memref<32xi32, #tpu.memory_space<smem>>
    %685 = arith.index_cast %c28_i32 : i32 to index
    %686 = memref.load %arg2[%685] : memref<32xi32, #tpu.memory_space<smem>>
    %687 = arith.index_cast %684 : i32 to index
    %c0_301 = arith.constant 0 : index
    %688 = vector.load %arg14[%687, %c0_301] : memref<16x128xf32, #tpu.memory_space<vmem>>, vector<1x128xf32>
    %689 = arith.index_cast %686 : i32 to index
    %c0_302 = arith.constant 0 : index
    %690 = vector.load %arg12[%689, %c0_302] : memref<32x128xf32, #tpu.memory_space<vmem>>, vector<1x128xf32>
    %691 = arith.subf %688, %690 : vector<1x128xf32>
    %692 = arith.index_cast %c28_i32 : i32 to index
    %c0_303 = arith.constant 0 : index
    %693 = vector.load %arg13[%692, %c0_303] : memref<32x128xf32, #tpu.memory_space<vmem>>, vector<1x128xf32>
    tpu.vector_store %arg13[%692, %c0_303], %691 {strides = array<i32>} : memref<32x128xf32, #tpu.memory_space<vmem>>, vector<1x128xf32>,
    %c29_i32 = arith.constant 29 : i32
    %694 = arith.index_cast %c29_i32 : i32 to index
    %695 = memref.load %arg1[%694] : memref<32xi32, #tpu.memory_space<smem>>
    %696 = arith.index_cast %c29_i32 : i32 to index
    %697 = memref.load %arg2[%696] : memref<32xi32, #tpu.memory_space<smem>>
    %698 = arith.index_cast %695 : i32 to index
    %c0_304 = arith.constant 0 : index
    %699 = vector.load %arg14[%698, %c0_304] : memref<16x128xf32, #tpu.memory_space<vmem>>, vector<1x128xf32>
    %700 = arith.index_cast %697 : i32 to index
    %c0_305 = arith.constant 0 : index
    %701 = vector.load %arg12[%700, %c0_305] : memref<32x128xf32, #tpu.memory_space<vmem>>, vector<1x128xf32>
    %702 = arith.subf %699, %701 : vector<1x128xf32>
    %703 = arith.index_cast %c29_i32 : i32 to index
    %c0_306 = arith.constant 0 : index
    %704 = vector.load %arg13[%703, %c0_306] : memref<32x128xf32, #tpu.memory_space<vmem>>, vector<1x128xf32>
    tpu.vector_store %arg13[%703, %c0_306], %702 {strides = array<i32>} : memref<32x128xf32, #tpu.memory_space<vmem>>, vector<1x128xf32>,
    %c30_i32 = arith.constant 30 : i32
    %705 = arith.index_cast %c30_i32 : i32 to index
    %706 = memref.load %arg1[%705] : memref<32xi32, #tpu.memory_space<smem>>
    %707 = arith.index_cast %c30_i32 : i32 to index
    %708 = memref.load %arg2[%707] : memref<32xi32, #tpu.memory_space<smem>>
    %709 = arith.index_cast %706 : i32 to index
    %c0_307 = arith.constant 0 : index
    %710 = vector.load %arg14[%709, %c0_307] : memref<16x128xf32, #tpu.memory_space<vmem>>, vector<1x128xf32>
    %711 = arith.index_cast %708 : i32 to index
    %c0_308 = arith.constant 0 : index
    %712 = vector.load %arg12[%711, %c0_308] : memref<32x128xf32, #tpu.memory_space<vmem>>, vector<1x128xf32>
    %713 = arith.subf %710, %712 : vector<1x128xf32>
    %714 = arith.index_cast %c30_i32 : i32 to index
    %c0_309 = arith.constant 0 : index
    %715 = vector.load %arg13[%714, %c0_309] : memref<32x128xf32, #tpu.memory_space<vmem>>, vector<1x128xf32>
    tpu.vector_store %arg13[%714, %c0_309], %713 {strides = array<i32>} : memref<32x128xf32, #tpu.memory_space<vmem>>, vector<1x128xf32>,
    %c31_i32 = arith.constant 31 : i32
    %716 = arith.index_cast %c31_i32 : i32 to index
    %717 = memref.load %arg1[%716] : memref<32xi32, #tpu.memory_space<smem>>
    %718 = arith.index_cast %c31_i32 : i32 to index
    %719 = memref.load %arg2[%718] : memref<32xi32, #tpu.memory_space<smem>>
    %720 = arith.index_cast %717 : i32 to index
    %c0_310 = arith.constant 0 : index
    %721 = vector.load %arg14[%720, %c0_310] : memref<16x128xf32, #tpu.memory_space<vmem>>, vector<1x128xf32>
    %722 = arith.index_cast %719 : i32 to index
    %c0_311 = arith.constant 0 : index
    %723 = vector.load %arg12[%722, %c0_311] : memref<32x128xf32, #tpu.memory_space<vmem>>, vector<1x128xf32>
    %724 = arith.subf %721, %723 : vector<1x128xf32>
    %725 = arith.index_cast %c31_i32 : i32 to index
    %c0_312 = arith.constant 0 : index
    %726 = vector.load %arg13[%725, %c0_312] : memref<32x128xf32, #tpu.memory_space<vmem>>, vector<1x128xf32>
    tpu.vector_store %arg13[%725, %c0_312], %724 {strides = array<i32>} : memref<32x128xf32, #tpu.memory_space<vmem>>, vector<1x128xf32>,
    %c32_i32 = arith.constant 32 : i32
    %c0_313 = arith.constant 0 : index
    %c0_314 = arith.constant 0 : index
    %727 = vector.load %arg13[%c0_313, %c0_314] : memref<32x128xf32, #tpu.memory_space<vmem>>, vector<32x128xf32>
    %728 = arith.truncf %727 : vector<32x128xf32> to vector<32x128xbf16>
    %cst_315 = arith.constant dense<0.000000e+00> : vector<32x128xf32>
    %729 = tpu.matmul %728, %0, %cst_315 {dimension_numbers = #tpu.dot_dimension_numbers<[1], [0], [0], [1], [0, 0, 1, 1], [], []>} : vector<32x128xbf16>, vector<128x128xbf16>, vector<32x128xf32> -> vector<32x128xf32>
    %730 = arith.addf %3, %729 : vector<32x128xf32>
    %cst_316 = arith.constant 0.000000e+00 : f32
    %731 = vector.broadcast %cst_316 : f32 to vector<32x128xf32>
    %732 = arith.maximumf %730, %731 : vector<32x128xf32>
    %c0_317 = arith.constant 0 : index
    %c0_318 = arith.constant 0 : index
    %733 = vector.load %arg12[%c0_317, %c0_318] : memref<32x128xf32, #tpu.memory_space<vmem>>, vector<32x128xf32>
    tpu.vector_store %arg12[%c0_317, %c0_318], %732 {strides = array<i32>} : memref<32x128xf32, #tpu.memory_space<vmem>>, vector<32x128xf32>,
    %c0_i32_319 = arith.constant 0 : i32
    %cst_320 = arith.constant 0.000000e+00 : f32
    %734 = vector.broadcast %cst_320 : f32 to vector<1x128xf32>
    %c2_i32_321 = arith.constant 2 : i32
    %735 = arith.muli %c0_i32_319, %c2_i32_321 : i32
    %c0_i32_322 = arith.constant 0 : i32
    %736 = arith.addi %735, %c0_i32_322 : i32
    %737 = arith.index_cast %736 : i32 to index
    %738 = memref.load %arg0[%737] : memref<32xi32, #tpu.memory_space<smem>>
    %739 = arith.index_cast %738 : i32 to index
    %c0_323 = arith.constant 0 : index
    %740 = vector.load %arg12[%739, %c0_323] : memref<32x128xf32, #tpu.memory_space<vmem>>, vector<1x128xf32>
    %c0_i32_324 = arith.constant 0 : i32
    %741 = arith.cmpi sgt, %738, %c0_i32_324 : i32
    %cst_325 = arith.constant 0.000000e+00 : f32
    %742 = vector.broadcast %cst_325 : f32 to vector<1x128xf32>
    %743 = arith.select %741, %740, %742 : vector<1x128xf32>
    %744 = arith.addf %734, %743 : vector<1x128xf32>
    %c2_i32_326 = arith.constant 2 : i32
    %745 = arith.muli %c0_i32_319, %c2_i32_326 : i32
    %c1_i32_327 = arith.constant 1 : i32
    %746 = arith.addi %745, %c1_i32_327 : i32
    %747 = arith.index_cast %746 : i32 to index
    %748 = memref.load %arg0[%747] : memref<32xi32, #tpu.memory_space<smem>>
    %749 = arith.index_cast %748 : i32 to index
    %c0_328 = arith.constant 0 : index
    %750 = vector.load %arg12[%749, %c0_328] : memref<32x128xf32, #tpu.memory_space<vmem>>, vector<1x128xf32>
    %c0_i32_329 = arith.constant 0 : i32
    %751 = arith.cmpi sgt, %748, %c0_i32_329 : i32
    %cst_330 = arith.constant 0.000000e+00 : f32
    %752 = vector.broadcast %cst_330 : f32 to vector<1x128xf32>
    %753 = arith.select %751, %750, %752 : vector<1x128xf32>
    %754 = arith.addf %744, %753 : vector<1x128xf32>
    %755 = arith.index_cast %c0_i32_319 : i32 to index
    %c0_331 = arith.constant 0 : index
    %756 = vector.load %arg14[%755, %c0_331] : memref<16x128xf32, #tpu.memory_space<vmem>>, vector<1x128xf32>
    tpu.vector_store %arg14[%755, %c0_331], %754 {strides = array<i32>} : memref<16x128xf32, #tpu.memory_space<vmem>>, vector<1x128xf32>,
    %c1_i32_332 = arith.constant 1 : i32
    %cst_333 = arith.constant 0.000000e+00 : f32
    %757 = vector.broadcast %cst_333 : f32 to vector<1x128xf32>
    %c2_i32_334 = arith.constant 2 : i32
    %758 = arith.muli %c1_i32_332, %c2_i32_334 : i32
    %c0_i32_335 = arith.constant 0 : i32
    %759 = arith.addi %758, %c0_i32_335 : i32
    %760 = arith.index_cast %759 : i32 to index
    %761 = memref.load %arg0[%760] : memref<32xi32, #tpu.memory_space<smem>>
    %762 = arith.index_cast %761 : i32 to index
    %c0_336 = arith.constant 0 : index
    %763 = vector.load %arg12[%762, %c0_336] : memref<32x128xf32, #tpu.memory_space<vmem>>, vector<1x128xf32>
    %c0_i32_337 = arith.constant 0 : i32
    %764 = arith.cmpi sgt, %761, %c0_i32_337 : i32
    %cst_338 = arith.constant 0.000000e+00 : f32
    %765 = vector.broadcast %cst_338 : f32 to vector<1x128xf32>
    %766 = arith.select %764, %763, %765 : vector<1x128xf32>
    %767 = arith.addf %757, %766 : vector<1x128xf32>
    %c2_i32_339 = arith.constant 2 : i32
    %768 = arith.muli %c1_i32_332, %c2_i32_339 : i32
    %c1_i32_340 = arith.constant 1 : i32
    %769 = arith.addi %768, %c1_i32_340 : i32
    %770 = arith.index_cast %769 : i32 to index
    %771 = memref.load %arg0[%770] : memref<32xi32, #tpu.memory_space<smem>>
    %772 = arith.index_cast %771 : i32 to index
    %c0_341 = arith.constant 0 : index
    %773 = vector.load %arg12[%772, %c0_341] : memref<32x128xf32, #tpu.memory_space<vmem>>, vector<1x128xf32>
    %c0_i32_342 = arith.constant 0 : i32
    %774 = arith.cmpi sgt, %771, %c0_i32_342 : i32
    %cst_343 = arith.constant 0.000000e+00 : f32
    %775 = vector.broadcast %cst_343 : f32 to vector<1x128xf32>
    %776 = arith.select %774, %773, %775 : vector<1x128xf32>
    %777 = arith.addf %767, %776 : vector<1x128xf32>
    %778 = arith.index_cast %c1_i32_332 : i32 to index
    %c0_344 = arith.constant 0 : index
    %779 = vector.load %arg14[%778, %c0_344] : memref<16x128xf32, #tpu.memory_space<vmem>>, vector<1x128xf32>
    tpu.vector_store %arg14[%778, %c0_344], %777 {strides = array<i32>} : memref<16x128xf32, #tpu.memory_space<vmem>>, vector<1x128xf32>,
    %c2_i32_345 = arith.constant 2 : i32
    %cst_346 = arith.constant 0.000000e+00 : f32
    %780 = vector.broadcast %cst_346 : f32 to vector<1x128xf32>
    %c2_i32_347 = arith.constant 2 : i32
    %781 = arith.muli %c2_i32_345, %c2_i32_347 : i32
    %c0_i32_348 = arith.constant 0 : i32
    %782 = arith.addi %781, %c0_i32_348 : i32
    %783 = arith.index_cast %782 : i32 to index
    %784 = memref.load %arg0[%783] : memref<32xi32, #tpu.memory_space<smem>>
    %785 = arith.index_cast %784 : i32 to index
    %c0_349 = arith.constant 0 : index
    %786 = vector.load %arg12[%785, %c0_349] : memref<32x128xf32, #tpu.memory_space<vmem>>, vector<1x128xf32>
    %c0_i32_350 = arith.constant 0 : i32
    %787 = arith.cmpi sgt, %784, %c0_i32_350 : i32
    %cst_351 = arith.constant 0.000000e+00 : f32
    %788 = vector.broadcast %cst_351 : f32 to vector<1x128xf32>
    %789 = arith.select %787, %786, %788 : vector<1x128xf32>
    %790 = arith.addf %780, %789 : vector<1x128xf32>
    %c2_i32_352 = arith.constant 2 : i32
    %791 = arith.muli %c2_i32_345, %c2_i32_352 : i32
    %c1_i32_353 = arith.constant 1 : i32
    %792 = arith.addi %791, %c1_i32_353 : i32
    %793 = arith.index_cast %792 : i32 to index
    %794 = memref.load %arg0[%793] : memref<32xi32, #tpu.memory_space<smem>>
    %795 = arith.index_cast %794 : i32 to index
    %c0_354 = arith.constant 0 : index
    %796 = vector.load %arg12[%795, %c0_354] : memref<32x128xf32, #tpu.memory_space<vmem>>, vector<1x128xf32>
    %c0_i32_355 = arith.constant 0 : i32
    %797 = arith.cmpi sgt, %794, %c0_i32_355 : i32
    %cst_356 = arith.constant 0.000000e+00 : f32
    %798 = vector.broadcast %cst_356 : f32 to vector<1x128xf32>
    %799 = arith.select %797, %796, %798 : vector<1x128xf32>
    %800 = arith.addf %790, %799 : vector<1x128xf32>
    %801 = arith.index_cast %c2_i32_345 : i32 to index
    %c0_357 = arith.constant 0 : index
    %802 = vector.load %arg14[%801, %c0_357] : memref<16x128xf32, #tpu.memory_space<vmem>>, vector<1x128xf32>
    tpu.vector_store %arg14[%801, %c0_357], %800 {strides = array<i32>} : memref<16x128xf32, #tpu.memory_space<vmem>>, vector<1x128xf32>,
    %c3_i32_358 = arith.constant 3 : i32
    %cst_359 = arith.constant 0.000000e+00 : f32
    %803 = vector.broadcast %cst_359 : f32 to vector<1x128xf32>
    %c2_i32_360 = arith.constant 2 : i32
    %804 = arith.muli %c3_i32_358, %c2_i32_360 : i32
    %c0_i32_361 = arith.constant 0 : i32
    %805 = arith.addi %804, %c0_i32_361 : i32
    %806 = arith.index_cast %805 : i32 to index
    %807 = memref.load %arg0[%806] : memref<32xi32, #tpu.memory_space<smem>>
    %808 = arith.index_cast %807 : i32 to index
    %c0_362 = arith.constant 0 : index
    %809 = vector.load %arg12[%808, %c0_362] : memref<32x128xf32, #tpu.memory_space<vmem>>, vector<1x128xf32>
    %c0_i32_363 = arith.constant 0 : i32
    %810 = arith.cmpi sgt, %807, %c0_i32_363 : i32
    %cst_364 = arith.constant 0.000000e+00 : f32
    %811 = vector.broadcast %cst_364 : f32 to vector<1x128xf32>
    %812 = arith.select %810, %809, %811 : vector<1x128xf32>
    %813 = arith.addf %803, %812 : vector<1x128xf32>
    %c2_i32_365 = arith.constant 2 : i32
    %814 = arith.muli %c3_i32_358, %c2_i32_365 : i32
    %c1_i32_366 = arith.constant 1 : i32
    %815 = arith.addi %814, %c1_i32_366 : i32
    %816 = arith.index_cast %815 : i32 to index
    %817 = memref.load %arg0[%816] : memref<32xi32, #tpu.memory_space<smem>>
    %818 = arith.index_cast %817 : i32 to index
    %c0_367 = arith.constant 0 : index
    %819 = vector.load %arg12[%818, %c0_367] : memref<32x128xf32, #tpu.memory_space<vmem>>, vector<1x128xf32>
    %c0_i32_368 = arith.constant 0 : i32
    %820 = arith.cmpi sgt, %817, %c0_i32_368 : i32
    %cst_369 = arith.constant 0.000000e+00 : f32
    %821 = vector.broadcast %cst_369 : f32 to vector<1x128xf32>
    %822 = arith.select %820, %819, %821 : vector<1x128xf32>
    %823 = arith.addf %813, %822 : vector<1x128xf32>
    %824 = arith.index_cast %c3_i32_358 : i32 to index
    %c0_370 = arith.constant 0 : index
    %825 = vector.load %arg14[%824, %c0_370] : memref<16x128xf32, #tpu.memory_space<vmem>>, vector<1x128xf32>
    tpu.vector_store %arg14[%824, %c0_370], %823 {strides = array<i32>} : memref<16x128xf32, #tpu.memory_space<vmem>>, vector<1x128xf32>,
    %c4_i32_371 = arith.constant 4 : i32
    %cst_372 = arith.constant 0.000000e+00 : f32
    %826 = vector.broadcast %cst_372 : f32 to vector<1x128xf32>
    %c2_i32_373 = arith.constant 2 : i32
    %827 = arith.muli %c4_i32_371, %c2_i32_373 : i32
    %c0_i32_374 = arith.constant 0 : i32
    %828 = arith.addi %827, %c0_i32_374 : i32
    %829 = arith.index_cast %828 : i32 to index
    %830 = memref.load %arg0[%829] : memref<32xi32, #tpu.memory_space<smem>>
    %831 = arith.index_cast %830 : i32 to index
    %c0_375 = arith.constant 0 : index
    %832 = vector.load %arg12[%831, %c0_375] : memref<32x128xf32, #tpu.memory_space<vmem>>, vector<1x128xf32>
    %c0_i32_376 = arith.constant 0 : i32
    %833 = arith.cmpi sgt, %830, %c0_i32_376 : i32
    %cst_377 = arith.constant 0.000000e+00 : f32
    %834 = vector.broadcast %cst_377 : f32 to vector<1x128xf32>
    %835 = arith.select %833, %832, %834 : vector<1x128xf32>
    %836 = arith.addf %826, %835 : vector<1x128xf32>
    %c2_i32_378 = arith.constant 2 : i32
    %837 = arith.muli %c4_i32_371, %c2_i32_378 : i32
    %c1_i32_379 = arith.constant 1 : i32
    %838 = arith.addi %837, %c1_i32_379 : i32
    %839 = arith.index_cast %838 : i32 to index
    %840 = memref.load %arg0[%839] : memref<32xi32, #tpu.memory_space<smem>>
    %841 = arith.index_cast %840 : i32 to index
    %c0_380 = arith.constant 0 : index
    %842 = vector.load %arg12[%841, %c0_380] : memref<32x128xf32, #tpu.memory_space<vmem>>, vector<1x128xf32>
    %c0_i32_381 = arith.constant 0 : i32
    %843 = arith.cmpi sgt, %840, %c0_i32_381 : i32
    %cst_382 = arith.constant 0.000000e+00 : f32
    %844 = vector.broadcast %cst_382 : f32 to vector<1x128xf32>
    %845 = arith.select %843, %842, %844 : vector<1x128xf32>
    %846 = arith.addf %836, %845 : vector<1x128xf32>
    %847 = arith.index_cast %c4_i32_371 : i32 to index
    %c0_383 = arith.constant 0 : index
    %848 = vector.load %arg14[%847, %c0_383] : memref<16x128xf32, #tpu.memory_space<vmem>>, vector<1x128xf32>
    tpu.vector_store %arg14[%847, %c0_383], %846 {strides = array<i32>} : memref<16x128xf32, #tpu.memory_space<vmem>>, vector<1x128xf32>,
    %c5_i32_384 = arith.constant 5 : i32
    %cst_385 = arith.constant 0.000000e+00 : f32
    %849 = vector.broadcast %cst_385 : f32 to vector<1x128xf32>
    %c2_i32_386 = arith.constant 2 : i32
    %850 = arith.muli %c5_i32_384, %c2_i32_386 : i32
    %c0_i32_387 = arith.constant 0 : i32
    %851 = arith.addi %850, %c0_i32_387 : i32
    %852 = arith.index_cast %851 : i32 to index
    %853 = memref.load %arg0[%852] : memref<32xi32, #tpu.memory_space<smem>>
    %854 = arith.index_cast %853 : i32 to index
    %c0_388 = arith.constant 0 : index
    %855 = vector.load %arg12[%854, %c0_388] : memref<32x128xf32, #tpu.memory_space<vmem>>, vector<1x128xf32>
    %c0_i32_389 = arith.constant 0 : i32
    %856 = arith.cmpi sgt, %853, %c0_i32_389 : i32
    %cst_390 = arith.constant 0.000000e+00 : f32
    %857 = vector.broadcast %cst_390 : f32 to vector<1x128xf32>
    %858 = arith.select %856, %855, %857 : vector<1x128xf32>
    %859 = arith.addf %849, %858 : vector<1x128xf32>
    %c2_i32_391 = arith.constant 2 : i32
    %860 = arith.muli %c5_i32_384, %c2_i32_391 : i32
    %c1_i32_392 = arith.constant 1 : i32
    %861 = arith.addi %860, %c1_i32_392 : i32
    %862 = arith.index_cast %861 : i32 to index
    %863 = memref.load %arg0[%862] : memref<32xi32, #tpu.memory_space<smem>>
    %864 = arith.index_cast %863 : i32 to index
    %c0_393 = arith.constant 0 : index
    %865 = vector.load %arg12[%864, %c0_393] : memref<32x128xf32, #tpu.memory_space<vmem>>, vector<1x128xf32>
    %c0_i32_394 = arith.constant 0 : i32
    %866 = arith.cmpi sgt, %863, %c0_i32_394 : i32
    %cst_395 = arith.constant 0.000000e+00 : f32
    %867 = vector.broadcast %cst_395 : f32 to vector<1x128xf32>
    %868 = arith.select %866, %865, %867 : vector<1x128xf32>
    %869 = arith.addf %859, %868 : vector<1x128xf32>
    %870 = arith.index_cast %c5_i32_384 : i32 to index
    %c0_396 = arith.constant 0 : index
    %871 = vector.load %arg14[%870, %c0_396] : memref<16x128xf32, #tpu.memory_space<vmem>>, vector<1x128xf32>
    tpu.vector_store %arg14[%870, %c0_396], %869 {strides = array<i32>} : memref<16x128xf32, #tpu.memory_space<vmem>>, vector<1x128xf32>,
    %c6_i32_397 = arith.constant 6 : i32
    %cst_398 = arith.constant 0.000000e+00 : f32
    %872 = vector.broadcast %cst_398 : f32 to vector<1x128xf32>
    %c2_i32_399 = arith.constant 2 : i32
    %873 = arith.muli %c6_i32_397, %c2_i32_399 : i32
    %c0_i32_400 = arith.constant 0 : i32
    %874 = arith.addi %873, %c0_i32_400 : i32
    %875 = arith.index_cast %874 : i32 to index
    %876 = memref.load %arg0[%875] : memref<32xi32, #tpu.memory_space<smem>>
    %877 = arith.index_cast %876 : i32 to index
    %c0_401 = arith.constant 0 : index
    %878 = vector.load %arg12[%877, %c0_401] : memref<32x128xf32, #tpu.memory_space<vmem>>, vector<1x128xf32>
    %c0_i32_402 = arith.constant 0 : i32
    %879 = arith.cmpi sgt, %876, %c0_i32_402 : i32
    %cst_403 = arith.constant 0.000000e+00 : f32
    %880 = vector.broadcast %cst_403 : f32 to vector<1x128xf32>
    %881 = arith.select %879, %878, %880 : vector<1x128xf32>
    %882 = arith.addf %872, %881 : vector<1x128xf32>
    %c2_i32_404 = arith.constant 2 : i32
    %883 = arith.muli %c6_i32_397, %c2_i32_404 : i32
    %c1_i32_405 = arith.constant 1 : i32
    %884 = arith.addi %883, %c1_i32_405 : i32
    %885 = arith.index_cast %884 : i32 to index
    %886 = memref.load %arg0[%885] : memref<32xi32, #tpu.memory_space<smem>>
    %887 = arith.index_cast %886 : i32 to index
    %c0_406 = arith.constant 0 : index
    %888 = vector.load %arg12[%887, %c0_406] : memref<32x128xf32, #tpu.memory_space<vmem>>, vector<1x128xf32>
    %c0_i32_407 = arith.constant 0 : i32
    %889 = arith.cmpi sgt, %886, %c0_i32_407 : i32
    %cst_408 = arith.constant 0.000000e+00 : f32
    %890 = vector.broadcast %cst_408 : f32 to vector<1x128xf32>
    %891 = arith.select %889, %888, %890 : vector<1x128xf32>
    %892 = arith.addf %882, %891 : vector<1x128xf32>
    %893 = arith.index_cast %c6_i32_397 : i32 to index
    %c0_409 = arith.constant 0 : index
    %894 = vector.load %arg14[%893, %c0_409] : memref<16x128xf32, #tpu.memory_space<vmem>>, vector<1x128xf32>
    tpu.vector_store %arg14[%893, %c0_409], %892 {strides = array<i32>} : memref<16x128xf32, #tpu.memory_space<vmem>>, vector<1x128xf32>,
    %c7_i32_410 = arith.constant 7 : i32
    %cst_411 = arith.constant 0.000000e+00 : f32
    %895 = vector.broadcast %cst_411 : f32 to vector<1x128xf32>
    %c2_i32_412 = arith.constant 2 : i32
    %896 = arith.muli %c7_i32_410, %c2_i32_412 : i32
    %c0_i32_413 = arith.constant 0 : i32
    %897 = arith.addi %896, %c0_i32_413 : i32
    %898 = arith.index_cast %897 : i32 to index
    %899 = memref.load %arg0[%898] : memref<32xi32, #tpu.memory_space<smem>>
    %900 = arith.index_cast %899 : i32 to index
    %c0_414 = arith.constant 0 : index
    %901 = vector.load %arg12[%900, %c0_414] : memref<32x128xf32, #tpu.memory_space<vmem>>, vector<1x128xf32>
    %c0_i32_415 = arith.constant 0 : i32
    %902 = arith.cmpi sgt, %899, %c0_i32_415 : i32
    %cst_416 = arith.constant 0.000000e+00 : f32
    %903 = vector.broadcast %cst_416 : f32 to vector<1x128xf32>
    %904 = arith.select %902, %901, %903 : vector<1x128xf32>
    %905 = arith.addf %895, %904 : vector<1x128xf32>
    %c2_i32_417 = arith.constant 2 : i32
    %906 = arith.muli %c7_i32_410, %c2_i32_417 : i32
    %c1_i32_418 = arith.constant 1 : i32
    %907 = arith.addi %906, %c1_i32_418 : i32
    %908 = arith.index_cast %907 : i32 to index
    %909 = memref.load %arg0[%908] : memref<32xi32, #tpu.memory_space<smem>>
    %910 = arith.index_cast %909 : i32 to index
    %c0_419 = arith.constant 0 : index
    %911 = vector.load %arg12[%910, %c0_419] : memref<32x128xf32, #tpu.memory_space<vmem>>, vector<1x128xf32>
    %c0_i32_420 = arith.constant 0 : i32
    %912 = arith.cmpi sgt, %909, %c0_i32_420 : i32
    %cst_421 = arith.constant 0.000000e+00 : f32
    %913 = vector.broadcast %cst_421 : f32 to vector<1x128xf32>
    %914 = arith.select %912, %911, %913 : vector<1x128xf32>
    %915 = arith.addf %905, %914 : vector<1x128xf32>
    %916 = arith.index_cast %c7_i32_410 : i32 to index
    %c0_422 = arith.constant 0 : index
    %917 = vector.load %arg14[%916, %c0_422] : memref<16x128xf32, #tpu.memory_space<vmem>>, vector<1x128xf32>
    tpu.vector_store %arg14[%916, %c0_422], %915 {strides = array<i32>} : memref<16x128xf32, #tpu.memory_space<vmem>>, vector<1x128xf32>,
    %c8_i32_423 = arith.constant 8 : i32
    %cst_424 = arith.constant 0.000000e+00 : f32
    %918 = vector.broadcast %cst_424 : f32 to vector<1x128xf32>
    %c2_i32_425 = arith.constant 2 : i32
    %919 = arith.muli %c8_i32_423, %c2_i32_425 : i32
    %c0_i32_426 = arith.constant 0 : i32
    %920 = arith.addi %919, %c0_i32_426 : i32
    %921 = arith.index_cast %920 : i32 to index
    %922 = memref.load %arg0[%921] : memref<32xi32, #tpu.memory_space<smem>>
    %923 = arith.index_cast %922 : i32 to index
    %c0_427 = arith.constant 0 : index
    %924 = vector.load %arg12[%923, %c0_427] : memref<32x128xf32, #tpu.memory_space<vmem>>, vector<1x128xf32>
    %c0_i32_428 = arith.constant 0 : i32
    %925 = arith.cmpi sgt, %922, %c0_i32_428 : i32
    %cst_429 = arith.constant 0.000000e+00 : f32
    %926 = vector.broadcast %cst_429 : f32 to vector<1x128xf32>
    %927 = arith.select %925, %924, %926 : vector<1x128xf32>
    %928 = arith.addf %918, %927 : vector<1x128xf32>
    %c2_i32_430 = arith.constant 2 : i32
    %929 = arith.muli %c8_i32_423, %c2_i32_430 : i32
    %c1_i32_431 = arith.constant 1 : i32
    %930 = arith.addi %929, %c1_i32_431 : i32
    %931 = arith.index_cast %930 : i32 to index
    %932 = memref.load %arg0[%931] : memref<32xi32, #tpu.memory_space<smem>>
    %933 = arith.index_cast %932 : i32 to index
    %c0_432 = arith.constant 0 : index
    %934 = vector.load %arg12[%933, %c0_432] : memref<32x128xf32, #tpu.memory_space<vmem>>, vector<1x128xf32>
    %c0_i32_433 = arith.constant 0 : i32
    %935 = arith.cmpi sgt, %932, %c0_i32_433 : i32
    %cst_434 = arith.constant 0.000000e+00 : f32
    %936 = vector.broadcast %cst_434 : f32 to vector<1x128xf32>
    %937 = arith.select %935, %934, %936 : vector<1x128xf32>
    %938 = arith.addf %928, %937 : vector<1x128xf32>
    %939 = arith.index_cast %c8_i32_423 : i32 to index
    %c0_435 = arith.constant 0 : index
    %940 = vector.load %arg14[%939, %c0_435] : memref<16x128xf32, #tpu.memory_space<vmem>>, vector<1x128xf32>
    tpu.vector_store %arg14[%939, %c0_435], %938 {strides = array<i32>} : memref<16x128xf32, #tpu.memory_space<vmem>>, vector<1x128xf32>,
    %c9_i32_436 = arith.constant 9 : i32
    %cst_437 = arith.constant 0.000000e+00 : f32
    %941 = vector.broadcast %cst_437 : f32 to vector<1x128xf32>
    %c2_i32_438 = arith.constant 2 : i32
    %942 = arith.muli %c9_i32_436, %c2_i32_438 : i32
    %c0_i32_439 = arith.constant 0 : i32
    %943 = arith.addi %942, %c0_i32_439 : i32
    %944 = arith.index_cast %943 : i32 to index
    %945 = memref.load %arg0[%944] : memref<32xi32, #tpu.memory_space<smem>>
    %946 = arith.index_cast %945 : i32 to index
    %c0_440 = arith.constant 0 : index
    %947 = vector.load %arg12[%946, %c0_440] : memref<32x128xf32, #tpu.memory_space<vmem>>, vector<1x128xf32>
    %c0_i32_441 = arith.constant 0 : i32
    %948 = arith.cmpi sgt, %945, %c0_i32_441 : i32
    %cst_442 = arith.constant 0.000000e+00 : f32
    %949 = vector.broadcast %cst_442 : f32 to vector<1x128xf32>
    %950 = arith.select %948, %947, %949 : vector<1x128xf32>
    %951 = arith.addf %941, %950 : vector<1x128xf32>
    %c2_i32_443 = arith.constant 2 : i32
    %952 = arith.muli %c9_i32_436, %c2_i32_443 : i32
    %c1_i32_444 = arith.constant 1 : i32
    %953 = arith.addi %952, %c1_i32_444 : i32
    %954 = arith.index_cast %953 : i32 to index
    %955 = memref.load %arg0[%954] : memref<32xi32, #tpu.memory_space<smem>>
    %956 = arith.index_cast %955 : i32 to index
    %c0_445 = arith.constant 0 : index
    %957 = vector.load %arg12[%956, %c0_445] : memref<32x128xf32, #tpu.memory_space<vmem>>, vector<1x128xf32>
    %c0_i32_446 = arith.constant 0 : i32
    %958 = arith.cmpi sgt, %955, %c0_i32_446 : i32
    %cst_447 = arith.constant 0.000000e+00 : f32
    %959 = vector.broadcast %cst_447 : f32 to vector<1x128xf32>
    %960 = arith.select %958, %957, %959 : vector<1x128xf32>
    %961 = arith.addf %951, %960 : vector<1x128xf32>
    %962 = arith.index_cast %c9_i32_436 : i32 to index
    %c0_448 = arith.constant 0 : index
    %963 = vector.load %arg14[%962, %c0_448] : memref<16x128xf32, #tpu.memory_space<vmem>>, vector<1x128xf32>
    tpu.vector_store %arg14[%962, %c0_448], %961 {strides = array<i32>} : memref<16x128xf32, #tpu.memory_space<vmem>>, vector<1x128xf32>,
    %c10_i32_449 = arith.constant 10 : i32
    %cst_450 = arith.constant 0.000000e+00 : f32
    %964 = vector.broadcast %cst_450 : f32 to vector<1x128xf32>
    %c2_i32_451 = arith.constant 2 : i32
    %965 = arith.muli %c10_i32_449, %c2_i32_451 : i32
    %c0_i32_452 = arith.constant 0 : i32
    %966 = arith.addi %965, %c0_i32_452 : i32
    %967 = arith.index_cast %966 : i32 to index
    %968 = memref.load %arg0[%967] : memref<32xi32, #tpu.memory_space<smem>>
    %969 = arith.index_cast %968 : i32 to index
    %c0_453 = arith.constant 0 : index
    %970 = vector.load %arg12[%969, %c0_453] : memref<32x128xf32, #tpu.memory_space<vmem>>, vector<1x128xf32>
    %c0_i32_454 = arith.constant 0 : i32
    %971 = arith.cmpi sgt, %968, %c0_i32_454 : i32
    %cst_455 = arith.constant 0.000000e+00 : f32
    %972 = vector.broadcast %cst_455 : f32 to vector<1x128xf32>
    %973 = arith.select %971, %970, %972 : vector<1x128xf32>
    %974 = arith.addf %964, %973 : vector<1x128xf32>
    %c2_i32_456 = arith.constant 2 : i32
    %975 = arith.muli %c10_i32_449, %c2_i32_456 : i32
    %c1_i32_457 = arith.constant 1 : i32
    %976 = arith.addi %975, %c1_i32_457 : i32
    %977 = arith.index_cast %976 : i32 to index
    %978 = memref.load %arg0[%977] : memref<32xi32, #tpu.memory_space<smem>>
    %979 = arith.index_cast %978 : i32 to index
    %c0_458 = arith.constant 0 : index
    %980 = vector.load %arg12[%979, %c0_458] : memref<32x128xf32, #tpu.memory_space<vmem>>, vector<1x128xf32>
    %c0_i32_459 = arith.constant 0 : i32
    %981 = arith.cmpi sgt, %978, %c0_i32_459 : i32
    %cst_460 = arith.constant 0.000000e+00 : f32
    %982 = vector.broadcast %cst_460 : f32 to vector<1x128xf32>
    %983 = arith.select %981, %980, %982 : vector<1x128xf32>
    %984 = arith.addf %974, %983 : vector<1x128xf32>
    %985 = arith.index_cast %c10_i32_449 : i32 to index
    %c0_461 = arith.constant 0 : index
    %986 = vector.load %arg14[%985, %c0_461] : memref<16x128xf32, #tpu.memory_space<vmem>>, vector<1x128xf32>
    tpu.vector_store %arg14[%985, %c0_461], %984 {strides = array<i32>} : memref<16x128xf32, #tpu.memory_space<vmem>>, vector<1x128xf32>,
    %c11_i32_462 = arith.constant 11 : i32
    %cst_463 = arith.constant 0.000000e+00 : f32
    %987 = vector.broadcast %cst_463 : f32 to vector<1x128xf32>
    %c2_i32_464 = arith.constant 2 : i32
    %988 = arith.muli %c11_i32_462, %c2_i32_464 : i32
    %c0_i32_465 = arith.constant 0 : i32
    %989 = arith.addi %988, %c0_i32_465 : i32
    %990 = arith.index_cast %989 : i32 to index
    %991 = memref.load %arg0[%990] : memref<32xi32, #tpu.memory_space<smem>>
    %992 = arith.index_cast %991 : i32 to index
    %c0_466 = arith.constant 0 : index
    %993 = vector.load %arg12[%992, %c0_466] : memref<32x128xf32, #tpu.memory_space<vmem>>, vector<1x128xf32>
    %c0_i32_467 = arith.constant 0 : i32
    %994 = arith.cmpi sgt, %991, %c0_i32_467 : i32
    %cst_468 = arith.constant 0.000000e+00 : f32
    %995 = vector.broadcast %cst_468 : f32 to vector<1x128xf32>
    %996 = arith.select %994, %993, %995 : vector<1x128xf32>
    %997 = arith.addf %987, %996 : vector<1x128xf32>
    %c2_i32_469 = arith.constant 2 : i32
    %998 = arith.muli %c11_i32_462, %c2_i32_469 : i32
    %c1_i32_470 = arith.constant 1 : i32
    %999 = arith.addi %998, %c1_i32_470 : i32
    %1000 = arith.index_cast %999 : i32 to index
    %1001 = memref.load %arg0[%1000] : memref<32xi32, #tpu.memory_space<smem>>
    %1002 = arith.index_cast %1001 : i32 to index
    %c0_471 = arith.constant 0 : index
    %1003 = vector.load %arg12[%1002, %c0_471] : memref<32x128xf32, #tpu.memory_space<vmem>>, vector<1x128xf32>
    %c0_i32_472 = arith.constant 0 : i32
    %1004 = arith.cmpi sgt, %1001, %c0_i32_472 : i32
    %cst_473 = arith.constant 0.000000e+00 : f32
    %1005 = vector.broadcast %cst_473 : f32 to vector<1x128xf32>
    %1006 = arith.select %1004, %1003, %1005 : vector<1x128xf32>
    %1007 = arith.addf %997, %1006 : vector<1x128xf32>
    %1008 = arith.index_cast %c11_i32_462 : i32 to index
    %c0_474 = arith.constant 0 : index
    %1009 = vector.load %arg14[%1008, %c0_474] : memref<16x128xf32, #tpu.memory_space<vmem>>, vector<1x128xf32>
    tpu.vector_store %arg14[%1008, %c0_474], %1007 {strides = array<i32>} : memref<16x128xf32, #tpu.memory_space<vmem>>, vector<1x128xf32>,
    %c12_i32_475 = arith.constant 12 : i32
    %cst_476 = arith.constant 0.000000e+00 : f32
    %1010 = vector.broadcast %cst_476 : f32 to vector<1x128xf32>
    %c2_i32_477 = arith.constant 2 : i32
    %1011 = arith.muli %c12_i32_475, %c2_i32_477 : i32
    %c0_i32_478 = arith.constant 0 : i32
    %1012 = arith.addi %1011, %c0_i32_478 : i32
    %1013 = arith.index_cast %1012 : i32 to index
    %1014 = memref.load %arg0[%1013] : memref<32xi32, #tpu.memory_space<smem>>
    %1015 = arith.index_cast %1014 : i32 to index
    %c0_479 = arith.constant 0 : index
    %1016 = vector.load %arg12[%1015, %c0_479] : memref<32x128xf32, #tpu.memory_space<vmem>>, vector<1x128xf32>
    %c0_i32_480 = arith.constant 0 : i32
    %1017 = arith.cmpi sgt, %1014, %c0_i32_480 : i32
    %cst_481 = arith.constant 0.000000e+00 : f32
    %1018 = vector.broadcast %cst_481 : f32 to vector<1x128xf32>
    %1019 = arith.select %1017, %1016, %1018 : vector<1x128xf32>
    %1020 = arith.addf %1010, %1019 : vector<1x128xf32>
    %c2_i32_482 = arith.constant 2 : i32
    %1021 = arith.muli %c12_i32_475, %c2_i32_482 : i32
    %c1_i32_483 = arith.constant 1 : i32
    %1022 = arith.addi %1021, %c1_i32_483 : i32
    %1023 = arith.index_cast %1022 : i32 to index
    %1024 = memref.load %arg0[%1023] : memref<32xi32, #tpu.memory_space<smem>>
    %1025 = arith.index_cast %1024 : i32 to index
    %c0_484 = arith.constant 0 : index
    %1026 = vector.load %arg12[%1025, %c0_484] : memref<32x128xf32, #tpu.memory_space<vmem>>, vector<1x128xf32>
    %c0_i32_485 = arith.constant 0 : i32
    %1027 = arith.cmpi sgt, %1024, %c0_i32_485 : i32
    %cst_486 = arith.constant 0.000000e+00 : f32
    %1028 = vector.broadcast %cst_486 : f32 to vector<1x128xf32>
    %1029 = arith.select %1027, %1026, %1028 : vector<1x128xf32>
    %1030 = arith.addf %1020, %1029 : vector<1x128xf32>
    %1031 = arith.index_cast %c12_i32_475 : i32 to index
    %c0_487 = arith.constant 0 : index
    %1032 = vector.load %arg14[%1031, %c0_487] : memref<16x128xf32, #tpu.memory_space<vmem>>, vector<1x128xf32>
    tpu.vector_store %arg14[%1031, %c0_487], %1030 {strides = array<i32>} : memref<16x128xf32, #tpu.memory_space<vmem>>, vector<1x128xf32>,
    %c13_i32_488 = arith.constant 13 : i32
    %cst_489 = arith.constant 0.000000e+00 : f32
    %1033 = vector.broadcast %cst_489 : f32 to vector<1x128xf32>
    %c2_i32_490 = arith.constant 2 : i32
    %1034 = arith.muli %c13_i32_488, %c2_i32_490 : i32
    %c0_i32_491 = arith.constant 0 : i32
    %1035 = arith.addi %1034, %c0_i32_491 : i32
    %1036 = arith.index_cast %1035 : i32 to index
    %1037 = memref.load %arg0[%1036] : memref<32xi32, #tpu.memory_space<smem>>
    %1038 = arith.index_cast %1037 : i32 to index
    %c0_492 = arith.constant 0 : index
    %1039 = vector.load %arg12[%1038, %c0_492] : memref<32x128xf32, #tpu.memory_space<vmem>>, vector<1x128xf32>
    %c0_i32_493 = arith.constant 0 : i32
    %1040 = arith.cmpi sgt, %1037, %c0_i32_493 : i32
    %cst_494 = arith.constant 0.000000e+00 : f32
    %1041 = vector.broadcast %cst_494 : f32 to vector<1x128xf32>
    %1042 = arith.select %1040, %1039, %1041 : vector<1x128xf32>
    %1043 = arith.addf %1033, %1042 : vector<1x128xf32>
    %c2_i32_495 = arith.constant 2 : i32
    %1044 = arith.muli %c13_i32_488, %c2_i32_495 : i32
    %c1_i32_496 = arith.constant 1 : i32
    %1045 = arith.addi %1044, %c1_i32_496 : i32
    %1046 = arith.index_cast %1045 : i32 to index
    %1047 = memref.load %arg0[%1046] : memref<32xi32, #tpu.memory_space<smem>>
    %1048 = arith.index_cast %1047 : i32 to index
    %c0_497 = arith.constant 0 : index
    %1049 = vector.load %arg12[%1048, %c0_497] : memref<32x128xf32, #tpu.memory_space<vmem>>, vector<1x128xf32>
    %c0_i32_498 = arith.constant 0 : i32
    %1050 = arith.cmpi sgt, %1047, %c0_i32_498 : i32
    %cst_499 = arith.constant 0.000000e+00 : f32
    %1051 = vector.broadcast %cst_499 : f32 to vector<1x128xf32>
    %1052 = arith.select %1050, %1049, %1051 : vector<1x128xf32>
    %1053 = arith.addf %1043, %1052 : vector<1x128xf32>
    %1054 = arith.index_cast %c13_i32_488 : i32 to index
    %c0_500 = arith.constant 0 : index
    %1055 = vector.load %arg14[%1054, %c0_500] : memref<16x128xf32, #tpu.memory_space<vmem>>, vector<1x128xf32>
    tpu.vector_store %arg14[%1054, %c0_500], %1053 {strides = array<i32>} : memref<16x128xf32, #tpu.memory_space<vmem>>, vector<1x128xf32>,
    %c14_i32_501 = arith.constant 14 : i32
    %cst_502 = arith.constant 0.000000e+00 : f32
    %1056 = vector.broadcast %cst_502 : f32 to vector<1x128xf32>
    %c2_i32_503 = arith.constant 2 : i32
    %1057 = arith.muli %c14_i32_501, %c2_i32_503 : i32
    %c0_i32_504 = arith.constant 0 : i32
    %1058 = arith.addi %1057, %c0_i32_504 : i32
    %1059 = arith.index_cast %1058 : i32 to index
    %1060 = memref.load %arg0[%1059] : memref<32xi32, #tpu.memory_space<smem>>
    %1061 = arith.index_cast %1060 : i32 to index
    %c0_505 = arith.constant 0 : index
    %1062 = vector.load %arg12[%1061, %c0_505] : memref<32x128xf32, #tpu.memory_space<vmem>>, vector<1x128xf32>
    %c0_i32_506 = arith.constant 0 : i32
    %1063 = arith.cmpi sgt, %1060, %c0_i32_506 : i32
    %cst_507 = arith.constant 0.000000e+00 : f32
    %1064 = vector.broadcast %cst_507 : f32 to vector<1x128xf32>
    %1065 = arith.select %1063, %1062, %1064 : vector<1x128xf32>
    %1066 = arith.addf %1056, %1065 : vector<1x128xf32>
    %c2_i32_508 = arith.constant 2 : i32
    %1067 = arith.muli %c14_i32_501, %c2_i32_508 : i32
    %c1_i32_509 = arith.constant 1 : i32
    %1068 = arith.addi %1067, %c1_i32_509 : i32
    %1069 = arith.index_cast %1068 : i32 to index
    %1070 = memref.load %arg0[%1069] : memref<32xi32, #tpu.memory_space<smem>>
    %1071 = arith.index_cast %1070 : i32 to index
    %c0_510 = arith.constant 0 : index
    %1072 = vector.load %arg12[%1071, %c0_510] : memref<32x128xf32, #tpu.memory_space<vmem>>, vector<1x128xf32>
    %c0_i32_511 = arith.constant 0 : i32
    %1073 = arith.cmpi sgt, %1070, %c0_i32_511 : i32
    %cst_512 = arith.constant 0.000000e+00 : f32
    %1074 = vector.broadcast %cst_512 : f32 to vector<1x128xf32>
    %1075 = arith.select %1073, %1072, %1074 : vector<1x128xf32>
    %1076 = arith.addf %1066, %1075 : vector<1x128xf32>
    %1077 = arith.index_cast %c14_i32_501 : i32 to index
    %c0_513 = arith.constant 0 : index
    %1078 = vector.load %arg14[%1077, %c0_513] : memref<16x128xf32, #tpu.memory_space<vmem>>, vector<1x128xf32>
    tpu.vector_store %arg14[%1077, %c0_513], %1076 {strides = array<i32>} : memref<16x128xf32, #tpu.memory_space<vmem>>, vector<1x128xf32>,
    %c15_i32_514 = arith.constant 15 : i32
    %cst_515 = arith.constant 0.000000e+00 : f32
    %1079 = vector.broadcast %cst_515 : f32 to vector<1x128xf32>
    %c2_i32_516 = arith.constant 2 : i32
    %1080 = arith.muli %c15_i32_514, %c2_i32_516 : i32
    %c0_i32_517 = arith.constant 0 : i32
    %1081 = arith.addi %1080, %c0_i32_517 : i32
    %1082 = arith.index_cast %1081 : i32 to index
    %1083 = memref.load %arg0[%1082] : memref<32xi32, #tpu.memory_space<smem>>
    %1084 = arith.index_cast %1083 : i32 to index
    %c0_518 = arith.constant 0 : index
    %1085 = vector.load %arg12[%1084, %c0_518] : memref<32x128xf32, #tpu.memory_space<vmem>>, vector<1x128xf32>
    %c0_i32_519 = arith.constant 0 : i32
    %1086 = arith.cmpi sgt, %1083, %c0_i32_519 : i32
    %cst_520 = arith.constant 0.000000e+00 : f32
    %1087 = vector.broadcast %cst_520 : f32 to vector<1x128xf32>
    %1088 = arith.select %1086, %1085, %1087 : vector<1x128xf32>
    %1089 = arith.addf %1079, %1088 : vector<1x128xf32>
    %c2_i32_521 = arith.constant 2 : i32
    %1090 = arith.muli %c15_i32_514, %c2_i32_521 : i32
    %c1_i32_522 = arith.constant 1 : i32
    %1091 = arith.addi %1090, %c1_i32_522 : i32
    %1092 = arith.index_cast %1091 : i32 to index
    %1093 = memref.load %arg0[%1092] : memref<32xi32, #tpu.memory_space<smem>>
    %1094 = arith.index_cast %1093 : i32 to index
    %c0_523 = arith.constant 0 : index
    %1095 = vector.load %arg12[%1094, %c0_523] : memref<32x128xf32, #tpu.memory_space<vmem>>, vector<1x128xf32>
    %c0_i32_524 = arith.constant 0 : i32
    %1096 = arith.cmpi sgt, %1093, %c0_i32_524 : i32
    %cst_525 = arith.constant 0.000000e+00 : f32
    %1097 = vector.broadcast %cst_525 : f32 to vector<1x128xf32>
    %1098 = arith.select %1096, %1095, %1097 : vector<1x128xf32>
    %1099 = arith.addf %1089, %1098 : vector<1x128xf32>
    %1100 = arith.index_cast %c15_i32_514 : i32 to index
    %c0_526 = arith.constant 0 : index
    %1101 = vector.load %arg14[%1100, %c0_526] : memref<16x128xf32, #tpu.memory_space<vmem>>, vector<1x128xf32>
    tpu.vector_store %arg14[%1100, %c0_526], %1099 {strides = array<i32>} : memref<16x128xf32, #tpu.memory_space<vmem>>, vector<1x128xf32>,
    %c16_i32_527 = arith.constant 16 : i32
    %c0_i32_528 = arith.constant 0 : i32
    %1102 = arith.index_cast %c0_i32_528 : i32 to index
    %1103 = memref.load %arg1[%1102] : memref<32xi32, #tpu.memory_space<smem>>
    %1104 = arith.index_cast %c0_i32_528 : i32 to index
    %1105 = memref.load %arg2[%1104] : memref<32xi32, #tpu.memory_space<smem>>
    %1106 = arith.index_cast %1103 : i32 to index
    %c0_529 = arith.constant 0 : index
    %1107 = vector.load %arg14[%1106, %c0_529] : memref<16x128xf32, #tpu.memory_space<vmem>>, vector<1x128xf32>
    %1108 = arith.index_cast %1105 : i32 to index
    %c0_530 = arith.constant 0 : index
    %1109 = vector.load %arg12[%1108, %c0_530] : memref<32x128xf32, #tpu.memory_space<vmem>>, vector<1x128xf32>
    %1110 = arith.subf %1107, %1109 : vector<1x128xf32>
    %1111 = arith.index_cast %c0_i32_528 : i32 to index
    %c0_531 = arith.constant 0 : index
    %1112 = vector.load %arg13[%1111, %c0_531] : memref<32x128xf32, #tpu.memory_space<vmem>>, vector<1x128xf32>
    tpu.vector_store %arg13[%1111, %c0_531], %1110 {strides = array<i32>} : memref<32x128xf32, #tpu.memory_space<vmem>>, vector<1x128xf32>,
    %c1_i32_532 = arith.constant 1 : i32
    %1113 = arith.index_cast %c1_i32_532 : i32 to index
    %1114 = memref.load %arg1[%1113] : memref<32xi32, #tpu.memory_space<smem>>
    %1115 = arith.index_cast %c1_i32_532 : i32 to index
    %1116 = memref.load %arg2[%1115] : memref<32xi32, #tpu.memory_space<smem>>
    %1117 = arith.index_cast %1114 : i32 to index
    %c0_533 = arith.constant 0 : index
    %1118 = vector.load %arg14[%1117, %c0_533] : memref<16x128xf32, #tpu.memory_space<vmem>>, vector<1x128xf32>
    %1119 = arith.index_cast %1116 : i32 to index
    %c0_534 = arith.constant 0 : index
    %1120 = vector.load %arg12[%1119, %c0_534] : memref<32x128xf32, #tpu.memory_space<vmem>>, vector<1x128xf32>
    %1121 = arith.subf %1118, %1120 : vector<1x128xf32>
    %1122 = arith.index_cast %c1_i32_532 : i32 to index
    %c0_535 = arith.constant 0 : index
    %1123 = vector.load %arg13[%1122, %c0_535] : memref<32x128xf32, #tpu.memory_space<vmem>>, vector<1x128xf32>
    tpu.vector_store %arg13[%1122, %c0_535], %1121 {strides = array<i32>} : memref<32x128xf32, #tpu.memory_space<vmem>>, vector<1x128xf32>,
    %c2_i32_536 = arith.constant 2 : i32
    %1124 = arith.index_cast %c2_i32_536 : i32 to index
    %1125 = memref.load %arg1[%1124] : memref<32xi32, #tpu.memory_space<smem>>
    %1126 = arith.index_cast %c2_i32_536 : i32 to index
    %1127 = memref.load %arg2[%1126] : memref<32xi32, #tpu.memory_space<smem>>
    %1128 = arith.index_cast %1125 : i32 to index
    %c0_537 = arith.constant 0 : index
    %1129 = vector.load %arg14[%1128, %c0_537] : memref<16x128xf32, #tpu.memory_space<vmem>>, vector<1x128xf32>
    %1130 = arith.index_cast %1127 : i32 to index
    %c0_538 = arith.constant 0 : index
    %1131 = vector.load %arg12[%1130, %c0_538] : memref<32x128xf32, #tpu.memory_space<vmem>>, vector<1x128xf32>
    %1132 = arith.subf %1129, %1131 : vector<1x128xf32>
    %1133 = arith.index_cast %c2_i32_536 : i32 to index
    %c0_539 = arith.constant 0 : index
    %1134 = vector.load %arg13[%1133, %c0_539] : memref<32x128xf32, #tpu.memory_space<vmem>>, vector<1x128xf32>
    tpu.vector_store %arg13[%1133, %c0_539], %1132 {strides = array<i32>} : memref<32x128xf32, #tpu.memory_space<vmem>>, vector<1x128xf32>,
    %c3_i32_540 = arith.constant 3 : i32
    %1135 = arith.index_cast %c3_i32_540 : i32 to index
    %1136 = memref.load %arg1[%1135] : memref<32xi32, #tpu.memory_space<smem>>
    %1137 = arith.index_cast %c3_i32_540 : i32 to index
    %1138 = memref.load %arg2[%1137] : memref<32xi32, #tpu.memory_space<smem>>
    %1139 = arith.index_cast %1136 : i32 to index
    %c0_541 = arith.constant 0 : index
    %1140 = vector.load %arg14[%1139, %c0_541] : memref<16x128xf32, #tpu.memory_space<vmem>>, vector<1x128xf32>
    %1141 = arith.index_cast %1138 : i32 to index
    %c0_542 = arith.constant 0 : index
    %1142 = vector.load %arg12[%1141, %c0_542] : memref<32x128xf32, #tpu.memory_space<vmem>>, vector<1x128xf32>
    %1143 = arith.subf %1140, %1142 : vector<1x128xf32>
    %1144 = arith.index_cast %c3_i32_540 : i32 to index
    %c0_543 = arith.constant 0 : index
    %1145 = vector.load %arg13[%1144, %c0_543] : memref<32x128xf32, #tpu.memory_space<vmem>>, vector<1x128xf32>
    tpu.vector_store %arg13[%1144, %c0_543], %1143 {strides = array<i32>} : memref<32x128xf32, #tpu.memory_space<vmem>>, vector<1x128xf32>,
    %c4_i32_544 = arith.constant 4 : i32
    %1146 = arith.index_cast %c4_i32_544 : i32 to index
    %1147 = memref.load %arg1[%1146] : memref<32xi32, #tpu.memory_space<smem>>
    %1148 = arith.index_cast %c4_i32_544 : i32 to index
    %1149 = memref.load %arg2[%1148] : memref<32xi32, #tpu.memory_space<smem>>
    %1150 = arith.index_cast %1147 : i32 to index
    %c0_545 = arith.constant 0 : index
    %1151 = vector.load %arg14[%1150, %c0_545] : memref<16x128xf32, #tpu.memory_space<vmem>>, vector<1x128xf32>
    %1152 = arith.index_cast %1149 : i32 to index
    %c0_546 = arith.constant 0 : index
    %1153 = vector.load %arg12[%1152, %c0_546] : memref<32x128xf32, #tpu.memory_space<vmem>>, vector<1x128xf32>
    %1154 = arith.subf %1151, %1153 : vector<1x128xf32>
    %1155 = arith.index_cast %c4_i32_544 : i32 to index
    %c0_547 = arith.constant 0 : index
    %1156 = vector.load %arg13[%1155, %c0_547] : memref<32x128xf32, #tpu.memory_space<vmem>>, vector<1x128xf32>
    tpu.vector_store %arg13[%1155, %c0_547], %1154 {strides = array<i32>} : memref<32x128xf32, #tpu.memory_space<vmem>>, vector<1x128xf32>,
    %c5_i32_548 = arith.constant 5 : i32
    %1157 = arith.index_cast %c5_i32_548 : i32 to index
    %1158 = memref.load %arg1[%1157] : memref<32xi32, #tpu.memory_space<smem>>
    %1159 = arith.index_cast %c5_i32_548 : i32 to index
    %1160 = memref.load %arg2[%1159] : memref<32xi32, #tpu.memory_space<smem>>
    %1161 = arith.index_cast %1158 : i32 to index
    %c0_549 = arith.constant 0 : index
    %1162 = vector.load %arg14[%1161, %c0_549] : memref<16x128xf32, #tpu.memory_space<vmem>>, vector<1x128xf32>
    %1163 = arith.index_cast %1160 : i32 to index
    %c0_550 = arith.constant 0 : index
    %1164 = vector.load %arg12[%1163, %c0_550] : memref<32x128xf32, #tpu.memory_space<vmem>>, vector<1x128xf32>
    %1165 = arith.subf %1162, %1164 : vector<1x128xf32>
    %1166 = arith.index_cast %c5_i32_548 : i32 to index
    %c0_551 = arith.constant 0 : index
    %1167 = vector.load %arg13[%1166, %c0_551] : memref<32x128xf32, #tpu.memory_space<vmem>>, vector<1x128xf32>
    tpu.vector_store %arg13[%1166, %c0_551], %1165 {strides = array<i32>} : memref<32x128xf32, #tpu.memory_space<vmem>>, vector<1x128xf32>,
    %c6_i32_552 = arith.constant 6 : i32
    %1168 = arith.index_cast %c6_i32_552 : i32 to index
    %1169 = memref.load %arg1[%1168] : memref<32xi32, #tpu.memory_space<smem>>
    %1170 = arith.index_cast %c6_i32_552 : i32 to index
    %1171 = memref.load %arg2[%1170] : memref<32xi32, #tpu.memory_space<smem>>
    %1172 = arith.index_cast %1169 : i32 to index
    %c0_553 = arith.constant 0 : index
    %1173 = vector.load %arg14[%1172, %c0_553] : memref<16x128xf32, #tpu.memory_space<vmem>>, vector<1x128xf32>
    %1174 = arith.index_cast %1171 : i32 to index
    %c0_554 = arith.constant 0 : index
    %1175 = vector.load %arg12[%1174, %c0_554] : memref<32x128xf32, #tpu.memory_space<vmem>>, vector<1x128xf32>
    %1176 = arith.subf %1173, %1175 : vector<1x128xf32>
    %1177 = arith.index_cast %c6_i32_552 : i32 to index
    %c0_555 = arith.constant 0 : index
    %1178 = vector.load %arg13[%1177, %c0_555] : memref<32x128xf32, #tpu.memory_space<vmem>>, vector<1x128xf32>
    tpu.vector_store %arg13[%1177, %c0_555], %1176 {strides = array<i32>} : memref<32x128xf32, #tpu.memory_space<vmem>>, vector<1x128xf32>,
    %c7_i32_556 = arith.constant 7 : i32
    %1179 = arith.index_cast %c7_i32_556 : i32 to index
    %1180 = memref.load %arg1[%1179] : memref<32xi32, #tpu.memory_space<smem>>
    %1181 = arith.index_cast %c7_i32_556 : i32 to index
    %1182 = memref.load %arg2[%1181] : memref<32xi32, #tpu.memory_space<smem>>
    %1183 = arith.index_cast %1180 : i32 to index
    %c0_557 = arith.constant 0 : index
    %1184 = vector.load %arg14[%1183, %c0_557] : memref<16x128xf32, #tpu.memory_space<vmem>>, vector<1x128xf32>
    %1185 = arith.index_cast %1182 : i32 to index
    %c0_558 = arith.constant 0 : index
    %1186 = vector.load %arg12[%1185, %c0_558] : memref<32x128xf32, #tpu.memory_space<vmem>>, vector<1x128xf32>
    %1187 = arith.subf %1184, %1186 : vector<1x128xf32>
    %1188 = arith.index_cast %c7_i32_556 : i32 to index
    %c0_559 = arith.constant 0 : index
    %1189 = vector.load %arg13[%1188, %c0_559] : memref<32x128xf32, #tpu.memory_space<vmem>>, vector<1x128xf32>
    tpu.vector_store %arg13[%1188, %c0_559], %1187 {strides = array<i32>} : memref<32x128xf32, #tpu.memory_space<vmem>>, vector<1x128xf32>,
    %c8_i32_560 = arith.constant 8 : i32
    %1190 = arith.index_cast %c8_i32_560 : i32 to index
    %1191 = memref.load %arg1[%1190] : memref<32xi32, #tpu.memory_space<smem>>
    %1192 = arith.index_cast %c8_i32_560 : i32 to index
    %1193 = memref.load %arg2[%1192] : memref<32xi32, #tpu.memory_space<smem>>
    %1194 = arith.index_cast %1191 : i32 to index
    %c0_561 = arith.constant 0 : index
    %1195 = vector.load %arg14[%1194, %c0_561] : memref<16x128xf32, #tpu.memory_space<vmem>>, vector<1x128xf32>
    %1196 = arith.index_cast %1193 : i32 to index
    %c0_562 = arith.constant 0 : index
    %1197 = vector.load %arg12[%1196, %c0_562] : memref<32x128xf32, #tpu.memory_space<vmem>>, vector<1x128xf32>
    %1198 = arith.subf %1195, %1197 : vector<1x128xf32>
    %1199 = arith.index_cast %c8_i32_560 : i32 to index
    %c0_563 = arith.constant 0 : index
    %1200 = vector.load %arg13[%1199, %c0_563] : memref<32x128xf32, #tpu.memory_space<vmem>>, vector<1x128xf32>
    tpu.vector_store %arg13[%1199, %c0_563], %1198 {strides = array<i32>} : memref<32x128xf32, #tpu.memory_space<vmem>>, vector<1x128xf32>,
    %c9_i32_564 = arith.constant 9 : i32
    %1201 = arith.index_cast %c9_i32_564 : i32 to index
    %1202 = memref.load %arg1[%1201] : memref<32xi32, #tpu.memory_space<smem>>
    %1203 = arith.index_cast %c9_i32_564 : i32 to index
    %1204 = memref.load %arg2[%1203] : memref<32xi32, #tpu.memory_space<smem>>
    %1205 = arith.index_cast %1202 : i32 to index
    %c0_565 = arith.constant 0 : index
    %1206 = vector.load %arg14[%1205, %c0_565] : memref<16x128xf32, #tpu.memory_space<vmem>>, vector<1x128xf32>
    %1207 = arith.index_cast %1204 : i32 to index
    %c0_566 = arith.constant 0 : index
    %1208 = vector.load %arg12[%1207, %c0_566] : memref<32x128xf32, #tpu.memory_space<vmem>>, vector<1x128xf32>
    %1209 = arith.subf %1206, %1208 : vector<1x128xf32>
    %1210 = arith.index_cast %c9_i32_564 : i32 to index
    %c0_567 = arith.constant 0 : index
    %1211 = vector.load %arg13[%1210, %c0_567] : memref<32x128xf32, #tpu.memory_space<vmem>>, vector<1x128xf32>
    tpu.vector_store %arg13[%1210, %c0_567], %1209 {strides = array<i32>} : memref<32x128xf32, #tpu.memory_space<vmem>>, vector<1x128xf32>,
    %c10_i32_568 = arith.constant 10 : i32
    %1212 = arith.index_cast %c10_i32_568 : i32 to index
    %1213 = memref.load %arg1[%1212] : memref<32xi32, #tpu.memory_space<smem>>
    %1214 = arith.index_cast %c10_i32_568 : i32 to index
    %1215 = memref.load %arg2[%1214] : memref<32xi32, #tpu.memory_space<smem>>
    %1216 = arith.index_cast %1213 : i32 to index
    %c0_569 = arith.constant 0 : index
    %1217 = vector.load %arg14[%1216, %c0_569] : memref<16x128xf32, #tpu.memory_space<vmem>>, vector<1x128xf32>
    %1218 = arith.index_cast %1215 : i32 to index
    %c0_570 = arith.constant 0 : index
    %1219 = vector.load %arg12[%1218, %c0_570] : memref<32x128xf32, #tpu.memory_space<vmem>>, vector<1x128xf32>
    %1220 = arith.subf %1217, %1219 : vector<1x128xf32>
    %1221 = arith.index_cast %c10_i32_568 : i32 to index
    %c0_571 = arith.constant 0 : index
    %1222 = vector.load %arg13[%1221, %c0_571] : memref<32x128xf32, #tpu.memory_space<vmem>>, vector<1x128xf32>
    tpu.vector_store %arg13[%1221, %c0_571], %1220 {strides = array<i32>} : memref<32x128xf32, #tpu.memory_space<vmem>>, vector<1x128xf32>,
    %c11_i32_572 = arith.constant 11 : i32
    %1223 = arith.index_cast %c11_i32_572 : i32 to index
    %1224 = memref.load %arg1[%1223] : memref<32xi32, #tpu.memory_space<smem>>
    %1225 = arith.index_cast %c11_i32_572 : i32 to index
    %1226 = memref.load %arg2[%1225] : memref<32xi32, #tpu.memory_space<smem>>
    %1227 = arith.index_cast %1224 : i32 to index
    %c0_573 = arith.constant 0 : index
    %1228 = vector.load %arg14[%1227, %c0_573] : memref<16x128xf32, #tpu.memory_space<vmem>>, vector<1x128xf32>
    %1229 = arith.index_cast %1226 : i32 to index
    %c0_574 = arith.constant 0 : index
    %1230 = vector.load %arg12[%1229, %c0_574] : memref<32x128xf32, #tpu.memory_space<vmem>>, vector<1x128xf32>
    %1231 = arith.subf %1228, %1230 : vector<1x128xf32>
    %1232 = arith.index_cast %c11_i32_572 : i32 to index
    %c0_575 = arith.constant 0 : index
    %1233 = vector.load %arg13[%1232, %c0_575] : memref<32x128xf32, #tpu.memory_space<vmem>>, vector<1x128xf32>
    tpu.vector_store %arg13[%1232, %c0_575], %1231 {strides = array<i32>} : memref<32x128xf32, #tpu.memory_space<vmem>>, vector<1x128xf32>,
    %c12_i32_576 = arith.constant 12 : i32
    %1234 = arith.index_cast %c12_i32_576 : i32 to index
    %1235 = memref.load %arg1[%1234] : memref<32xi32, #tpu.memory_space<smem>>
    %1236 = arith.index_cast %c12_i32_576 : i32 to index
    %1237 = memref.load %arg2[%1236] : memref<32xi32, #tpu.memory_space<smem>>
    %1238 = arith.index_cast %1235 : i32 to index
    %c0_577 = arith.constant 0 : index
    %1239 = vector.load %arg14[%1238, %c0_577] : memref<16x128xf32, #tpu.memory_space<vmem>>, vector<1x128xf32>
    %1240 = arith.index_cast %1237 : i32 to index
    %c0_578 = arith.constant 0 : index
    %1241 = vector.load %arg12[%1240, %c0_578] : memref<32x128xf32, #tpu.memory_space<vmem>>, vector<1x128xf32>
    %1242 = arith.subf %1239, %1241 : vector<1x128xf32>
    %1243 = arith.index_cast %c12_i32_576 : i32 to index
    %c0_579 = arith.constant 0 : index
    %1244 = vector.load %arg13[%1243, %c0_579] : memref<32x128xf32, #tpu.memory_space<vmem>>, vector<1x128xf32>
    tpu.vector_store %arg13[%1243, %c0_579], %1242 {strides = array<i32>} : memref<32x128xf32, #tpu.memory_space<vmem>>, vector<1x128xf32>,
    %c13_i32_580 = arith.constant 13 : i32
    %1245 = arith.index_cast %c13_i32_580 : i32 to index
    %1246 = memref.load %arg1[%1245] : memref<32xi32, #tpu.memory_space<smem>>
    %1247 = arith.index_cast %c13_i32_580 : i32 to index
    %1248 = memref.load %arg2[%1247] : memref<32xi32, #tpu.memory_space<smem>>
    %1249 = arith.index_cast %1246 : i32 to index
    %c0_581 = arith.constant 0 : index
    %1250 = vector.load %arg14[%1249, %c0_581] : memref<16x128xf32, #tpu.memory_space<vmem>>, vector<1x128xf32>
    %1251 = arith.index_cast %1248 : i32 to index
    %c0_582 = arith.constant 0 : index
    %1252 = vector.load %arg12[%1251, %c0_582] : memref<32x128xf32, #tpu.memory_space<vmem>>, vector<1x128xf32>
    %1253 = arith.subf %1250, %1252 : vector<1x128xf32>
    %1254 = arith.index_cast %c13_i32_580 : i32 to index
    %c0_583 = arith.constant 0 : index
    %1255 = vector.load %arg13[%1254, %c0_583] : memref<32x128xf32, #tpu.memory_space<vmem>>, vector<1x128xf32>
    tpu.vector_store %arg13[%1254, %c0_583], %1253 {strides = array<i32>} : memref<32x128xf32, #tpu.memory_space<vmem>>, vector<1x128xf32>,
    %c14_i32_584 = arith.constant 14 : i32
    %1256 = arith.index_cast %c14_i32_584 : i32 to index
    %1257 = memref.load %arg1[%1256] : memref<32xi32, #tpu.memory_space<smem>>
    %1258 = arith.index_cast %c14_i32_584 : i32 to index
    %1259 = memref.load %arg2[%1258] : memref<32xi32, #tpu.memory_space<smem>>
    %1260 = arith.index_cast %1257 : i32 to index
    %c0_585 = arith.constant 0 : index
    %1261 = vector.load %arg14[%1260, %c0_585] : memref<16x128xf32, #tpu.memory_space<vmem>>, vector<1x128xf32>
    %1262 = arith.index_cast %1259 : i32 to index
    %c0_586 = arith.constant 0 : index
    %1263 = vector.load %arg12[%1262, %c0_586] : memref<32x128xf32, #tpu.memory_space<vmem>>, vector<1x128xf32>
    %1264 = arith.subf %1261, %1263 : vector<1x128xf32>
    %1265 = arith.index_cast %c14_i32_584 : i32 to index
    %c0_587 = arith.constant 0 : index
    %1266 = vector.load %arg13[%1265, %c0_587] : memref<32x128xf32, #tpu.memory_space<vmem>>, vector<1x128xf32>
    tpu.vector_store %arg13[%1265, %c0_587], %1264 {strides = array<i32>} : memref<32x128xf32, #tpu.memory_space<vmem>>, vector<1x128xf32>,
    %c15_i32_588 = arith.constant 15 : i32
    %1267 = arith.index_cast %c15_i32_588 : i32 to index
    %1268 = memref.load %arg1[%1267] : memref<32xi32, #tpu.memory_space<smem>>
    %1269 = arith.index_cast %c15_i32_588 : i32 to index
    %1270 = memref.load %arg2[%1269] : memref<32xi32, #tpu.memory_space<smem>>
    %1271 = arith.index_cast %1268 : i32 to index
    %c0_589 = arith.constant 0 : index
    %1272 = vector.load %arg14[%1271, %c0_589] : memref<16x128xf32, #tpu.memory_space<vmem>>, vector<1x128xf32>
    %1273 = arith.index_cast %1270 : i32 to index
    %c0_590 = arith.constant 0 : index
    %1274 = vector.load %arg12[%1273, %c0_590] : memref<32x128xf32, #tpu.memory_space<vmem>>, vector<1x128xf32>
    %1275 = arith.subf %1272, %1274 : vector<1x128xf32>
    %1276 = arith.index_cast %c15_i32_588 : i32 to index
    %c0_591 = arith.constant 0 : index
    %1277 = vector.load %arg13[%1276, %c0_591] : memref<32x128xf32, #tpu.memory_space<vmem>>, vector<1x128xf32>
    tpu.vector_store %arg13[%1276, %c0_591], %1275 {strides = array<i32>} : memref<32x128xf32, #tpu.memory_space<vmem>>, vector<1x128xf32>,
    %c16_i32_592 = arith.constant 16 : i32
    %1278 = arith.index_cast %c16_i32_592 : i32 to index
    %1279 = memref.load %arg1[%1278] : memref<32xi32, #tpu.memory_space<smem>>
    %1280 = arith.index_cast %c16_i32_592 : i32 to index
    %1281 = memref.load %arg2[%1280] : memref<32xi32, #tpu.memory_space<smem>>
    %1282 = arith.index_cast %1279 : i32 to index
    %c0_593 = arith.constant 0 : index
    %1283 = vector.load %arg14[%1282, %c0_593] : memref<16x128xf32, #tpu.memory_space<vmem>>, vector<1x128xf32>
    %1284 = arith.index_cast %1281 : i32 to index
    %c0_594 = arith.constant 0 : index
    %1285 = vector.load %arg12[%1284, %c0_594] : memref<32x128xf32, #tpu.memory_space<vmem>>, vector<1x128xf32>
    %1286 = arith.subf %1283, %1285 : vector<1x128xf32>
    %1287 = arith.index_cast %c16_i32_592 : i32 to index
    %c0_595 = arith.constant 0 : index
    %1288 = vector.load %arg13[%1287, %c0_595] : memref<32x128xf32, #tpu.memory_space<vmem>>, vector<1x128xf32>
    tpu.vector_store %arg13[%1287, %c0_595], %1286 {strides = array<i32>} : memref<32x128xf32, #tpu.memory_space<vmem>>, vector<1x128xf32>,
    %c17_i32_596 = arith.constant 17 : i32
    %1289 = arith.index_cast %c17_i32_596 : i32 to index
    %1290 = memref.load %arg1[%1289] : memref<32xi32, #tpu.memory_space<smem>>
    %1291 = arith.index_cast %c17_i32_596 : i32 to index
    %1292 = memref.load %arg2[%1291] : memref<32xi32, #tpu.memory_space<smem>>
    %1293 = arith.index_cast %1290 : i32 to index
    %c0_597 = arith.constant 0 : index
    %1294 = vector.load %arg14[%1293, %c0_597] : memref<16x128xf32, #tpu.memory_space<vmem>>, vector<1x128xf32>
    %1295 = arith.index_cast %1292 : i32 to index
    %c0_598 = arith.constant 0 : index
    %1296 = vector.load %arg12[%1295, %c0_598] : memref<32x128xf32, #tpu.memory_space<vmem>>, vector<1x128xf32>
    %1297 = arith.subf %1294, %1296 : vector<1x128xf32>
    %1298 = arith.index_cast %c17_i32_596 : i32 to index
    %c0_599 = arith.constant 0 : index
    %1299 = vector.load %arg13[%1298, %c0_599] : memref<32x128xf32, #tpu.memory_space<vmem>>, vector<1x128xf32>
    tpu.vector_store %arg13[%1298, %c0_599], %1297 {strides = array<i32>} : memref<32x128xf32, #tpu.memory_space<vmem>>, vector<1x128xf32>,
    %c18_i32_600 = arith.constant 18 : i32
    %1300 = arith.index_cast %c18_i32_600 : i32 to index
    %1301 = memref.load %arg1[%1300] : memref<32xi32, #tpu.memory_space<smem>>
    %1302 = arith.index_cast %c18_i32_600 : i32 to index
    %1303 = memref.load %arg2[%1302] : memref<32xi32, #tpu.memory_space<smem>>
    %1304 = arith.index_cast %1301 : i32 to index
    %c0_601 = arith.constant 0 : index
    %1305 = vector.load %arg14[%1304, %c0_601] : memref<16x128xf32, #tpu.memory_space<vmem>>, vector<1x128xf32>
    %1306 = arith.index_cast %1303 : i32 to index
    %c0_602 = arith.constant 0 : index
    %1307 = vector.load %arg12[%1306, %c0_602] : memref<32x128xf32, #tpu.memory_space<vmem>>, vector<1x128xf32>
    %1308 = arith.subf %1305, %1307 : vector<1x128xf32>
    %1309 = arith.index_cast %c18_i32_600 : i32 to index
    %c0_603 = arith.constant 0 : index
    %1310 = vector.load %arg13[%1309, %c0_603] : memref<32x128xf32, #tpu.memory_space<vmem>>, vector<1x128xf32>
    tpu.vector_store %arg13[%1309, %c0_603], %1308 {strides = array<i32>} : memref<32x128xf32, #tpu.memory_space<vmem>>, vector<1x128xf32>,
    %c19_i32_604 = arith.constant 19 : i32
    %1311 = arith.index_cast %c19_i32_604 : i32 to index
    %1312 = memref.load %arg1[%1311] : memref<32xi32, #tpu.memory_space<smem>>
    %1313 = arith.index_cast %c19_i32_604 : i32 to index
    %1314 = memref.load %arg2[%1313] : memref<32xi32, #tpu.memory_space<smem>>
    %1315 = arith.index_cast %1312 : i32 to index
    %c0_605 = arith.constant 0 : index
    %1316 = vector.load %arg14[%1315, %c0_605] : memref<16x128xf32, #tpu.memory_space<vmem>>, vector<1x128xf32>
    %1317 = arith.index_cast %1314 : i32 to index
    %c0_606 = arith.constant 0 : index
    %1318 = vector.load %arg12[%1317, %c0_606] : memref<32x128xf32, #tpu.memory_space<vmem>>, vector<1x128xf32>
    %1319 = arith.subf %1316, %1318 : vector<1x128xf32>
    %1320 = arith.index_cast %c19_i32_604 : i32 to index
    %c0_607 = arith.constant 0 : index
    %1321 = vector.load %arg13[%1320, %c0_607] : memref<32x128xf32, #tpu.memory_space<vmem>>, vector<1x128xf32>
    tpu.vector_store %arg13[%1320, %c0_607], %1319 {strides = array<i32>} : memref<32x128xf32, #tpu.memory_space<vmem>>, vector<1x128xf32>,
    %c20_i32_608 = arith.constant 20 : i32
    %1322 = arith.index_cast %c20_i32_608 : i32 to index
    %1323 = memref.load %arg1[%1322] : memref<32xi32, #tpu.memory_space<smem>>
    %1324 = arith.index_cast %c20_i32_608 : i32 to index
    %1325 = memref.load %arg2[%1324] : memref<32xi32, #tpu.memory_space<smem>>
    %1326 = arith.index_cast %1323 : i32 to index
    %c0_609 = arith.constant 0 : index
    %1327 = vector.load %arg14[%1326, %c0_609] : memref<16x128xf32, #tpu.memory_space<vmem>>, vector<1x128xf32>
    %1328 = arith.index_cast %1325 : i32 to index
    %c0_610 = arith.constant 0 : index
    %1329 = vector.load %arg12[%1328, %c0_610] : memref<32x128xf32, #tpu.memory_space<vmem>>, vector<1x128xf32>
    %1330 = arith.subf %1327, %1329 : vector<1x128xf32>
    %1331 = arith.index_cast %c20_i32_608 : i32 to index
    %c0_611 = arith.constant 0 : index
    %1332 = vector.load %arg13[%1331, %c0_611] : memref<32x128xf32, #tpu.memory_space<vmem>>, vector<1x128xf32>
    tpu.vector_store %arg13[%1331, %c0_611], %1330 {strides = array<i32>} : memref<32x128xf32, #tpu.memory_space<vmem>>, vector<1x128xf32>,
    %c21_i32_612 = arith.constant 21 : i32
    %1333 = arith.index_cast %c21_i32_612 : i32 to index
    %1334 = memref.load %arg1[%1333] : memref<32xi32, #tpu.memory_space<smem>>
    %1335 = arith.index_cast %c21_i32_612 : i32 to index
    %1336 = memref.load %arg2[%1335] : memref<32xi32, #tpu.memory_space<smem>>
    %1337 = arith.index_cast %1334 : i32 to index
    %c0_613 = arith.constant 0 : index
    %1338 = vector.load %arg14[%1337, %c0_613] : memref<16x128xf32, #tpu.memory_space<vmem>>, vector<1x128xf32>
    %1339 = arith.index_cast %1336 : i32 to index
    %c0_614 = arith.constant 0 : index
    %1340 = vector.load %arg12[%1339, %c0_614] : memref<32x128xf32, #tpu.memory_space<vmem>>, vector<1x128xf32>
    %1341 = arith.subf %1338, %1340 : vector<1x128xf32>
    %1342 = arith.index_cast %c21_i32_612 : i32 to index
    %c0_615 = arith.constant 0 : index
    %1343 = vector.load %arg13[%1342, %c0_615] : memref<32x128xf32, #tpu.memory_space<vmem>>, vector<1x128xf32>
    tpu.vector_store %arg13[%1342, %c0_615], %1341 {strides = array<i32>} : memref<32x128xf32, #tpu.memory_space<vmem>>, vector<1x128xf32>,
    %c22_i32_616 = arith.constant 22 : i32
    %1344 = arith.index_cast %c22_i32_616 : i32 to index
    %1345 = memref.load %arg1[%1344] : memref<32xi32, #tpu.memory_space<smem>>
    %1346 = arith.index_cast %c22_i32_616 : i32 to index
    %1347 = memref.load %arg2[%1346] : memref<32xi32, #tpu.memory_space<smem>>
    %1348 = arith.index_cast %1345 : i32 to index
    %c0_617 = arith.constant 0 : index
    %1349 = vector.load %arg14[%1348, %c0_617] : memref<16x128xf32, #tpu.memory_space<vmem>>, vector<1x128xf32>
    %1350 = arith.index_cast %1347 : i32 to index
    %c0_618 = arith.constant 0 : index
    %1351 = vector.load %arg12[%1350, %c0_618] : memref<32x128xf32, #tpu.memory_space<vmem>>, vector<1x128xf32>
    %1352 = arith.subf %1349, %1351 : vector<1x128xf32>
    %1353 = arith.index_cast %c22_i32_616 : i32 to index
    %c0_619 = arith.constant 0 : index
    %1354 = vector.load %arg13[%1353, %c0_619] : memref<32x128xf32, #tpu.memory_space<vmem>>, vector<1x128xf32>
    tpu.vector_store %arg13[%1353, %c0_619], %1352 {strides = array<i32>} : memref<32x128xf32, #tpu.memory_space<vmem>>, vector<1x128xf32>,
    %c23_i32_620 = arith.constant 23 : i32
    %1355 = arith.index_cast %c23_i32_620 : i32 to index
    %1356 = memref.load %arg1[%1355] : memref<32xi32, #tpu.memory_space<smem>>
    %1357 = arith.index_cast %c23_i32_620 : i32 to index
    %1358 = memref.load %arg2[%1357] : memref<32xi32, #tpu.memory_space<smem>>
    %1359 = arith.index_cast %1356 : i32 to index
    %c0_621 = arith.constant 0 : index
    %1360 = vector.load %arg14[%1359, %c0_621] : memref<16x128xf32, #tpu.memory_space<vmem>>, vector<1x128xf32>
    %1361 = arith.index_cast %1358 : i32 to index
    %c0_622 = arith.constant 0 : index
    %1362 = vector.load %arg12[%1361, %c0_622] : memref<32x128xf32, #tpu.memory_space<vmem>>, vector<1x128xf32>
    %1363 = arith.subf %1360, %1362 : vector<1x128xf32>
    %1364 = arith.index_cast %c23_i32_620 : i32 to index
    %c0_623 = arith.constant 0 : index
    %1365 = vector.load %arg13[%1364, %c0_623] : memref<32x128xf32, #tpu.memory_space<vmem>>, vector<1x128xf32>
    tpu.vector_store %arg13[%1364, %c0_623], %1363 {strides = array<i32>} : memref<32x128xf32, #tpu.memory_space<vmem>>, vector<1x128xf32>,
    %c24_i32_624 = arith.constant 24 : i32
    %1366 = arith.index_cast %c24_i32_624 : i32 to index
    %1367 = memref.load %arg1[%1366] : memref<32xi32, #tpu.memory_space<smem>>
    %1368 = arith.index_cast %c24_i32_624 : i32 to index
    %1369 = memref.load %arg2[%1368] : memref<32xi32, #tpu.memory_space<smem>>
    %1370 = arith.index_cast %1367 : i32 to index
    %c0_625 = arith.constant 0 : index
    %1371 = vector.load %arg14[%1370, %c0_625] : memref<16x128xf32, #tpu.memory_space<vmem>>, vector<1x128xf32>
    %1372 = arith.index_cast %1369 : i32 to index
    %c0_626 = arith.constant 0 : index
    %1373 = vector.load %arg12[%1372, %c0_626] : memref<32x128xf32, #tpu.memory_space<vmem>>, vector<1x128xf32>
    %1374 = arith.subf %1371, %1373 : vector<1x128xf32>
    %1375 = arith.index_cast %c24_i32_624 : i32 to index
    %c0_627 = arith.constant 0 : index
    %1376 = vector.load %arg13[%1375, %c0_627] : memref<32x128xf32, #tpu.memory_space<vmem>>, vector<1x128xf32>
    tpu.vector_store %arg13[%1375, %c0_627], %1374 {strides = array<i32>} : memref<32x128xf32, #tpu.memory_space<vmem>>, vector<1x128xf32>,
    %c25_i32_628 = arith.constant 25 : i32
    %1377 = arith.index_cast %c25_i32_628 : i32 to index
    %1378 = memref.load %arg1[%1377] : memref<32xi32, #tpu.memory_space<smem>>
    %1379 = arith.index_cast %c25_i32_628 : i32 to index
    %1380 = memref.load %arg2[%1379] : memref<32xi32, #tpu.memory_space<smem>>
    %1381 = arith.index_cast %1378 : i32 to index
    %c0_629 = arith.constant 0 : index
    %1382 = vector.load %arg14[%1381, %c0_629] : memref<16x128xf32, #tpu.memory_space<vmem>>, vector<1x128xf32>
    %1383 = arith.index_cast %1380 : i32 to index
    %c0_630 = arith.constant 0 : index
    %1384 = vector.load %arg12[%1383, %c0_630] : memref<32x128xf32, #tpu.memory_space<vmem>>, vector<1x128xf32>
    %1385 = arith.subf %1382, %1384 : vector<1x128xf32>
    %1386 = arith.index_cast %c25_i32_628 : i32 to index
    %c0_631 = arith.constant 0 : index
    %1387 = vector.load %arg13[%1386, %c0_631] : memref<32x128xf32, #tpu.memory_space<vmem>>, vector<1x128xf32>
    tpu.vector_store %arg13[%1386, %c0_631], %1385 {strides = array<i32>} : memref<32x128xf32, #tpu.memory_space<vmem>>, vector<1x128xf32>,
    %c26_i32_632 = arith.constant 26 : i32
    %1388 = arith.index_cast %c26_i32_632 : i32 to index
    %1389 = memref.load %arg1[%1388] : memref<32xi32, #tpu.memory_space<smem>>
    %1390 = arith.index_cast %c26_i32_632 : i32 to index
    %1391 = memref.load %arg2[%1390] : memref<32xi32, #tpu.memory_space<smem>>
    %1392 = arith.index_cast %1389 : i32 to index
    %c0_633 = arith.constant 0 : index
    %1393 = vector.load %arg14[%1392, %c0_633] : memref<16x128xf32, #tpu.memory_space<vmem>>, vector<1x128xf32>
    %1394 = arith.index_cast %1391 : i32 to index
    %c0_634 = arith.constant 0 : index
    %1395 = vector.load %arg12[%1394, %c0_634] : memref<32x128xf32, #tpu.memory_space<vmem>>, vector<1x128xf32>
    %1396 = arith.subf %1393, %1395 : vector<1x128xf32>
    %1397 = arith.index_cast %c26_i32_632 : i32 to index
    %c0_635 = arith.constant 0 : index
    %1398 = vector.load %arg13[%1397, %c0_635] : memref<32x128xf32, #tpu.memory_space<vmem>>, vector<1x128xf32>
    tpu.vector_store %arg13[%1397, %c0_635], %1396 {strides = array<i32>} : memref<32x128xf32, #tpu.memory_space<vmem>>, vector<1x128xf32>,
    %c27_i32_636 = arith.constant 27 : i32
    %1399 = arith.index_cast %c27_i32_636 : i32 to index
    %1400 = memref.load %arg1[%1399] : memref<32xi32, #tpu.memory_space<smem>>
    %1401 = arith.index_cast %c27_i32_636 : i32 to index
    %1402 = memref.load %arg2[%1401] : memref<32xi32, #tpu.memory_space<smem>>
    %1403 = arith.index_cast %1400 : i32 to index
    %c0_637 = arith.constant 0 : index
    %1404 = vector.load %arg14[%1403, %c0_637] : memref<16x128xf32, #tpu.memory_space<vmem>>, vector<1x128xf32>
    %1405 = arith.index_cast %1402 : i32 to index
    %c0_638 = arith.constant 0 : index
    %1406 = vector.load %arg12[%1405, %c0_638] : memref<32x128xf32, #tpu.memory_space<vmem>>, vector<1x128xf32>
    %1407 = arith.subf %1404, %1406 : vector<1x128xf32>
    %1408 = arith.index_cast %c27_i32_636 : i32 to index
    %c0_639 = arith.constant 0 : index
    %1409 = vector.load %arg13[%1408, %c0_639] : memref<32x128xf32, #tpu.memory_space<vmem>>, vector<1x128xf32>
    tpu.vector_store %arg13[%1408, %c0_639], %1407 {strides = array<i32>} : memref<32x128xf32, #tpu.memory_space<vmem>>, vector<1x128xf32>,
    %c28_i32_640 = arith.constant 28 : i32
    %1410 = arith.index_cast %c28_i32_640 : i32 to index
    %1411 = memref.load %arg1[%1410] : memref<32xi32, #tpu.memory_space<smem>>
    %1412 = arith.index_cast %c28_i32_640 : i32 to index
    %1413 = memref.load %arg2[%1412] : memref<32xi32, #tpu.memory_space<smem>>
    %1414 = arith.index_cast %1411 : i32 to index
    %c0_641 = arith.constant 0 : index
    %1415 = vector.load %arg14[%1414, %c0_641] : memref<16x128xf32, #tpu.memory_space<vmem>>, vector<1x128xf32>
    %1416 = arith.index_cast %1413 : i32 to index
    %c0_642 = arith.constant 0 : index
    %1417 = vector.load %arg12[%1416, %c0_642] : memref<32x128xf32, #tpu.memory_space<vmem>>, vector<1x128xf32>
    %1418 = arith.subf %1415, %1417 : vector<1x128xf32>
    %1419 = arith.index_cast %c28_i32_640 : i32 to index
    %c0_643 = arith.constant 0 : index
    %1420 = vector.load %arg13[%1419, %c0_643] : memref<32x128xf32, #tpu.memory_space<vmem>>, vector<1x128xf32>
    tpu.vector_store %arg13[%1419, %c0_643], %1418 {strides = array<i32>} : memref<32x128xf32, #tpu.memory_space<vmem>>, vector<1x128xf32>,
    %c29_i32_644 = arith.constant 29 : i32
    %1421 = arith.index_cast %c29_i32_644 : i32 to index
    %1422 = memref.load %arg1[%1421] : memref<32xi32, #tpu.memory_space<smem>>
    %1423 = arith.index_cast %c29_i32_644 : i32 to index
    %1424 = memref.load %arg2[%1423] : memref<32xi32, #tpu.memory_space<smem>>
    %1425 = arith.index_cast %1422 : i32 to index
    %c0_645 = arith.constant 0 : index
    %1426 = vector.load %arg14[%1425, %c0_645] : memref<16x128xf32, #tpu.memory_space<vmem>>, vector<1x128xf32>
    %1427 = arith.index_cast %1424 : i32 to index
    %c0_646 = arith.constant 0 : index
    %1428 = vector.load %arg12[%1427, %c0_646] : memref<32x128xf32, #tpu.memory_space<vmem>>, vector<1x128xf32>
    %1429 = arith.subf %1426, %1428 : vector<1x128xf32>
    %1430 = arith.index_cast %c29_i32_644 : i32 to index
    %c0_647 = arith.constant 0 : index
    %1431 = vector.load %arg13[%1430, %c0_647] : memref<32x128xf32, #tpu.memory_space<vmem>>, vector<1x128xf32>
    tpu.vector_store %arg13[%1430, %c0_647], %1429 {strides = array<i32>} : memref<32x128xf32, #tpu.memory_space<vmem>>, vector<1x128xf32>,
    %c30_i32_648 = arith.constant 30 : i32
    %1432 = arith.index_cast %c30_i32_648 : i32 to index
    %1433 = memref.load %arg1[%1432] : memref<32xi32, #tpu.memory_space<smem>>
    %1434 = arith.index_cast %c30_i32_648 : i32 to index
    %1435 = memref.load %arg2[%1434] : memref<32xi32, #tpu.memory_space<smem>>
    %1436 = arith.index_cast %1433 : i32 to index
    %c0_649 = arith.constant 0 : index
    %1437 = vector.load %arg14[%1436, %c0_649] : memref<16x128xf32, #tpu.memory_space<vmem>>, vector<1x128xf32>
    %1438 = arith.index_cast %1435 : i32 to index
    %c0_650 = arith.constant 0 : index
    %1439 = vector.load %arg12[%1438, %c0_650] : memref<32x128xf32, #tpu.memory_space<vmem>>, vector<1x128xf32>
    %1440 = arith.subf %1437, %1439 : vector<1x128xf32>
    %1441 = arith.index_cast %c30_i32_648 : i32 to index
    %c0_651 = arith.constant 0 : index
    %1442 = vector.load %arg13[%1441, %c0_651] : memref<32x128xf32, #tpu.memory_space<vmem>>, vector<1x128xf32>
    tpu.vector_store %arg13[%1441, %c0_651], %1440 {strides = array<i32>} : memref<32x128xf32, #tpu.memory_space<vmem>>, vector<1x128xf32>,
    %c31_i32_652 = arith.constant 31 : i32
    %1443 = arith.index_cast %c31_i32_652 : i32 to index
    %1444 = memref.load %arg1[%1443] : memref<32xi32, #tpu.memory_space<smem>>
    %1445 = arith.index_cast %c31_i32_652 : i32 to index
    %1446 = memref.load %arg2[%1445] : memref<32xi32, #tpu.memory_space<smem>>
    %1447 = arith.index_cast %1444 : i32 to index
    %c0_653 = arith.constant 0 : index
    %1448 = vector.load %arg14[%1447, %c0_653] : memref<16x128xf32, #tpu.memory_space<vmem>>, vector<1x128xf32>
    %1449 = arith.index_cast %1446 : i32 to index
    %c0_654 = arith.constant 0 : index
    %1450 = vector.load %arg12[%1449, %c0_654] : memref<32x128xf32, #tpu.memory_space<vmem>>, vector<1x128xf32>
    %1451 = arith.subf %1448, %1450 : vector<1x128xf32>
    %1452 = arith.index_cast %c31_i32_652 : i32 to index
    %c0_655 = arith.constant 0 : index
    %1453 = vector.load %arg13[%1452, %c0_655] : memref<32x128xf32, #tpu.memory_space<vmem>>, vector<1x128xf32>
    tpu.vector_store %arg13[%1452, %c0_655], %1451 {strides = array<i32>} : memref<32x128xf32, #tpu.memory_space<vmem>>, vector<1x128xf32>,
    %c32_i32_656 = arith.constant 32 : i32
    %c0_657 = arith.constant 0 : index
    %c0_658 = arith.constant 0 : index
    %1454 = vector.load %arg13[%c0_657, %c0_658] : memref<32x128xf32, #tpu.memory_space<vmem>>, vector<32x128xf32>
    %1455 = arith.truncf %1454 : vector<32x128xf32> to vector<32x128xbf16>
    %cst_659 = arith.constant dense<0.000000e+00> : vector<32x128xf32>
    %1456 = tpu.matmul %1455, %0, %cst_659 {dimension_numbers = #tpu.dot_dimension_numbers<[1], [0], [0], [1], [0, 0, 1, 1], [], []>} : vector<32x128xbf16>, vector<128x128xbf16>, vector<32x128xf32> -> vector<32x128xf32>
    %1457 = arith.addf %3, %1456 : vector<32x128xf32>
    %cst_660 = arith.constant 0.000000e+00 : f32
    %1458 = vector.broadcast %cst_660 : f32 to vector<32x128xf32>
    %1459 = arith.maximumf %1457, %1458 : vector<32x128xf32>
    %c0_661 = arith.constant 0 : index
    %c0_662 = arith.constant 0 : index
    %1460 = vector.load %arg12[%c0_661, %c0_662] : memref<32x128xf32, #tpu.memory_space<vmem>>, vector<32x128xf32>
    tpu.vector_store %arg12[%c0_661, %c0_662], %1459 {strides = array<i32>} : memref<32x128xf32, #tpu.memory_space<vmem>>, vector<32x128xf32>,
    %c0_i32_663 = arith.constant 0 : i32
    %cst_664 = arith.constant 0.000000e+00 : f32
    %1461 = vector.broadcast %cst_664 : f32 to vector<1x128xf32>
    %c2_i32_665 = arith.constant 2 : i32
    %1462 = arith.muli %c0_i32_663, %c2_i32_665 : i32
    %c0_i32_666 = arith.constant 0 : i32
    %1463 = arith.addi %1462, %c0_i32_666 : i32
    %1464 = arith.index_cast %1463 : i32 to index
    %1465 = memref.load %arg0[%1464] : memref<32xi32, #tpu.memory_space<smem>>
    %1466 = arith.index_cast %1465 : i32 to index
    %c0_667 = arith.constant 0 : index
    %1467 = vector.load %arg12[%1466, %c0_667] : memref<32x128xf32, #tpu.memory_space<vmem>>, vector<1x128xf32>
    %c0_i32_668 = arith.constant 0 : i32
    %1468 = arith.cmpi sgt, %1465, %c0_i32_668 : i32
    %cst_669 = arith.constant 0.000000e+00 : f32
    %1469 = vector.broadcast %cst_669 : f32 to vector<1x128xf32>
    %1470 = arith.select %1468, %1467, %1469 : vector<1x128xf32>
    %1471 = arith.addf %1461, %1470 : vector<1x128xf32>
    %c2_i32_670 = arith.constant 2 : i32
    %1472 = arith.muli %c0_i32_663, %c2_i32_670 : i32
    %c1_i32_671 = arith.constant 1 : i32
    %1473 = arith.addi %1472, %c1_i32_671 : i32
    %1474 = arith.index_cast %1473 : i32 to index
    %1475 = memref.load %arg0[%1474] : memref<32xi32, #tpu.memory_space<smem>>
    %1476 = arith.index_cast %1475 : i32 to index
    %c0_672 = arith.constant 0 : index
    %1477 = vector.load %arg12[%1476, %c0_672] : memref<32x128xf32, #tpu.memory_space<vmem>>, vector<1x128xf32>
    %c0_i32_673 = arith.constant 0 : i32
    %1478 = arith.cmpi sgt, %1475, %c0_i32_673 : i32
    %cst_674 = arith.constant 0.000000e+00 : f32
    %1479 = vector.broadcast %cst_674 : f32 to vector<1x128xf32>
    %1480 = arith.select %1478, %1477, %1479 : vector<1x128xf32>
    %1481 = arith.addf %1471, %1480 : vector<1x128xf32>
    %1482 = arith.index_cast %c0_i32_663 : i32 to index
    %c0_675 = arith.constant 0 : index
    %1483 = vector.load %arg14[%1482, %c0_675] : memref<16x128xf32, #tpu.memory_space<vmem>>, vector<1x128xf32>
    tpu.vector_store %arg14[%1482, %c0_675], %1481 {strides = array<i32>} : memref<16x128xf32, #tpu.memory_space<vmem>>, vector<1x128xf32>,
    %c1_i32_676 = arith.constant 1 : i32
    %cst_677 = arith.constant 0.000000e+00 : f32
    %1484 = vector.broadcast %cst_677 : f32 to vector<1x128xf32>
    %c2_i32_678 = arith.constant 2 : i32
    %1485 = arith.muli %c1_i32_676, %c2_i32_678 : i32
    %c0_i32_679 = arith.constant 0 : i32
    %1486 = arith.addi %1485, %c0_i32_679 : i32
    %1487 = arith.index_cast %1486 : i32 to index
    %1488 = memref.load %arg0[%1487] : memref<32xi32, #tpu.memory_space<smem>>
    %1489 = arith.index_cast %1488 : i32 to index
    %c0_680 = arith.constant 0 : index
    %1490 = vector.load %arg12[%1489, %c0_680] : memref<32x128xf32, #tpu.memory_space<vmem>>, vector<1x128xf32>
    %c0_i32_681 = arith.constant 0 : i32
    %1491 = arith.cmpi sgt, %1488, %c0_i32_681 : i32
    %cst_682 = arith.constant 0.000000e+00 : f32
    %1492 = vector.broadcast %cst_682 : f32 to vector<1x128xf32>
    %1493 = arith.select %1491, %1490, %1492 : vector<1x128xf32>
    %1494 = arith.addf %1484, %1493 : vector<1x128xf32>
    %c2_i32_683 = arith.constant 2 : i32
    %1495 = arith.muli %c1_i32_676, %c2_i32_683 : i32
    %c1_i32_684 = arith.constant 1 : i32
    %1496 = arith.addi %1495, %c1_i32_684 : i32
    %1497 = arith.index_cast %1496 : i32 to index
    %1498 = memref.load %arg0[%1497] : memref<32xi32, #tpu.memory_space<smem>>
    %1499 = arith.index_cast %1498 : i32 to index
    %c0_685 = arith.constant 0 : index
    %1500 = vector.load %arg12[%1499, %c0_685] : memref<32x128xf32, #tpu.memory_space<vmem>>, vector<1x128xf32>
    %c0_i32_686 = arith.constant 0 : i32
    %1501 = arith.cmpi sgt, %1498, %c0_i32_686 : i32
    %cst_687 = arith.constant 0.000000e+00 : f32
    %1502 = vector.broadcast %cst_687 : f32 to vector<1x128xf32>
    %1503 = arith.select %1501, %1500, %1502 : vector<1x128xf32>
    %1504 = arith.addf %1494, %1503 : vector<1x128xf32>
    %1505 = arith.index_cast %c1_i32_676 : i32 to index
    %c0_688 = arith.constant 0 : index
    %1506 = vector.load %arg14[%1505, %c0_688] : memref<16x128xf32, #tpu.memory_space<vmem>>, vector<1x128xf32>
    tpu.vector_store %arg14[%1505, %c0_688], %1504 {strides = array<i32>} : memref<16x128xf32, #tpu.memory_space<vmem>>, vector<1x128xf32>,
    %c2_i32_689 = arith.constant 2 : i32
    %cst_690 = arith.constant 0.000000e+00 : f32
    %1507 = vector.broadcast %cst_690 : f32 to vector<1x128xf32>
    %c2_i32_691 = arith.constant 2 : i32
    %1508 = arith.muli %c2_i32_689, %c2_i32_691 : i32
    %c0_i32_692 = arith.constant 0 : i32
    %1509 = arith.addi %1508, %c0_i32_692 : i32
    %1510 = arith.index_cast %1509 : i32 to index
    %1511 = memref.load %arg0[%1510] : memref<32xi32, #tpu.memory_space<smem>>
    %1512 = arith.index_cast %1511 : i32 to index
    %c0_693 = arith.constant 0 : index
    %1513 = vector.load %arg12[%1512, %c0_693] : memref<32x128xf32, #tpu.memory_space<vmem>>, vector<1x128xf32>
    %c0_i32_694 = arith.constant 0 : i32
    %1514 = arith.cmpi sgt, %1511, %c0_i32_694 : i32
    %cst_695 = arith.constant 0.000000e+00 : f32
    %1515 = vector.broadcast %cst_695 : f32 to vector<1x128xf32>
    %1516 = arith.select %1514, %1513, %1515 : vector<1x128xf32>
    %1517 = arith.addf %1507, %1516 : vector<1x128xf32>
    %c2_i32_696 = arith.constant 2 : i32
    %1518 = arith.muli %c2_i32_689, %c2_i32_696 : i32
    %c1_i32_697 = arith.constant 1 : i32
    %1519 = arith.addi %1518, %c1_i32_697 : i32
    %1520 = arith.index_cast %1519 : i32 to index
    %1521 = memref.load %arg0[%1520] : memref<32xi32, #tpu.memory_space<smem>>
    %1522 = arith.index_cast %1521 : i32 to index
    %c0_698 = arith.constant 0 : index
    %1523 = vector.load %arg12[%1522, %c0_698] : memref<32x128xf32, #tpu.memory_space<vmem>>, vector<1x128xf32>
    %c0_i32_699 = arith.constant 0 : i32
    %1524 = arith.cmpi sgt, %1521, %c0_i32_699 : i32
    %cst_700 = arith.constant 0.000000e+00 : f32
    %1525 = vector.broadcast %cst_700 : f32 to vector<1x128xf32>
    %1526 = arith.select %1524, %1523, %1525 : vector<1x128xf32>
    %1527 = arith.addf %1517, %1526 : vector<1x128xf32>
    %1528 = arith.index_cast %c2_i32_689 : i32 to index
    %c0_701 = arith.constant 0 : index
    %1529 = vector.load %arg14[%1528, %c0_701] : memref<16x128xf32, #tpu.memory_space<vmem>>, vector<1x128xf32>
    tpu.vector_store %arg14[%1528, %c0_701], %1527 {strides = array<i32>} : memref<16x128xf32, #tpu.memory_space<vmem>>, vector<1x128xf32>,
    %c3_i32_702 = arith.constant 3 : i32
    %cst_703 = arith.constant 0.000000e+00 : f32
    %1530 = vector.broadcast %cst_703 : f32 to vector<1x128xf32>
    %c2_i32_704 = arith.constant 2 : i32
    %1531 = arith.muli %c3_i32_702, %c2_i32_704 : i32
    %c0_i32_705 = arith.constant 0 : i32
    %1532 = arith.addi %1531, %c0_i32_705 : i32
    %1533 = arith.index_cast %1532 : i32 to index
    %1534 = memref.load %arg0[%1533] : memref<32xi32, #tpu.memory_space<smem>>
    %1535 = arith.index_cast %1534 : i32 to index
    %c0_706 = arith.constant 0 : index
    %1536 = vector.load %arg12[%1535, %c0_706] : memref<32x128xf32, #tpu.memory_space<vmem>>, vector<1x128xf32>
    %c0_i32_707 = arith.constant 0 : i32
    %1537 = arith.cmpi sgt, %1534, %c0_i32_707 : i32
    %cst_708 = arith.constant 0.000000e+00 : f32
    %1538 = vector.broadcast %cst_708 : f32 to vector<1x128xf32>
    %1539 = arith.select %1537, %1536, %1538 : vector<1x128xf32>
    %1540 = arith.addf %1530, %1539 : vector<1x128xf32>
    %c2_i32_709 = arith.constant 2 : i32
    %1541 = arith.muli %c3_i32_702, %c2_i32_709 : i32
    %c1_i32_710 = arith.constant 1 : i32
    %1542 = arith.addi %1541, %c1_i32_710 : i32
    %1543 = arith.index_cast %1542 : i32 to index
    %1544 = memref.load %arg0[%1543] : memref<32xi32, #tpu.memory_space<smem>>
    %1545 = arith.index_cast %1544 : i32 to index
    %c0_711 = arith.constant 0 : index
    %1546 = vector.load %arg12[%1545, %c0_711] : memref<32x128xf32, #tpu.memory_space<vmem>>, vector<1x128xf32>
    %c0_i32_712 = arith.constant 0 : i32
    %1547 = arith.cmpi sgt, %1544, %c0_i32_712 : i32
    %cst_713 = arith.constant 0.000000e+00 : f32
    %1548 = vector.broadcast %cst_713 : f32 to vector<1x128xf32>
    %1549 = arith.select %1547, %1546, %1548 : vector<1x128xf32>
    %1550 = arith.addf %1540, %1549 : vector<1x128xf32>
    %1551 = arith.index_cast %c3_i32_702 : i32 to index
    %c0_714 = arith.constant 0 : index
    %1552 = vector.load %arg14[%1551, %c0_714] : memref<16x128xf32, #tpu.memory_space<vmem>>, vector<1x128xf32>
    tpu.vector_store %arg14[%1551, %c0_714], %1550 {strides = array<i32>} : memref<16x128xf32, #tpu.memory_space<vmem>>, vector<1x128xf32>,
    %c4_i32_715 = arith.constant 4 : i32
    %cst_716 = arith.constant 0.000000e+00 : f32
    %1553 = vector.broadcast %cst_716 : f32 to vector<1x128xf32>
    %c2_i32_717 = arith.constant 2 : i32
    %1554 = arith.muli %c4_i32_715, %c2_i32_717 : i32
    %c0_i32_718 = arith.constant 0 : i32
    %1555 = arith.addi %1554, %c0_i32_718 : i32
    %1556 = arith.index_cast %1555 : i32 to index
    %1557 = memref.load %arg0[%1556] : memref<32xi32, #tpu.memory_space<smem>>
    %1558 = arith.index_cast %1557 : i32 to index
    %c0_719 = arith.constant 0 : index
    %1559 = vector.load %arg12[%1558, %c0_719] : memref<32x128xf32, #tpu.memory_space<vmem>>, vector<1x128xf32>
    %c0_i32_720 = arith.constant 0 : i32
    %1560 = arith.cmpi sgt, %1557, %c0_i32_720 : i32
    %cst_721 = arith.constant 0.000000e+00 : f32
    %1561 = vector.broadcast %cst_721 : f32 to vector<1x128xf32>
    %1562 = arith.select %1560, %1559, %1561 : vector<1x128xf32>
    %1563 = arith.addf %1553, %1562 : vector<1x128xf32>
    %c2_i32_722 = arith.constant 2 : i32
    %1564 = arith.muli %c4_i32_715, %c2_i32_722 : i32
    %c1_i32_723 = arith.constant 1 : i32
    %1565 = arith.addi %1564, %c1_i32_723 : i32
    %1566 = arith.index_cast %1565 : i32 to index
    %1567 = memref.load %arg0[%1566] : memref<32xi32, #tpu.memory_space<smem>>
    %1568 = arith.index_cast %1567 : i32 to index
    %c0_724 = arith.constant 0 : index
    %1569 = vector.load %arg12[%1568, %c0_724] : memref<32x128xf32, #tpu.memory_space<vmem>>, vector<1x128xf32>
    %c0_i32_725 = arith.constant 0 : i32
    %1570 = arith.cmpi sgt, %1567, %c0_i32_725 : i32
    %cst_726 = arith.constant 0.000000e+00 : f32
    %1571 = vector.broadcast %cst_726 : f32 to vector<1x128xf32>
    %1572 = arith.select %1570, %1569, %1571 : vector<1x128xf32>
    %1573 = arith.addf %1563, %1572 : vector<1x128xf32>
    %1574 = arith.index_cast %c4_i32_715 : i32 to index
    %c0_727 = arith.constant 0 : index
    %1575 = vector.load %arg14[%1574, %c0_727] : memref<16x128xf32, #tpu.memory_space<vmem>>, vector<1x128xf32>
    tpu.vector_store %arg14[%1574, %c0_727], %1573 {strides = array<i32>} : memref<16x128xf32, #tpu.memory_space<vmem>>, vector<1x128xf32>,
    %c5_i32_728 = arith.constant 5 : i32
    %cst_729 = arith.constant 0.000000e+00 : f32
    %1576 = vector.broadcast %cst_729 : f32 to vector<1x128xf32>
    %c2_i32_730 = arith.constant 2 : i32
    %1577 = arith.muli %c5_i32_728, %c2_i32_730 : i32
    %c0_i32_731 = arith.constant 0 : i32
    %1578 = arith.addi %1577, %c0_i32_731 : i32
    %1579 = arith.index_cast %1578 : i32 to index
    %1580 = memref.load %arg0[%1579] : memref<32xi32, #tpu.memory_space<smem>>
    %1581 = arith.index_cast %1580 : i32 to index
    %c0_732 = arith.constant 0 : index
    %1582 = vector.load %arg12[%1581, %c0_732] : memref<32x128xf32, #tpu.memory_space<vmem>>, vector<1x128xf32>
    %c0_i32_733 = arith.constant 0 : i32
    %1583 = arith.cmpi sgt, %1580, %c0_i32_733 : i32
    %cst_734 = arith.constant 0.000000e+00 : f32
    %1584 = vector.broadcast %cst_734 : f32 to vector<1x128xf32>
    %1585 = arith.select %1583, %1582, %1584 : vector<1x128xf32>
    %1586 = arith.addf %1576, %1585 : vector<1x128xf32>
    %c2_i32_735 = arith.constant 2 : i32
    %1587 = arith.muli %c5_i32_728, %c2_i32_735 : i32
    %c1_i32_736 = arith.constant 1 : i32
    %1588 = arith.addi %1587, %c1_i32_736 : i32
    %1589 = arith.index_cast %1588 : i32 to index
    %1590 = memref.load %arg0[%1589] : memref<32xi32, #tpu.memory_space<smem>>
    %1591 = arith.index_cast %1590 : i32 to index
    %c0_737 = arith.constant 0 : index
    %1592 = vector.load %arg12[%1591, %c0_737] : memref<32x128xf32, #tpu.memory_space<vmem>>, vector<1x128xf32>
    %c0_i32_738 = arith.constant 0 : i32
    %1593 = arith.cmpi sgt, %1590, %c0_i32_738 : i32
    %cst_739 = arith.constant 0.000000e+00 : f32
    %1594 = vector.broadcast %cst_739 : f32 to vector<1x128xf32>
    %1595 = arith.select %1593, %1592, %1594 : vector<1x128xf32>
    %1596 = arith.addf %1586, %1595 : vector<1x128xf32>
    %1597 = arith.index_cast %c5_i32_728 : i32 to index
    %c0_740 = arith.constant 0 : index
    %1598 = vector.load %arg14[%1597, %c0_740] : memref<16x128xf32, #tpu.memory_space<vmem>>, vector<1x128xf32>
    tpu.vector_store %arg14[%1597, %c0_740], %1596 {strides = array<i32>} : memref<16x128xf32, #tpu.memory_space<vmem>>, vector<1x128xf32>,
    %c6_i32_741 = arith.constant 6 : i32
    %cst_742 = arith.constant 0.000000e+00 : f32
    %1599 = vector.broadcast %cst_742 : f32 to vector<1x128xf32>
    %c2_i32_743 = arith.constant 2 : i32
    %1600 = arith.muli %c6_i32_741, %c2_i32_743 : i32
    %c0_i32_744 = arith.constant 0 : i32
    %1601 = arith.addi %1600, %c0_i32_744 : i32
    %1602 = arith.index_cast %1601 : i32 to index
    %1603 = memref.load %arg0[%1602] : memref<32xi32, #tpu.memory_space<smem>>
    %1604 = arith.index_cast %1603 : i32 to index
    %c0_745 = arith.constant 0 : index
    %1605 = vector.load %arg12[%1604, %c0_745] : memref<32x128xf32, #tpu.memory_space<vmem>>, vector<1x128xf32>
    %c0_i32_746 = arith.constant 0 : i32
    %1606 = arith.cmpi sgt, %1603, %c0_i32_746 : i32
    %cst_747 = arith.constant 0.000000e+00 : f32
    %1607 = vector.broadcast %cst_747 : f32 to vector<1x128xf32>
    %1608 = arith.select %1606, %1605, %1607 : vector<1x128xf32>
    %1609 = arith.addf %1599, %1608 : vector<1x128xf32>
    %c2_i32_748 = arith.constant 2 : i32
    %1610 = arith.muli %c6_i32_741, %c2_i32_748 : i32
    %c1_i32_749 = arith.constant 1 : i32
    %1611 = arith.addi %1610, %c1_i32_749 : i32
    %1612 = arith.index_cast %1611 : i32 to index
    %1613 = memref.load %arg0[%1612] : memref<32xi32, #tpu.memory_space<smem>>
    %1614 = arith.index_cast %1613 : i32 to index
    %c0_750 = arith.constant 0 : index
    %1615 = vector.load %arg12[%1614, %c0_750] : memref<32x128xf32, #tpu.memory_space<vmem>>, vector<1x128xf32>
    %c0_i32_751 = arith.constant 0 : i32
    %1616 = arith.cmpi sgt, %1613, %c0_i32_751 : i32
    %cst_752 = arith.constant 0.000000e+00 : f32
    %1617 = vector.broadcast %cst_752 : f32 to vector<1x128xf32>
    %1618 = arith.select %1616, %1615, %1617 : vector<1x128xf32>
    %1619 = arith.addf %1609, %1618 : vector<1x128xf32>
    %1620 = arith.index_cast %c6_i32_741 : i32 to index
    %c0_753 = arith.constant 0 : index
    %1621 = vector.load %arg14[%1620, %c0_753] : memref<16x128xf32, #tpu.memory_space<vmem>>, vector<1x128xf32>
    tpu.vector_store %arg14[%1620, %c0_753], %1619 {strides = array<i32>} : memref<16x128xf32, #tpu.memory_space<vmem>>, vector<1x128xf32>,
    %c7_i32_754 = arith.constant 7 : i32
    %cst_755 = arith.constant 0.000000e+00 : f32
    %1622 = vector.broadcast %cst_755 : f32 to vector<1x128xf32>
    %c2_i32_756 = arith.constant 2 : i32
    %1623 = arith.muli %c7_i32_754, %c2_i32_756 : i32
    %c0_i32_757 = arith.constant 0 : i32
    %1624 = arith.addi %1623, %c0_i32_757 : i32
    %1625 = arith.index_cast %1624 : i32 to index
    %1626 = memref.load %arg0[%1625] : memref<32xi32, #tpu.memory_space<smem>>
    %1627 = arith.index_cast %1626 : i32 to index
    %c0_758 = arith.constant 0 : index
    %1628 = vector.load %arg12[%1627, %c0_758] : memref<32x128xf32, #tpu.memory_space<vmem>>, vector<1x128xf32>
    %c0_i32_759 = arith.constant 0 : i32
    %1629 = arith.cmpi sgt, %1626, %c0_i32_759 : i32
    %cst_760 = arith.constant 0.000000e+00 : f32
    %1630 = vector.broadcast %cst_760 : f32 to vector<1x128xf32>
    %1631 = arith.select %1629, %1628, %1630 : vector<1x128xf32>
    %1632 = arith.addf %1622, %1631 : vector<1x128xf32>
    %c2_i32_761 = arith.constant 2 : i32
    %1633 = arith.muli %c7_i32_754, %c2_i32_761 : i32
    %c1_i32_762 = arith.constant 1 : i32
    %1634 = arith.addi %1633, %c1_i32_762 : i32
    %1635 = arith.index_cast %1634 : i32 to index
    %1636 = memref.load %arg0[%1635] : memref<32xi32, #tpu.memory_space<smem>>
    %1637 = arith.index_cast %1636 : i32 to index
    %c0_763 = arith.constant 0 : index
    %1638 = vector.load %arg12[%1637, %c0_763] : memref<32x128xf32, #tpu.memory_space<vmem>>, vector<1x128xf32>
    %c0_i32_764 = arith.constant 0 : i32
    %1639 = arith.cmpi sgt, %1636, %c0_i32_764 : i32
    %cst_765 = arith.constant 0.000000e+00 : f32
    %1640 = vector.broadcast %cst_765 : f32 to vector<1x128xf32>
    %1641 = arith.select %1639, %1638, %1640 : vector<1x128xf32>
    %1642 = arith.addf %1632, %1641 : vector<1x128xf32>
    %1643 = arith.index_cast %c7_i32_754 : i32 to index
    %c0_766 = arith.constant 0 : index
    %1644 = vector.load %arg14[%1643, %c0_766] : memref<16x128xf32, #tpu.memory_space<vmem>>, vector<1x128xf32>
    tpu.vector_store %arg14[%1643, %c0_766], %1642 {strides = array<i32>} : memref<16x128xf32, #tpu.memory_space<vmem>>, vector<1x128xf32>,
    %c8_i32_767 = arith.constant 8 : i32
    %cst_768 = arith.constant 0.000000e+00 : f32
    %1645 = vector.broadcast %cst_768 : f32 to vector<1x128xf32>
    %c2_i32_769 = arith.constant 2 : i32
    %1646 = arith.muli %c8_i32_767, %c2_i32_769 : i32
    %c0_i32_770 = arith.constant 0 : i32
    %1647 = arith.addi %1646, %c0_i32_770 : i32
    %1648 = arith.index_cast %1647 : i32 to index
    %1649 = memref.load %arg0[%1648] : memref<32xi32, #tpu.memory_space<smem>>
    %1650 = arith.index_cast %1649 : i32 to index
    %c0_771 = arith.constant 0 : index
    %1651 = vector.load %arg12[%1650, %c0_771] : memref<32x128xf32, #tpu.memory_space<vmem>>, vector<1x128xf32>
    %c0_i32_772 = arith.constant 0 : i32
    %1652 = arith.cmpi sgt, %1649, %c0_i32_772 : i32
    %cst_773 = arith.constant 0.000000e+00 : f32
    %1653 = vector.broadcast %cst_773 : f32 to vector<1x128xf32>
    %1654 = arith.select %1652, %1651, %1653 : vector<1x128xf32>
    %1655 = arith.addf %1645, %1654 : vector<1x128xf32>
    %c2_i32_774 = arith.constant 2 : i32
    %1656 = arith.muli %c8_i32_767, %c2_i32_774 : i32
    %c1_i32_775 = arith.constant 1 : i32
    %1657 = arith.addi %1656, %c1_i32_775 : i32
    %1658 = arith.index_cast %1657 : i32 to index
    %1659 = memref.load %arg0[%1658] : memref<32xi32, #tpu.memory_space<smem>>
    %1660 = arith.index_cast %1659 : i32 to index
    %c0_776 = arith.constant 0 : index
    %1661 = vector.load %arg12[%1660, %c0_776] : memref<32x128xf32, #tpu.memory_space<vmem>>, vector<1x128xf32>
    %c0_i32_777 = arith.constant 0 : i32
    %1662 = arith.cmpi sgt, %1659, %c0_i32_777 : i32
    %cst_778 = arith.constant 0.000000e+00 : f32
    %1663 = vector.broadcast %cst_778 : f32 to vector<1x128xf32>
    %1664 = arith.select %1662, %1661, %1663 : vector<1x128xf32>
    %1665 = arith.addf %1655, %1664 : vector<1x128xf32>
    %1666 = arith.index_cast %c8_i32_767 : i32 to index
    %c0_779 = arith.constant 0 : index
    %1667 = vector.load %arg14[%1666, %c0_779] : memref<16x128xf32, #tpu.memory_space<vmem>>, vector<1x128xf32>
    tpu.vector_store %arg14[%1666, %c0_779], %1665 {strides = array<i32>} : memref<16x128xf32, #tpu.memory_space<vmem>>, vector<1x128xf32>,
    %c9_i32_780 = arith.constant 9 : i32
    %cst_781 = arith.constant 0.000000e+00 : f32
    %1668 = vector.broadcast %cst_781 : f32 to vector<1x128xf32>
    %c2_i32_782 = arith.constant 2 : i32
    %1669 = arith.muli %c9_i32_780, %c2_i32_782 : i32
    %c0_i32_783 = arith.constant 0 : i32
    %1670 = arith.addi %1669, %c0_i32_783 : i32
    %1671 = arith.index_cast %1670 : i32 to index
    %1672 = memref.load %arg0[%1671] : memref<32xi32, #tpu.memory_space<smem>>
    %1673 = arith.index_cast %1672 : i32 to index
    %c0_784 = arith.constant 0 : index
    %1674 = vector.load %arg12[%1673, %c0_784] : memref<32x128xf32, #tpu.memory_space<vmem>>, vector<1x128xf32>
    %c0_i32_785 = arith.constant 0 : i32
    %1675 = arith.cmpi sgt, %1672, %c0_i32_785 : i32
    %cst_786 = arith.constant 0.000000e+00 : f32
    %1676 = vector.broadcast %cst_786 : f32 to vector<1x128xf32>
    %1677 = arith.select %1675, %1674, %1676 : vector<1x128xf32>
    %1678 = arith.addf %1668, %1677 : vector<1x128xf32>
    %c2_i32_787 = arith.constant 2 : i32
    %1679 = arith.muli %c9_i32_780, %c2_i32_787 : i32
    %c1_i32_788 = arith.constant 1 : i32
    %1680 = arith.addi %1679, %c1_i32_788 : i32
    %1681 = arith.index_cast %1680 : i32 to index
    %1682 = memref.load %arg0[%1681] : memref<32xi32, #tpu.memory_space<smem>>
    %1683 = arith.index_cast %1682 : i32 to index
    %c0_789 = arith.constant 0 : index
    %1684 = vector.load %arg12[%1683, %c0_789] : memref<32x128xf32, #tpu.memory_space<vmem>>, vector<1x128xf32>
    %c0_i32_790 = arith.constant 0 : i32
    %1685 = arith.cmpi sgt, %1682, %c0_i32_790 : i32
    %cst_791 = arith.constant 0.000000e+00 : f32
    %1686 = vector.broadcast %cst_791 : f32 to vector<1x128xf32>
    %1687 = arith.select %1685, %1684, %1686 : vector<1x128xf32>
    %1688 = arith.addf %1678, %1687 : vector<1x128xf32>
    %1689 = arith.index_cast %c9_i32_780 : i32 to index
    %c0_792 = arith.constant 0 : index
    %1690 = vector.load %arg14[%1689, %c0_792] : memref<16x128xf32, #tpu.memory_space<vmem>>, vector<1x128xf32>
    tpu.vector_store %arg14[%1689, %c0_792], %1688 {strides = array<i32>} : memref<16x128xf32, #tpu.memory_space<vmem>>, vector<1x128xf32>,
    %c10_i32_793 = arith.constant 10 : i32
    %cst_794 = arith.constant 0.000000e+00 : f32
    %1691 = vector.broadcast %cst_794 : f32 to vector<1x128xf32>
    %c2_i32_795 = arith.constant 2 : i32
    %1692 = arith.muli %c10_i32_793, %c2_i32_795 : i32
    %c0_i32_796 = arith.constant 0 : i32
    %1693 = arith.addi %1692, %c0_i32_796 : i32
    %1694 = arith.index_cast %1693 : i32 to index
    %1695 = memref.load %arg0[%1694] : memref<32xi32, #tpu.memory_space<smem>>
    %1696 = arith.index_cast %1695 : i32 to index
    %c0_797 = arith.constant 0 : index
    %1697 = vector.load %arg12[%1696, %c0_797] : memref<32x128xf32, #tpu.memory_space<vmem>>, vector<1x128xf32>
    %c0_i32_798 = arith.constant 0 : i32
    %1698 = arith.cmpi sgt, %1695, %c0_i32_798 : i32
    %cst_799 = arith.constant 0.000000e+00 : f32
    %1699 = vector.broadcast %cst_799 : f32 to vector<1x128xf32>
    %1700 = arith.select %1698, %1697, %1699 : vector<1x128xf32>
    %1701 = arith.addf %1691, %1700 : vector<1x128xf32>
    %c2_i32_800 = arith.constant 2 : i32
    %1702 = arith.muli %c10_i32_793, %c2_i32_800 : i32
    %c1_i32_801 = arith.constant 1 : i32
    %1703 = arith.addi %1702, %c1_i32_801 : i32
    %1704 = arith.index_cast %1703 : i32 to index
    %1705 = memref.load %arg0[%1704] : memref<32xi32, #tpu.memory_space<smem>>
    %1706 = arith.index_cast %1705 : i32 to index
    %c0_802 = arith.constant 0 : index
    %1707 = vector.load %arg12[%1706, %c0_802] : memref<32x128xf32, #tpu.memory_space<vmem>>, vector<1x128xf32>
    %c0_i32_803 = arith.constant 0 : i32
    %1708 = arith.cmpi sgt, %1705, %c0_i32_803 : i32
    %cst_804 = arith.constant 0.000000e+00 : f32
    %1709 = vector.broadcast %cst_804 : f32 to vector<1x128xf32>
    %1710 = arith.select %1708, %1707, %1709 : vector<1x128xf32>
    %1711 = arith.addf %1701, %1710 : vector<1x128xf32>
    %1712 = arith.index_cast %c10_i32_793 : i32 to index
    %c0_805 = arith.constant 0 : index
    %1713 = vector.load %arg14[%1712, %c0_805] : memref<16x128xf32, #tpu.memory_space<vmem>>, vector<1x128xf32>
    tpu.vector_store %arg14[%1712, %c0_805], %1711 {strides = array<i32>} : memref<16x128xf32, #tpu.memory_space<vmem>>, vector<1x128xf32>,
    %c11_i32_806 = arith.constant 11 : i32
    %cst_807 = arith.constant 0.000000e+00 : f32
    %1714 = vector.broadcast %cst_807 : f32 to vector<1x128xf32>
    %c2_i32_808 = arith.constant 2 : i32
    %1715 = arith.muli %c11_i32_806, %c2_i32_808 : i32
    %c0_i32_809 = arith.constant 0 : i32
    %1716 = arith.addi %1715, %c0_i32_809 : i32
    %1717 = arith.index_cast %1716 : i32 to index
    %1718 = memref.load %arg0[%1717] : memref<32xi32, #tpu.memory_space<smem>>
    %1719 = arith.index_cast %1718 : i32 to index
    %c0_810 = arith.constant 0 : index
    %1720 = vector.load %arg12[%1719, %c0_810] : memref<32x128xf32, #tpu.memory_space<vmem>>, vector<1x128xf32>
    %c0_i32_811 = arith.constant 0 : i32
    %1721 = arith.cmpi sgt, %1718, %c0_i32_811 : i32
    %cst_812 = arith.constant 0.000000e+00 : f32
    %1722 = vector.broadcast %cst_812 : f32 to vector<1x128xf32>
    %1723 = arith.select %1721, %1720, %1722 : vector<1x128xf32>
    %1724 = arith.addf %1714, %1723 : vector<1x128xf32>
    %c2_i32_813 = arith.constant 2 : i32
    %1725 = arith.muli %c11_i32_806, %c2_i32_813 : i32
    %c1_i32_814 = arith.constant 1 : i32
    %1726 = arith.addi %1725, %c1_i32_814 : i32
    %1727 = arith.index_cast %1726 : i32 to index
    %1728 = memref.load %arg0[%1727] : memref<32xi32, #tpu.memory_space<smem>>
    %1729 = arith.index_cast %1728 : i32 to index
    %c0_815 = arith.constant 0 : index
    %1730 = vector.load %arg12[%1729, %c0_815] : memref<32x128xf32, #tpu.memory_space<vmem>>, vector<1x128xf32>
    %c0_i32_816 = arith.constant 0 : i32
    %1731 = arith.cmpi sgt, %1728, %c0_i32_816 : i32
    %cst_817 = arith.constant 0.000000e+00 : f32
    %1732 = vector.broadcast %cst_817 : f32 to vector<1x128xf32>
    %1733 = arith.select %1731, %1730, %1732 : vector<1x128xf32>
    %1734 = arith.addf %1724, %1733 : vector<1x128xf32>
    %1735 = arith.index_cast %c11_i32_806 : i32 to index
    %c0_818 = arith.constant 0 : index
    %1736 = vector.load %arg14[%1735, %c0_818] : memref<16x128xf32, #tpu.memory_space<vmem>>, vector<1x128xf32>
    tpu.vector_store %arg14[%1735, %c0_818], %1734 {strides = array<i32>} : memref<16x128xf32, #tpu.memory_space<vmem>>, vector<1x128xf32>,
    %c12_i32_819 = arith.constant 12 : i32
    %cst_820 = arith.constant 0.000000e+00 : f32
    %1737 = vector.broadcast %cst_820 : f32 to vector<1x128xf32>
    %c2_i32_821 = arith.constant 2 : i32
    %1738 = arith.muli %c12_i32_819, %c2_i32_821 : i32
    %c0_i32_822 = arith.constant 0 : i32
    %1739 = arith.addi %1738, %c0_i32_822 : i32
    %1740 = arith.index_cast %1739 : i32 to index
    %1741 = memref.load %arg0[%1740] : memref<32xi32, #tpu.memory_space<smem>>
    %1742 = arith.index_cast %1741 : i32 to index
    %c0_823 = arith.constant 0 : index
    %1743 = vector.load %arg12[%1742, %c0_823] : memref<32x128xf32, #tpu.memory_space<vmem>>, vector<1x128xf32>
    %c0_i32_824 = arith.constant 0 : i32
    %1744 = arith.cmpi sgt, %1741, %c0_i32_824 : i32
    %cst_825 = arith.constant 0.000000e+00 : f32
    %1745 = vector.broadcast %cst_825 : f32 to vector<1x128xf32>
    %1746 = arith.select %1744, %1743, %1745 : vector<1x128xf32>
    %1747 = arith.addf %1737, %1746 : vector<1x128xf32>
    %c2_i32_826 = arith.constant 2 : i32
    %1748 = arith.muli %c12_i32_819, %c2_i32_826 : i32
    %c1_i32_827 = arith.constant 1 : i32
    %1749 = arith.addi %1748, %c1_i32_827 : i32
    %1750 = arith.index_cast %1749 : i32 to index
    %1751 = memref.load %arg0[%1750] : memref<32xi32, #tpu.memory_space<smem>>
    %1752 = arith.index_cast %1751 : i32 to index
    %c0_828 = arith.constant 0 : index
    %1753 = vector.load %arg12[%1752, %c0_828] : memref<32x128xf32, #tpu.memory_space<vmem>>, vector<1x128xf32>
    %c0_i32_829 = arith.constant 0 : i32
    %1754 = arith.cmpi sgt, %1751, %c0_i32_829 : i32
    %cst_830 = arith.constant 0.000000e+00 : f32
    %1755 = vector.broadcast %cst_830 : f32 to vector<1x128xf32>
    %1756 = arith.select %1754, %1753, %1755 : vector<1x128xf32>
    %1757 = arith.addf %1747, %1756 : vector<1x128xf32>
    %1758 = arith.index_cast %c12_i32_819 : i32 to index
    %c0_831 = arith.constant 0 : index
    %1759 = vector.load %arg14[%1758, %c0_831] : memref<16x128xf32, #tpu.memory_space<vmem>>, vector<1x128xf32>
    tpu.vector_store %arg14[%1758, %c0_831], %1757 {strides = array<i32>} : memref<16x128xf32, #tpu.memory_space<vmem>>, vector<1x128xf32>,
    %c13_i32_832 = arith.constant 13 : i32
    %cst_833 = arith.constant 0.000000e+00 : f32
    %1760 = vector.broadcast %cst_833 : f32 to vector<1x128xf32>
    %c2_i32_834 = arith.constant 2 : i32
    %1761 = arith.muli %c13_i32_832, %c2_i32_834 : i32
    %c0_i32_835 = arith.constant 0 : i32
    %1762 = arith.addi %1761, %c0_i32_835 : i32
    %1763 = arith.index_cast %1762 : i32 to index
    %1764 = memref.load %arg0[%1763] : memref<32xi32, #tpu.memory_space<smem>>
    %1765 = arith.index_cast %1764 : i32 to index
    %c0_836 = arith.constant 0 : index
    %1766 = vector.load %arg12[%1765, %c0_836] : memref<32x128xf32, #tpu.memory_space<vmem>>, vector<1x128xf32>
    %c0_i32_837 = arith.constant 0 : i32
    %1767 = arith.cmpi sgt, %1764, %c0_i32_837 : i32
    %cst_838 = arith.constant 0.000000e+00 : f32
    %1768 = vector.broadcast %cst_838 : f32 to vector<1x128xf32>
    %1769 = arith.select %1767, %1766, %1768 : vector<1x128xf32>
    %1770 = arith.addf %1760, %1769 : vector<1x128xf32>
    %c2_i32_839 = arith.constant 2 : i32
    %1771 = arith.muli %c13_i32_832, %c2_i32_839 : i32
    %c1_i32_840 = arith.constant 1 : i32
    %1772 = arith.addi %1771, %c1_i32_840 : i32
    %1773 = arith.index_cast %1772 : i32 to index
    %1774 = memref.load %arg0[%1773] : memref<32xi32, #tpu.memory_space<smem>>
    %1775 = arith.index_cast %1774 : i32 to index
    %c0_841 = arith.constant 0 : index
    %1776 = vector.load %arg12[%1775, %c0_841] : memref<32x128xf32, #tpu.memory_space<vmem>>, vector<1x128xf32>
    %c0_i32_842 = arith.constant 0 : i32
    %1777 = arith.cmpi sgt, %1774, %c0_i32_842 : i32
    %cst_843 = arith.constant 0.000000e+00 : f32
    %1778 = vector.broadcast %cst_843 : f32 to vector<1x128xf32>
    %1779 = arith.select %1777, %1776, %1778 : vector<1x128xf32>
    %1780 = arith.addf %1770, %1779 : vector<1x128xf32>
    %1781 = arith.index_cast %c13_i32_832 : i32 to index
    %c0_844 = arith.constant 0 : index
    %1782 = vector.load %arg14[%1781, %c0_844] : memref<16x128xf32, #tpu.memory_space<vmem>>, vector<1x128xf32>
    tpu.vector_store %arg14[%1781, %c0_844], %1780 {strides = array<i32>} : memref<16x128xf32, #tpu.memory_space<vmem>>, vector<1x128xf32>,
    %c14_i32_845 = arith.constant 14 : i32
    %cst_846 = arith.constant 0.000000e+00 : f32
    %1783 = vector.broadcast %cst_846 : f32 to vector<1x128xf32>
    %c2_i32_847 = arith.constant 2 : i32
    %1784 = arith.muli %c14_i32_845, %c2_i32_847 : i32
    %c0_i32_848 = arith.constant 0 : i32
    %1785 = arith.addi %1784, %c0_i32_848 : i32
    %1786 = arith.index_cast %1785 : i32 to index
    %1787 = memref.load %arg0[%1786] : memref<32xi32, #tpu.memory_space<smem>>
    %1788 = arith.index_cast %1787 : i32 to index
    %c0_849 = arith.constant 0 : index
    %1789 = vector.load %arg12[%1788, %c0_849] : memref<32x128xf32, #tpu.memory_space<vmem>>, vector<1x128xf32>
    %c0_i32_850 = arith.constant 0 : i32
    %1790 = arith.cmpi sgt, %1787, %c0_i32_850 : i32
    %cst_851 = arith.constant 0.000000e+00 : f32
    %1791 = vector.broadcast %cst_851 : f32 to vector<1x128xf32>
    %1792 = arith.select %1790, %1789, %1791 : vector<1x128xf32>
    %1793 = arith.addf %1783, %1792 : vector<1x128xf32>
    %c2_i32_852 = arith.constant 2 : i32
    %1794 = arith.muli %c14_i32_845, %c2_i32_852 : i32
    %c1_i32_853 = arith.constant 1 : i32
    %1795 = arith.addi %1794, %c1_i32_853 : i32
    %1796 = arith.index_cast %1795 : i32 to index
    %1797 = memref.load %arg0[%1796] : memref<32xi32, #tpu.memory_space<smem>>
    %1798 = arith.index_cast %1797 : i32 to index
    %c0_854 = arith.constant 0 : index
    %1799 = vector.load %arg12[%1798, %c0_854] : memref<32x128xf32, #tpu.memory_space<vmem>>, vector<1x128xf32>
    %c0_i32_855 = arith.constant 0 : i32
    %1800 = arith.cmpi sgt, %1797, %c0_i32_855 : i32
    %cst_856 = arith.constant 0.000000e+00 : f32
    %1801 = vector.broadcast %cst_856 : f32 to vector<1x128xf32>
    %1802 = arith.select %1800, %1799, %1801 : vector<1x128xf32>
    %1803 = arith.addf %1793, %1802 : vector<1x128xf32>
    %1804 = arith.index_cast %c14_i32_845 : i32 to index
    %c0_857 = arith.constant 0 : index
    %1805 = vector.load %arg14[%1804, %c0_857] : memref<16x128xf32, #tpu.memory_space<vmem>>, vector<1x128xf32>
    tpu.vector_store %arg14[%1804, %c0_857], %1803 {strides = array<i32>} : memref<16x128xf32, #tpu.memory_space<vmem>>, vector<1x128xf32>,
    %c15_i32_858 = arith.constant 15 : i32
    %cst_859 = arith.constant 0.000000e+00 : f32
    %1806 = vector.broadcast %cst_859 : f32 to vector<1x128xf32>
    %c2_i32_860 = arith.constant 2 : i32
    %1807 = arith.muli %c15_i32_858, %c2_i32_860 : i32
    %c0_i32_861 = arith.constant 0 : i32
    %1808 = arith.addi %1807, %c0_i32_861 : i32
    %1809 = arith.index_cast %1808 : i32 to index
    %1810 = memref.load %arg0[%1809] : memref<32xi32, #tpu.memory_space<smem>>
    %1811 = arith.index_cast %1810 : i32 to index
    %c0_862 = arith.constant 0 : index
    %1812 = vector.load %arg12[%1811, %c0_862] : memref<32x128xf32, #tpu.memory_space<vmem>>, vector<1x128xf32>
    %c0_i32_863 = arith.constant 0 : i32
    %1813 = arith.cmpi sgt, %1810, %c0_i32_863 : i32
    %cst_864 = arith.constant 0.000000e+00 : f32
    %1814 = vector.broadcast %cst_864 : f32 to vector<1x128xf32>
    %1815 = arith.select %1813, %1812, %1814 : vector<1x128xf32>
    %1816 = arith.addf %1806, %1815 : vector<1x128xf32>
    %c2_i32_865 = arith.constant 2 : i32
    %1817 = arith.muli %c15_i32_858, %c2_i32_865 : i32
    %c1_i32_866 = arith.constant 1 : i32
    %1818 = arith.addi %1817, %c1_i32_866 : i32
    %1819 = arith.index_cast %1818 : i32 to index
    %1820 = memref.load %arg0[%1819] : memref<32xi32, #tpu.memory_space<smem>>
    %1821 = arith.index_cast %1820 : i32 to index
    %c0_867 = arith.constant 0 : index
    %1822 = vector.load %arg12[%1821, %c0_867] : memref<32x128xf32, #tpu.memory_space<vmem>>, vector<1x128xf32>
    %c0_i32_868 = arith.constant 0 : i32
    %1823 = arith.cmpi sgt, %1820, %c0_i32_868 : i32
    %cst_869 = arith.constant 0.000000e+00 : f32
    %1824 = vector.broadcast %cst_869 : f32 to vector<1x128xf32>
    %1825 = arith.select %1823, %1822, %1824 : vector<1x128xf32>
    %1826 = arith.addf %1816, %1825 : vector<1x128xf32>
    %1827 = arith.index_cast %c15_i32_858 : i32 to index
    %c0_870 = arith.constant 0 : index
    %1828 = vector.load %arg14[%1827, %c0_870] : memref<16x128xf32, #tpu.memory_space<vmem>>, vector<1x128xf32>
    tpu.vector_store %arg14[%1827, %c0_870], %1826 {strides = array<i32>} : memref<16x128xf32, #tpu.memory_space<vmem>>, vector<1x128xf32>,
    %c16_i32_871 = arith.constant 16 : i32
    %c0_872 = arith.constant 0 : index
    %c0_873 = arith.constant 0 : index
    %1829 = vector.load %arg3[%c0_872, %c0_873] : memref<16x128xbf16, #tpu.memory_space<vmem>>, vector<16x128xbf16>
    %c0_874 = arith.constant 0 : index
    %c0_875 = arith.constant 0 : index
    %1830 = vector.load %arg7[%c0_874, %c0_875] : memref<128x128xbf16, #tpu.memory_space<vmem>>, vector<128x128xbf16>
    %cst_876 = arith.constant dense<0.000000e+00> : vector<16x128xf32>
    %1831 = tpu.matmul %1829, %1830, %cst_876 {dimension_numbers = #tpu.dot_dimension_numbers<[1], [0], [0], [1], [0, 0, 1, 1], [], []>} : vector<16x128xbf16>, vector<128x128xbf16>, vector<16x128xf32> -> vector<16x128xf32>
    %c0_877 = arith.constant 0 : index
    %c0_878 = arith.constant 0 : index
    %1832 = vector.load %arg14[%c0_877, %c0_878] : memref<16x128xf32, #tpu.memory_space<vmem>>, vector<16x128xf32>
    %1833 = arith.truncf %1832 : vector<16x128xf32> to vector<16x128xbf16>
    %c0_879 = arith.constant 0 : index
    %c0_880 = arith.constant 0 : index
    %1834 = vector.load %arg8[%c0_879, %c0_880] : memref<128x128xbf16, #tpu.memory_space<vmem>>, vector<128x128xbf16>
    %cst_881 = arith.constant dense<0.000000e+00> : vector<16x128xf32>
    %1835 = tpu.matmul %1833, %1834, %cst_881 {dimension_numbers = #tpu.dot_dimension_numbers<[1], [0], [0], [1], [0, 0, 1, 1], [], []>} : vector<16x128xbf16>, vector<128x128xbf16>, vector<16x128xf32> -> vector<16x128xf32>
    %1836 = arith.addf %1831, %1835 : vector<16x128xf32>
    %c0_882 = arith.constant 0 : index
    %c0_883 = arith.constant 0 : index
    %1837 = vector.load %arg9[%c0_882, %c0_883] : memref<1x128xf32, #tpu.memory_space<vmem>>, vector<1x128xf32>
    %1838 = vector.broadcast %1837 : vector<1x128xf32> to vector<16x128xf32>
    %1839 = arith.addf %1836, %1838 : vector<16x128xf32>
    %c0_884 = arith.constant 0 : index
    %c0_885 = arith.constant 0 : index
    %1840 = vector.load %arg10[%c0_884, %c0_885] : memref<8x16xf32, #tpu.memory_space<vmem>>, vector<8x16xf32>
    %cst_886 = arith.constant dense<0.000000e+00> : vector<8x128xf32>
    %1841 = tpu.matmul %1840, %1839, %cst_886 {dimension_numbers = #tpu.dot_dimension_numbers<[1], [0], [0], [1], [0, 0, 1, 1], [], []>} : vector<8x16xf32>, vector<16x128xf32>, vector<8x128xf32> -> vector<8x128xf32>
    %c0_887 = arith.constant 0 : index
    %c0_888 = arith.constant 0 : index
    %1842 = vector.load %arg11[%c0_887, %c0_888] : memref<8x128xf32, #tpu.memory_space<vmem>>, vector<8x128xf32>
    tpu.vector_store %arg11[%c0_887, %c0_888], %1841 {strides = array<i32>} : memref<8x128xf32, #tpu.memory_space<vmem>>, vector<8x128xf32>,
    return
  }
}

</mosaic_0001>

<llo_original>
// kernel: _mpn_pallas.1
$region0: #{_mpn_pallas.1}
  #allocation0 [shape = 'u32[]', space=smem, size = 0x4, offset = 0x4, fixed_abs, tag = 'smem constant byte address 0x4 - core index']
  #allocation1 [shape = 'u32[72,128]{1,0:T(1,128)}', space=vmem, size = 0x9000, scoped, tag = 'internal scratch']
  #allocation2 [shape = 'f32[32,128]{1,0:T(8,128)}', space=vmem, size = 0x4000, scoped, tag = 'scratch operand']
  #allocation3 [shape = 'f32[32,128]{1,0:T(8,128)}', space=vmem, size = 0x4000, scoped, tag = 'scratch operand']
  #allocation4 [shape = 'f32[16,128]{1,0:T(8,128)}', space=vmem, size = 0x2000, scoped, tag = 'scratch operand']
  %s0 = inlined_call_operand.hbm [shape: s32[32], index: 0, kind: input, shape index: {}]
  %s1 = inlined_call_operand.hbm [shape: s32[32], index: 1, kind: input, shape index: {}]
  %s2 = inlined_call_operand.vmem [shape: s32[32], index: 2, kind: input, shape index: {}]
  %s3 = inlined_call_operand.hbm [shape: bf16[16,128], index: 3, kind: input, shape index: {}]
  %s4 = inlined_call_operand.hbm [shape: bf16[32,128], index: 4, kind: input, shape index: {}]
  %s5 = inlined_call_operand.hbm [shape: bf16[128,128], index: 5, kind: input, shape index: {}]
  %s6 = inlined_call_operand.hbm [shape: bf16[128,128], index: 6, kind: input, shape index: {}]
  %s7 = inlined_call_operand.hbm [shape: bf16[128,128], index: 7, kind: input, shape index: {}]
  %s8 = inlined_call_operand.hbm [shape: bf16[128,128], index: 8, kind: input, shape index: {}]
  %s9 = inlined_call_operand.hbm [shape: f32[1,128], index: 9, kind: input, shape index: {}]
  %s10 = inlined_call_operand.vmem [shape: f32[8,16], index: 10, kind: input, shape index: {}]
  %s11 = inlined_call_operand.hbm [shape: f32[8,128], index: 11, kind: output, shape index: {}]
  %s12 = sld [smem:[#allocation0]]
  $region94: #{_mpn_pallas.1} parent=0
    _
  %s14 = ssub.s32 1, %s12
  %s15 = scalar_select 0, %s14, %s12
  $region1: #{_mpn_pallas.1} parent=0
    #allocation5 [shape = 'u8[512]{0}', space=smem, size = 0x200, scoped, tag = 'input window, operand 0, single buffered']
    #allocation6 [shape = 's32[1]{0}', space=sflag, size = 0x4, scoped, tag = 'scoped memory for _mpn_pallas.1']
    #allocation7 [shape = 's32[1]{0}', space=sflag, size = 0x4, scoped, tag = 'scoped memory for _mpn_pallas.1']
    #allocation8 [shape = 's32[1]{0}', space=sflag, size = 0x4, scoped, tag = 'scoped memory for _mpn_pallas.1']
    #allocation9 [shape = 's32[1]{0}', space=sflag, size = 0x4, scoped, tag = 'scoped memory for _mpn_pallas.1']
    #allocation10 [shape = 'u8[512]{0}', space=smem, size = 0x200, scoped, tag = 'input window, operand 1, single buffered']
    #allocation11 [shape = 's32[1]{0}', space=sflag, size = 0x4, scoped, tag = 'scoped memory for _mpn_pallas.1']
    #allocation12 [shape = 'u8[512]{0}', space=smem, size = 0x200, scoped, tag = 'input window, operand 2, single buffered']
    #allocation13 [shape = 'u8[4096]{0}', space=vmem, size = 0x1000, scoped, tag = 'input window, operand 3, single buffered']
    #allocation14 [shape = 'u8[8192]{0}', space=vmem, size = 0x2000, scoped, tag = 'input window, operand 4, single buffered']
    #allocation15 [shape = 's32[1]{0}', space=sflag, size = 0x4, scoped, tag = 'scoped memory for _mpn_pallas.1']
    #allocation16 [shape = 'u8[32768]{0}', space=vmem, size = 0x8000, scoped, tag = 'input window, operand 5, single buffered']
    #allocation17 [shape = 'u8[32768]{0}', space=vmem, size = 0x8000, scoped, tag = 'input window, operand 6, single buffered']
    #allocation18 [shape = 's32[1]{0}', space=sflag, size = 0x4, scoped, tag = 'scoped memory for _mpn_pallas.1']
    #allocation19 [shape = 'u8[32768]{0}', space=vmem, size = 0x8000, scoped, tag = 'input window, operand 7, single buffered']
    #allocation20 [shape = 'u8[32768]{0}', space=vmem, size = 0x8000, scoped, tag = 'input window, operand 8, single buffered']
    #allocation21 [shape = 's32[1]{0}', space=sflag, size = 0x4, scoped, tag = 'scoped memory for _mpn_pallas.1']
    #allocation22 [shape = 'u8[512]{0}', space=vmem, size = 0x400, scoped, tag = 'input window, operand 9, single buffered']
    #allocation23 [shape = 'u8[4096]{0}', space=vmem, size = 0x1000, scoped, tag = 'output window, operand 0, single buffered']
    %16 = vsyncpa [#allocation8], 0
    %17 = vsyncpa [#allocation11], 0
    %18 = vsyncpa [#allocation9], 0
    %19 = vsyncpa [#allocation6], 0
    %20 = vsyncpa [#allocation15], 0
    %21 = vsyncpa [#allocation18], 0
    %22 = vsyncpa [#allocation21], 0
    %23 = vsyncpa [#allocation7], 0
    // Predicated region
    $region2: #{_mpn_pallas.1} parent=1 // pred_check
      _
    $region3: #{_mpn_pallas.1} parent=1 // pred_check_branch
      %25 = sbr.rel (0) target = $region5
    $region4: #{_mpn_pallas.1} parent=1 // pred_region
      %27 = vsyncadd [#allocation8], 0
      %s29 = sshll.u32 %s0, 4
      %s30 = int_to_ptr.hbm [resolvable:$true] %s29
      %32 = dma.hbm_to_smem %s30, 16, [#allocation5], [#allocation8]
    $region5: #{_mpn_pallas.1} parent=1 // pred_fallthru
      _
    // Predicated region
    $region6: #{_mpn_pallas.1} parent=1 // pred_check
      _
    $region7: #{_mpn_pallas.1} parent=1 // pred_check_branch
      %34 = sbr.rel (0) target = $region9
    $region8: #{_mpn_pallas.1} parent=1 // pred_region
      %36 = vsyncadd [#allocation11], 0
      %s38 = sshll.u32 %s1, 4
      %s39 = int_to_ptr.hbm [resolvable:$true] %s38
      %41 = dma.hbm_to_smem %s39, 16, [#allocation10], [#allocation11]
    $region9: #{_mpn_pallas.1} parent=1 // pred_fallthru
      _
    // Predicated region
    $region10: #{_mpn_pallas.1} parent=1 // pred_check
      _
    $region11: #{_mpn_pallas.1} parent=1 // pred_check_branch
      %43 = sbr.rel (0) target = $region13
    $region12: #{_mpn_pallas.1} parent=1 // pred_region
      %45 = vsyncadd [#allocation9], 0
      %s47 = sshll.u32 %s2, 4
      %s48 = int_to_ptr.vmem [resolvable:$true] %s47
      %50 = dma.vmem_to_smem %s48, 16, [#allocation12], [#allocation9]
    $region13: #{_mpn_pallas.1} parent=1 // pred_fallthru
      _
    // Predicated region
    $region14: #{_mpn_pallas.1} parent=1 // pred_check
      _
    $region15: #{_mpn_pallas.1} parent=1 // pred_check_branch
      %52 = sbr.rel (0) target = $region17
    $region16: #{_mpn_pallas.1} parent=1 // pred_region
      %54 = vsyncadd [#allocation6], 0
      %s55 = sshll.u32 %s3, 4
      %s56 = int_to_ptr.hbm [resolvable:$true] %s55
      %s57 = sshll.u32 [#allocation13], 4
      %s58 = int_to_ptr.vmem [resolvable:$true] %s57
      %63 = dma.hbm_to_vmem [thread:$0]  %s56, 128, %s58, [#allocation6], 64, 64, 4
    $region17: #{_mpn_pallas.1} parent=1 // pred_fallthru
      _
    // Predicated region
    $region18: #{_mpn_pallas.1} parent=1 // pred_check
      _
    $region19: #{_mpn_pallas.1} parent=1 // pred_check_branch
      %65 = sbr.rel (0) target = $region21
    $region20: #{_mpn_pallas.1} parent=1 // pred_region
      %67 = vsyncadd [#allocation15], 0
      %s68 = sshll.u32 %s4, 4
      %s69 = int_to_ptr.hbm [resolvable:$true] %s68
      %s70 = sshll.u32 [#allocation14], 4
      %s71 = int_to_ptr.vmem [resolvable:$true] %s70
      %76 = dma.hbm_to_vmem [thread:$0]  %s69, 256, %s71, [#allocation15], 64, 64, 4
    $region21: #{_mpn_pallas.1} parent=1 // pred_fallthru
      _
    // Predicated region
    $region22: #{_mpn_pallas.1} parent=1 // pred_check
      _
    $region23: #{_mpn_pallas.1} parent=1 // pred_check_branch
      %78 = sbr.rel (0) target = $region25
    $region24: #{_mpn_pallas.1} parent=1 // pred_region
      %80 = vsyncadd [#allocation15], 0
      %s81 = sshll.u32 %s5, 4
      %s82 = int_to_ptr.hbm [resolvable:$true] %s81
      %s83 = sshll.u32 [#allocation16], 4
      %s84 = int_to_ptr.vmem [resolvable:$true] %s83
      %89 = dma.hbm_to_vmem [thread:$0]  %s82, 1024, %s84, [#allocation15], 64, 64, 4
    $region25: #{_mpn_pallas.1} parent=1 // pred_fallthru
      _
    // Predicated region
    $region26: #{_mpn_pallas.1} parent=1 // pred_check
      _
    $region27: #{_mpn_pallas.1} parent=1 // pred_check_branch
      %91 = sbr.rel (0) target = $region29
    $region28: #{_mpn_pallas.1} parent=1 // pred_region
      %93 = vsyncadd [#allocation18], 0
      %s94 = sshll.u32 %s6, 4
      %s95 = int_to_ptr.hbm [resolvable:$true] %s94
      %s96 = sshll.u32 [#allocation17], 4
      %s97 = int_to_ptr.vmem [resolvable:$true] %s96
      %102 = dma.hbm_to_vmem [thread:$0]  %s95, 1024, %s97, [#allocation18], 64, 64, 4
    $region29: #{_mpn_pallas.1} parent=1 // pred_fallthru
      _
    // Predicated region
    $region30: #{_mpn_pallas.1} parent=1 // pred_check
      _
    $region31: #{_mpn_pallas.1} parent=1 // pred_check_branch
      %104 = sbr.rel (0) target = $region33
    $region32: #{_mpn_pallas.1} parent=1 // pred_region
      %106 = vsyncadd [#allocation18], 0
      %s107 = sshll.u32 %s7, 4
      %s108 = int_to_ptr.hbm [resolvable:$true] %s107
      %s109 = sshll.u32 [#allocation19], 4
      %s110 = int_to_ptr.vmem [resolvable:$true] %s109
      %115 = dma.hbm_to_vmem [thread:$0]  %s108, 1024, %s110, [#allocation18], 64, 64, 4
    $region33: #{_mpn_pallas.1} parent=1 // pred_fallthru
      _
    // Predicated region
    $region34: #{_mpn_pallas.1} parent=1 // pred_check
      _
    $region35: #{_mpn_pallas.1} parent=1 // pred_check_branch
      %117 = sbr.rel (0) target = $region37
    $region36: #{_mpn_pallas.1} parent=1 // pred_region
      %119 = vsyncadd [#allocation21], 0
      %s120 = sshll.u32 %s8, 4
      %s121 = int_to_ptr.hbm [resolvable:$true] %s120
      %s122 = sshll.u32 [#allocation20], 4
      %s123 = int_to_ptr.vmem [resolvable:$true] %s122
      %128 = dma.hbm_to_vmem [thread:$0]  %s121, 1024, %s123, [#allocation21], 64, 64, 4
    $region37: #{_mpn_pallas.1} parent=1 // pred_fallthru
      _
    // Predicated region
    $region38: #{_mpn_pallas.1} parent=1 // pred_check
      _
    $region39: #{_mpn_pallas.1} parent=1 // pred_check_branch
      %130 = sbr.rel (0) target = $region41
    $region40: #{_mpn_pallas.1} parent=1 // pred_region
      %132 = vsyncadd [#allocation21], 0
      %s134 = sshll.u32 %s9, 4
      %s135 = int_to_ptr.hbm [resolvable:$true] %s134
      %s136 = sshll.u32 [#allocation22], 4
      %s137 = int_to_ptr.vmem [resolvable:$true] %s136
      %139 = dma.hbm_to_vmem [thread:$0]  %s135, 16, %s137, [#allocation21]
    $region41: #{_mpn_pallas.1} parent=1 // pred_fallthru
      _
    // Predicated region
    $region42: #{_mpn_pallas.1} parent=1 // pred_check
      _
    $region43: #{_mpn_pallas.1} parent=1 // pred_check_branch
      %141 = sbr.rel (0) target = $region45
    $region44: #{_mpn_pallas.1} parent=1 // pred_region
      _
    $region45: #{_mpn_pallas.1} parent=1 // pred_fallthru
      _
    // Predicated region
    $region46: #{_mpn_pallas.1} parent=1 // pred_check
      _
    $region47: #{_mpn_pallas.1} parent=1 // pred_check_branch
      %143 = sbr.rel (0) target = $region49
    $region48: #{_mpn_pallas.1} parent=1 // pred_region
      %145 = dma.done [#allocation8], 16
    $region49: #{_mpn_pallas.1} parent=1 // pred_fallthru
      _
    // Predicated region
    $region50: #{_mpn_pallas.1} parent=1 // pred_check
      _
    $region51: #{_mpn_pallas.1} parent=1 // pred_check_branch
      %147 = sbr.rel (0) target = $region53
    $region52: #{_mpn_pallas.1} parent=1 // pred_region
      %149 = dma.done [#allocation11], 16
    $region53: #{_mpn_pallas.1} parent=1 // pred_fallthru
      _
    // Predicated region
    $region54: #{_mpn_pallas.1} parent=1 // pred_check
      _
    $region55: #{_mpn_pallas.1} parent=1 // pred_check_branch
      %151 = sbr.rel (0) target = $region57
    $region56: #{_mpn_pallas.1} parent=1 // pred_region
      %153 = dma.done [#allocation9], 16
    $region57: #{_mpn_pallas.1} parent=1 // pred_fallthru
      _
    // Predicated region
    $region58: #{_mpn_pallas.1} parent=1 // pred_check
      _
    $region59: #{_mpn_pallas.1} parent=1 // pred_check_branch
      %155 = sbr.rel (0) target = $region61
    $region60: #{_mpn_pallas.1} parent=1 // pred_region
      %157 = dma.done [#allocation6], 128
    $region61: #{_mpn_pallas.1} parent=1 // pred_fallthru
      _
    // Predicated region
    $region62: #{_mpn_pallas.1} parent=1 // pred_check
      _
    $region63: #{_mpn_pallas.1} parent=1 // pred_check_branch
      %159 = sbr.rel (0) target = $region65
    $region64: #{_mpn_pallas.1} parent=1 // pred_region
      %161 = dma.done [#allocation15], 256
    $region65: #{_mpn_pallas.1} parent=1 // pred_fallthru
      _
    // Predicated region
    $region66: #{_mpn_pallas.1} parent=1 // pred_check
      _
    $region67: #{_mpn_pallas.1} parent=1 // pred_check_branch
      %163 = sbr.rel (0) target = $region69
    $region68: #{_mpn_pallas.1} parent=1 // pred_region
      %165 = dma.done [#allocation15], 1024
    $region69: #{_mpn_pallas.1} parent=1 // pred_fallthru
      _
    // Predicated region
    $region70: #{_mpn_pallas.1} parent=1 // pred_check
      _
    $region71: #{_mpn_pallas.1} parent=1 // pred_check_branch
      %167 = sbr.rel (0) target = $region73
    $region72: #{_mpn_pallas.1} parent=1 // pred_region
      %169 = dma.done [#allocation18], 1024
    $region73: #{_mpn_pallas.1} parent=1 // pred_fallthru
      _
    // Predicated region
    $region74: #{_mpn_pallas.1} parent=1 // pred_check
      _
    $region75: #{_mpn_pallas.1} parent=1 // pred_check_branch
      %171 = sbr.rel (0) target = $region77
    $region76: #{_mpn_pallas.1} parent=1 // pred_region
      %173 = dma.done [#allocation18], 1024
    $region77: #{_mpn_pallas.1} parent=1 // pred_fallthru
      _
    // Predicated region
    $region78: #{_mpn_pallas.1} parent=1 // pred_check
      _
    $region79: #{_mpn_pallas.1} parent=1 // pred_check_branch
      %175 = sbr.rel (0) target = $region81
    $region80: #{_mpn_pallas.1} parent=1 // pred_region
      %177 = dma.done [#allocation21], 1024
    $region81: #{_mpn_pallas.1} parent=1 // pred_fallthru
      _
    // Predicated region
    $region82: #{_mpn_pallas.1} parent=1 // pred_check
      _
    $region83: #{_mpn_pallas.1} parent=1 // pred_check_branch
      %179 = sbr.rel (0) target = $region85
    $region84: #{_mpn_pallas.1} parent=1 // pred_region
      %181 = dma.done [#allocation21], 16
    $region85: #{_mpn_pallas.1} parent=1 // pred_fallthru
      _
    %182 = sfence
    %v183 = vld [vmem:[#allocation17] sm:$0xf]
    %v184 = vld [vmem:[#allocation17 + $0x4] sm:$0xf]
    %v185 = vld [vmem:[#allocation17 + $0x8] sm:$0xf]
    %v186 = vld [vmem:[#allocation17 + $0xc] sm:$0xf]
    %v187 = vld [vmem:[#allocation17 + $0x10] sm:$0xf]
    %v188 = vld [vmem:[#allocation17 + $0x14] sm:$0xf]
    %v189 = vld [vmem:[#allocation17 + $0x18] sm:$0xf]
    %v190 = vld [vmem:[#allocation17 + $0x1c] sm:$0xf]
    %v191 = vld [vmem:[#allocation17 + $0x20] sm:$0xf]
    %v192 = vld [vmem:[#allocation17 + $0x24] sm:$0xf]
    %v193 = vld [vmem:[#allocation17 + $0x28] sm:$0xf]
    %v194 = vld [vmem:[#allocation17 + $0x2c] sm:$0xf]
    %v195 = vld [vmem:[#allocation17 + $0x30] sm:$0xf]
    %v196 = vld [vmem:[#allocation17 + $0x34] sm:$0xf]
    %v197 = vld [vmem:[#allocation17 + $0x38] sm:$0xf]
    %v198 = vld [vmem:[#allocation17 + $0x3c] sm:$0xf]
    %v199 = vld [vmem:[#allocation14] sm:$0xf]
    %v200 = vld [vmem:[#allocation14 + $0x4] sm:$0xf]
    %v201 = vld [vmem:[#allocation14 + $0x8] sm:$0xf]
    %v202 = vld [vmem:[#allocation14 + $0xc] sm:$0xf]
    %v203 = vld [vmem:[#allocation16] sm:$0xf]
    %v204 = vld [vmem:[#allocation16 + $0x4] sm:$0xf]
    %v205 = vld [vmem:[#allocation16 + $0x8] sm:$0xf]
    %v206 = vld [vmem:[#allocation16 + $0xc] sm:$0xf]
    %v207 = vld [vmem:[#allocation16 + $0x10] sm:$0xf]
    %v208 = vld [vmem:[#allocation16 + $0x14] sm:$0xf]
    %v209 = vld [vmem:[#allocation16 + $0x18] sm:$0xf]
    %v210 = vld [vmem:[#allocation16 + $0x1c] sm:$0xf]
    %v211 = vld [vmem:[#allocation16 + $0x20] sm:$0xf]
    %v212 = vld [vmem:[#allocation16 + $0x24] sm:$0xf]
    %v213 = vld [vmem:[#allocation16 + $0x28] sm:$0xf]
    %v214 = vld [vmem:[#allocation16 + $0x2c] sm:$0xf]
    %v215 = vld [vmem:[#allocation16 + $0x30] sm:$0xf]
    %v216 = vld [vmem:[#allocation16 + $0x34] sm:$0xf]
    %v217 = vld [vmem:[#allocation16 + $0x38] sm:$0xf]
    %v218 = vld [vmem:[#allocation16 + $0x3c] sm:$0xf]
    %v223 = vunpack.c.l.b16 %v199
    %v224 = vunpack.c.l.b16 %v200
    %v225 = vunpack.c.l.b16 %v201
    %v226 = vunpack.c.l.b16 %v202
    %v227 = vpack.c.b16 %v224, %v223
    %v228 = vpack.c.b16 %v226, %v225
    %v247 = vunpack.c.l.b16 %v203
    %v248 = vunpack.c.l.b16 %v204
    %v249 = vunpack.c.l.b16 %v205
    %v250 = vunpack.c.l.b16 %v206
    %v251 = vunpack.c.l.b16 %v207
    %v252 = vunpack.c.l.b16 %v208
    %v253 = vunpack.c.l.b16 %v209
    %v254 = vunpack.c.l.b16 %v210
    %v255 = vunpack.c.l.b16 %v211
    %v256 = vunpack.c.l.b16 %v212
    %v257 = vunpack.c.l.b16 %v213
    %v258 = vunpack.c.l.b16 %v214
    %v259 = vunpack.c.l.b16 %v215
    %v260 = vunpack.c.l.b16 %v216
    %v261 = vunpack.c.l.b16 %v217
    %v262 = vunpack.c.l.b16 %v218
    %v263 = vpack.c.b16 %v248, %v247
    %v264 = vpack.c.b16 %v250, %v249
    %v265 = vpack.c.b16 %v252, %v251
    %v266 = vpack.c.b16 %v254, %v253
    %v267 = vpack.c.b16 %v256, %v255
    %v268 = vpack.c.b16 %v258, %v257
    %v269 = vpack.c.b16 %v260, %v259
    %v270 = vpack.c.b16 %v262, %v261
    %279 = vmatpush.bf16.msra.mxu0 %v270
    %280 = vmatpush.bf16.msra.mxu0 %v269
    %281 = vmatpush.bf16.msra.mxu0 %v268
    %282 = vmatpush.bf16.msra.mxu0 %v267
    %283 = vmatpush.bf16.msra.mxu0 %v266
    %284 = vmatpush.bf16.msra.mxu0 %v265
    %285 = vmatpush.bf16.msra.mxu0 %v264
    %286 = vmatpush.bf16.msra.mxu0 %v263
    %287 = vmatmul.bf16.gmra.mxu0 %v227
    %v288 = vpop.f32.mrf.mxu0
    %v289 = vadd.f32 0.0, %v288
    %v290 = vpop.f32.mrf.mxu0
    %v291 = vadd.f32 0.0, %v290
    %292 = vmatmul.bf16.gmra.mxu0 %v228
    %v293 = vpop.f32.mrf.mxu0
    %v294 = vadd.f32 0.0, %v293
    %v295 = vpop.f32.mrf.mxu0
    %v296 = vadd.f32 0.0, %v295
    %297 = vdwg.mxu0
    %v298 = vmax.f32 %v289, 0.0
    %v299 = vmax.f32 %v291, 0.0
    %v300 = vmax.f32 %v294, 0.0
    %v301 = vmax.f32 %v296, 0.0
    %302 = vst [vmem:[#allocation2] sm:$0xff] %v298
    %303 = vst [vmem:[#allocation2 + $0x8] sm:$0xff] %v299
    %304 = vst [vmem:[#allocation2 + $0x10] sm:$0xff] %v300
    %305 = vst [vmem:[#allocation2 + $0x18] sm:$0xff] %v301
    %s306 = sld [smem:[#allocation5]]
    %s307 = scalar_lea.vmem [#allocation2], %s306
    %v308 = vld [vmem:[%s307] sm:$0x1]
    %p309 = scmp.gt.s32.totalorder %s306, 0
    %s310 = scalar_select %p309, 1, 0
    %v311 = vstv %s310
    %vm312 = vcmp.eq.s32.totalorder %v311, 1
    %v313 = vsel %vm312, %v308, 0.0
    %v314 = vadd.f32 %v313, 0.0
    %s315 = sld [smem:[#allocation5 + $0x1]]
    %s316 = scalar_lea.vmem [#allocation2], %s315
    %v317 = vld [vmem:[%s316] sm:$0x1]
    %p318 = scmp.gt.s32.totalorder %s315, 0
    %s319 = scalar_select %p318, 1, 0
    %v320 = vstv %s319
    %vm321 = vcmp.eq.s32.totalorder %v320, 1
    %v322 = vsel %vm321, %v317, 0.0
    %v323 = vadd.f32 %v314, %v322
    %324 = vst [vmem:[#allocation4] sm:$0x1] %v323
    %s325 = sld [smem:[#allocation5 + $0x2]]
    %s326 = scalar_lea.vmem [#allocation2], %s325
    %v327 = vld [vmem:[%s326] sm:$0x1]
    %p328 = scmp.gt.s32.totalorder %s325, 0
    %s329 = scalar_select %p328, 1, 0
    %v330 = vstv %s329
    %vm331 = vcmp.eq.s32.totalorder %v330, 1
    %v332 = vsel %vm331, %v327, 0.0
    %v333 = vadd.f32 %v332, 0.0
    %s334 = sld [smem:[#allocation5 + $0x3]]
    %s335 = scalar_lea.vmem [#allocation2], %s334
    %v336 = vld [vmem:[%s335] sm:$0x1]
    %p337 = scmp.gt.s32.totalorder %s334, 0
    %s338 = scalar_select %p337, 1, 0
    %v339 = vstv %s338
    %vm340 = vcmp.eq.s32.totalorder %v339, 1
    %v341 = vsel %vm340, %v336, 0.0
    %v342 = vadd.f32 %v333, %v341
    %343 = vst [vmem:[#allocation4 + $0x1] sm:$0x1] %v342
    %s344 = sld [smem:[#allocation5 + $0x4]]
    %s345 = scalar_lea.vmem [#allocation2], %s344
    %v346 = vld [vmem:[%s345] sm:$0x1]
    %p347 = scmp.gt.s32.totalorder %s344, 0
    %s348 = scalar_select %p347, 1, 0
    %v349 = vstv %s348
    %vm350 = vcmp.eq.s32.totalorder %v349, 1
    %v351 = vsel %vm350, %v346, 0.0
    %v352 = vadd.f32 %v351, 0.0
    %s353 = sld [smem:[#allocation5 + $0x5]]
    %s354 = scalar_lea.vmem [#allocation2], %s353
    %v355 = vld [vmem:[%s354] sm:$0x1]
    %p356 = scmp.gt.s32.totalorder %s353, 0
    %s357 = scalar_select %p356, 1, 0
    %v358 = vstv %s357
    %vm359 = vcmp.eq.s32.totalorder %v358, 1
    %v360 = vsel %vm359, %v355, 0.0
    %v361 = vadd.f32 %v352, %v360
    %362 = vst [vmem:[#allocation4 + $0x2] sm:$0x1] %v361
    %s363 = sld [smem:[#allocation5 + $0x6]]
    %s364 = scalar_lea.vmem [#allocation2], %s363
    %v365 = vld [vmem:[%s364] sm:$0x1]
    %p366 = scmp.gt.s32.totalorder %s363, 0
    %s367 = scalar_select %p366, 1, 0
    %v368 = vstv %s367
    %vm369 = vcmp.eq.s32.totalorder %v368, 1
    %v370 = vsel %vm369, %v365, 0.0
    %v371 = vadd.f32 %v370, 0.0
    %s372 = sld [smem:[#allocation5 + $0x7]]
    %s373 = scalar_lea.vmem [#allocation2], %s372
    %v374 = vld [vmem:[%s373] sm:$0x1]
    %p375 = scmp.gt.s32.totalorder %s372, 0
    %s376 = scalar_select %p375, 1, 0
    %v377 = vstv %s376
    %vm378 = vcmp.eq.s32.totalorder %v377, 1
    %v379 = vsel %vm378, %v374, 0.0
    %v380 = vadd.f32 %v371, %v379
    %381 = vst [vmem:[#allocation4 + $0x3] sm:$0x1] %v380
    %s382 = sld [smem:[#allocation5 + $0x8]]
    %s383 = scalar_lea.vmem [#allocation2], %s382
    %v384 = vld [vmem:[%s383] sm:$0x1]
    %p385 = scmp.gt.s32.totalorder %s382, 0
    %s386 = scalar_select %p385, 1, 0
    %v387 = vstv %s386
    %vm388 = vcmp.eq.s32.totalorder %v387, 1
    %v389 = vsel %vm388, %v384, 0.0
    %v390 = vadd.f32 %v389, 0.0
    %s391 = sld [smem:[#allocation5 + $0x9]]
    %s392 = scalar_lea.vmem [#allocation2], %s391
    %v393 = vld [vmem:[%s392] sm:$0x1]
    %p394 = scmp.gt.s32.totalorder %s391, 0
    %s395 = scalar_select %p394, 1, 0
    %v396 = vstv %s395
    %vm397 = vcmp.eq.s32.totalorder %v396, 1
    %v398 = vsel %vm397, %v393, 0.0
    %v399 = vadd.f32 %v390, %v398
    %400 = vst [vmem:[#allocation4 + $0x4] sm:$0x1] %v399
    %s401 = sld [smem:[#allocation5 + $0xa]]
    %s402 = scalar_lea.vmem [#allocation2], %s401
    %v403 = vld [vmem:[%s402] sm:$0x1]
    %p404 = scmp.gt.s32.totalorder %s401, 0
    %s405 = scalar_select %p404, 1, 0
    %v406 = vstv %s405
    %vm407 = vcmp.eq.s32.totalorder %v406, 1
    %v408 = vsel %vm407, %v403, 0.0
    %v409 = vadd.f32 %v408, 0.0
    %s410 = sld [smem:[#allocation5 + $0xb]]
    %s411 = scalar_lea.vmem [#allocation2], %s410
    %v412 = vld [vmem:[%s411] sm:$0x1]
    %p413 = scmp.gt.s32.totalorder %s410, 0
    %s414 = scalar_select %p413, 1, 0
    %v415 = vstv %s414
    %vm416 = vcmp.eq.s32.totalorder %v415, 1
    %v417 = vsel %vm416, %v412, 0.0
    %v418 = vadd.f32 %v409, %v417
    %419 = vst [vmem:[#allocation4 + $0x5] sm:$0x1] %v418
    %s420 = sld [smem:[#allocation5 + $0xc]]
    %s421 = scalar_lea.vmem [#allocation2], %s420
    %v422 = vld [vmem:[%s421] sm:$0x1]
    %p423 = scmp.gt.s32.totalorder %s420, 0
    %s424 = scalar_select %p423, 1, 0
    %v425 = vstv %s424
    %vm426 = vcmp.eq.s32.totalorder %v425, 1
    %v427 = vsel %vm426, %v422, 0.0
    %v428 = vadd.f32 %v427, 0.0
    %s429 = sld [smem:[#allocation5 + $0xd]]
    %s430 = scalar_lea.vmem [#allocation2], %s429
    %v431 = vld [vmem:[%s430] sm:$0x1]
    %p432 = scmp.gt.s32.totalorder %s429, 0
    %s433 = scalar_select %p432, 1, 0
    %v434 = vstv %s433
    %vm435 = vcmp.eq.s32.totalorder %v434, 1
    %v436 = vsel %vm435, %v431, 0.0
    %v437 = vadd.f32 %v428, %v436
    %438 = vst [vmem:[#allocation4 + $0x6] sm:$0x1] %v437
    %s439 = sld [smem:[#allocation5 + $0xe]]
    %s440 = scalar_lea.vmem [#allocation2], %s439
    %v441 = vld [vmem:[%s440] sm:$0x1]
    %p442 = scmp.gt.s32.totalorder %s439, 0
    %s443 = scalar_select %p442, 1, 0
    %v444 = vstv %s443
    %vm445 = vcmp.eq.s32.totalorder %v444, 1
    %v446 = vsel %vm445, %v441, 0.0
    %v447 = vadd.f32 %v446, 0.0
    %s448 = sld [smem:[#allocation5 + $0xf]]
    %s449 = scalar_lea.vmem [#allocation2], %s448
    %v450 = vld [vmem:[%s449] sm:$0x1]
    %p451 = scmp.gt.s32.totalorder %s448, 0
    %s452 = scalar_select %p451, 1, 0
    %v453 = vstv %s452
    %vm454 = vcmp.eq.s32.totalorder %v453, 1
    %v455 = vsel %vm454, %v450, 0.0
    %v456 = vadd.f32 %v447, %v455
    %457 = vst [vmem:[#allocation4 + $0x7] sm:$0x1] %v456
    %s458 = sld [smem:[#allocation5 + $0x10]]
    %s459 = scalar_lea.vmem [#allocation2], %s458
    %v460 = vld [vmem:[%s459] sm:$0x1]
    %p461 = scmp.gt.s32.totalorder %s458, 0
    %s462 = scalar_select %p461, 1, 0
    %v463 = vstv %s462
    %vm464 = vcmp.eq.s32.totalorder %v463, 1
    %v465 = vsel %vm464, %v460, 0.0
    %v466 = vadd.f32 %v465, 0.0
    %s467 = sld [smem:[#allocation5 + $0x11]]
    %s468 = scalar_lea.vmem [#allocation2], %s467
    %v469 = vld [vmem:[%s468] sm:$0x1]
    %p470 = scmp.gt.s32.totalorder %s467, 0
    %s471 = scalar_select %p470, 1, 0
    %v472 = vstv %s471
    %vm473 = vcmp.eq.s32.totalorder %v472, 1
    %v474 = vsel %vm473, %v469, 0.0
    %v475 = vadd.f32 %v466, %v474
    %476 = vst [vmem:[#allocation4 + $0x8] sm:$0x1] %v475
    %s477 = sld [smem:[#allocation5 + $0x12]]
    %s478 = scalar_lea.vmem [#allocation2], %s477
    %v479 = vld [vmem:[%s478] sm:$0x1]
    %p480 = scmp.gt.s32.totalorder %s477, 0
    %s481 = scalar_select %p480, 1, 0
    %v482 = vstv %s481
    %vm483 = vcmp.eq.s32.totalorder %v482, 1
    %v484 = vsel %vm483, %v479, 0.0
    %v485 = vadd.f32 %v484, 0.0
    %s486 = sld [smem:[#allocation5 + $0x13]]
    %s487 = scalar_lea.vmem [#allocation2], %s486
    %v488 = vld [vmem:[%s487] sm:$0x1]
    %p489 = scmp.gt.s32.totalorder %s486, 0
    %s490 = scalar_select %p489, 1, 0
    %v491 = vstv %s490
    %vm492 = vcmp.eq.s32.totalorder %v491, 1
    %v493 = vsel %vm492, %v488, 0.0
    %v494 = vadd.f32 %v485, %v493
    %495 = vst [vmem:[#allocation4 + $0x9] sm:$0x1] %v494
    %s496 = sld [smem:[#allocation5 + $0x14]]
    %s497 = scalar_lea.vmem [#allocation2], %s496
    %v498 = vld [vmem:[%s497] sm:$0x1]
    %p499 = scmp.gt.s32.totalorder %s496, 0
    %s500 = scalar_select %p499, 1, 0
    %v501 = vstv %s500
    %vm502 = vcmp.eq.s32.totalorder %v501, 1
    %v503 = vsel %vm502, %v498, 0.0
    %v504 = vadd.f32 %v503, 0.0
    %s505 = sld [smem:[#allocation5 + $0x15]]
    %s506 = scalar_lea.vmem [#allocation2], %s505
    %v507 = vld [vmem:[%s506] sm:$0x1]
    %p508 = scmp.gt.s32.totalorder %s505, 0
    %s509 = scalar_select %p508, 1, 0
    %v510 = vstv %s509
    %vm511 = vcmp.eq.s32.totalorder %v510, 1
    %v512 = vsel %vm511, %v507, 0.0
    %v513 = vadd.f32 %v504, %v512
    %514 = vst [vmem:[#allocation4 + $0xa] sm:$0x1] %v513
    %s515 = sld [smem:[#allocation5 + $0x16]]
    %s516 = scalar_lea.vmem [#allocation2], %s515
    %v517 = vld [vmem:[%s516] sm:$0x1]
    %p518 = scmp.gt.s32.totalorder %s515, 0
    %s519 = scalar_select %p518, 1, 0
    %v520 = vstv %s519
    %vm521 = vcmp.eq.s32.totalorder %v520, 1
    %v522 = vsel %vm521, %v517, 0.0
    %v523 = vadd.f32 %v522, 0.0
    %s524 = sld [smem:[#allocation5 + $0x17]]
    %s525 = scalar_lea.vmem [#allocation2], %s524
    %v526 = vld [vmem:[%s525] sm:$0x1]
    %p527 = scmp.gt.s32.totalorder %s524, 0
    %s528 = scalar_select %p527, 1, 0
    %v529 = vstv %s528
    %vm530 = vcmp.eq.s32.totalorder %v529, 1
    %v531 = vsel %vm530, %v526, 0.0
    %v532 = vadd.f32 %v523, %v531
    %533 = vst [vmem:[#allocation4 + $0xb] sm:$0x1] %v532
    %s534 = sld [smem:[#allocation5 + $0x18]]
    %s535 = scalar_lea.vmem [#allocation2], %s534
    %v536 = vld [vmem:[%s535] sm:$0x1]
    %p537 = scmp.gt.s32.totalorder %s534, 0
    %s538 = scalar_select %p537, 1, 0
    %v539 = vstv %s538
    %vm540 = vcmp.eq.s32.totalorder %v539, 1
    %v541 = vsel %vm540, %v536, 0.0
    %v542 = vadd.f32 %v541, 0.0
    %s543 = sld [smem:[#allocation5 + $0x19]]
    %s544 = scalar_lea.vmem [#allocation2], %s543
    %v545 = vld [vmem:[%s544] sm:$0x1]
    %p546 = scmp.gt.s32.totalorder %s543, 0
    %s547 = scalar_select %p546, 1, 0
    %v548 = vstv %s547
    %vm549 = vcmp.eq.s32.totalorder %v548, 1
    %v550 = vsel %vm549, %v545, 0.0
    %v551 = vadd.f32 %v542, %v550
    %552 = vst [vmem:[#allocation4 + $0xc] sm:$0x1] %v551
    %s553 = sld [smem:[#allocation5 + $0x1a]]
    %s554 = scalar_lea.vmem [#allocation2], %s553
    %v555 = vld [vmem:[%s554] sm:$0x1]
    %p556 = scmp.gt.s32.totalorder %s553, 0
    %s557 = scalar_select %p556, 1, 0
    %v558 = vstv %s557
    %vm559 = vcmp.eq.s32.totalorder %v558, 1
    %v560 = vsel %vm559, %v555, 0.0
    %v561 = vadd.f32 %v560, 0.0
    %s562 = sld [smem:[#allocation5 + $0x1b]]
    %s563 = scalar_lea.vmem [#allocation2], %s562
    %v564 = vld [vmem:[%s563] sm:$0x1]
    %p565 = scmp.gt.s32.totalorder %s562, 0
    %s566 = scalar_select %p565, 1, 0
    %v567 = vstv %s566
    %vm568 = vcmp.eq.s32.totalorder %v567, 1
    %v569 = vsel %vm568, %v564, 0.0
    %v570 = vadd.f32 %v561, %v569
    %571 = vst [vmem:[#allocation4 + $0xd] sm:$0x1] %v570
    %s572 = sld [smem:[#allocation5 + $0x1c]]
    %s573 = scalar_lea.vmem [#allocation2], %s572
    %v574 = vld [vmem:[%s573] sm:$0x1]
    %p575 = scmp.gt.s32.totalorder %s572, 0
    %s576 = scalar_select %p575, 1, 0
    %v577 = vstv %s576
    %vm578 = vcmp.eq.s32.totalorder %v577, 1
    %v579 = vsel %vm578, %v574, 0.0
    %v580 = vadd.f32 %v579, 0.0
    %s581 = sld [smem:[#allocation5 + $0x1d]]
    %s582 = scalar_lea.vmem [#allocation2], %s581
    %v583 = vld [vmem:[%s582] sm:$0x1]
    %p584 = scmp.gt.s32.totalorder %s581, 0
    %s585 = scalar_select %p584, 1, 0
    %v586 = vstv %s585
    %vm587 = vcmp.eq.s32.totalorder %v586, 1
    %v588 = vsel %vm587, %v583, 0.0
    %v589 = vadd.f32 %v580, %v588
    %590 = vst [vmem:[#allocation4 + $0xe] sm:$0x1] %v589
    %s591 = sld [smem:[#allocation5 + $0x1e]]
    %s592 = scalar_lea.vmem [#allocation2], %s591
    %v593 = vld [vmem:[%s592] sm:$0x1]
    %p594 = scmp.gt.s32.totalorder %s591, 0
    %s595 = scalar_select %p594, 1, 0
    %v596 = vstv %s595
    %vm597 = vcmp.eq.s32.totalorder %v596, 1
    %v598 = vsel %vm597, %v593, 0.0
    %v599 = vadd.f32 %v598, 0.0
    %s600 = sld [smem:[#allocation5 + $0x1f]]
    %s601 = scalar_lea.vmem [#allocation2], %s600
    %v602 = vld [vmem:[%s601] sm:$0x1]
    %p603 = scmp.gt.s32.totalorder %s600, 0
    %s604 = scalar_select %p603, 1, 0
    %v605 = vstv %s604
    %vm606 = vcmp.eq.s32.totalorder %v605, 1
    %v607 = vsel %vm606, %v602, 0.0
    %v608 = vadd.f32 %v599, %v607
    %609 = vst [vmem:[#allocation4 + $0xf] sm:$0x1] %v608
    %s610 = sld [smem:[#allocation10]]
    %s611 = sld [smem:[#allocation12]]
    %s612 = scalar_lea.vmem [#allocation4], %s610
    %v613 = vld [vmem:[%s612] sm:$0x1]
    %s614 = scalar_lea.vmem [#allocation2], %s611
    %v615 = vld [vmem:[%s614] sm:$0x1]
    %v616 = vsub.f32 %v613, %v615
    %617 = vst [vmem:[#allocation3] sm:$0x1] %v616
    %s618 = sld [smem:[#allocation10 + $0x1]]
    %s619 = sld [smem:[#allocation12 + $0x1]]
    %s620 = scalar_lea.vmem [#allocation4], %s618
    %v621 = vld [vmem:[%s620] sm:$0x1]
    %s622 = scalar_lea.vmem [#allocation2], %s619
    %v623 = vld [vmem:[%s622] sm:$0x1]
    %v624 = vsub.f32 %v621, %v623
    %625 = vst [vmem:[#allocation3 + $0x1] sm:$0x1] %v624
    %s626 = sld [smem:[#allocation10 + $0x2]]
    %s627 = sld [smem:[#allocation12 + $0x2]]
    %s628 = scalar_lea.vmem [#allocation4], %s626
    %v629 = vld [vmem:[%s628] sm:$0x1]
    %s630 = scalar_lea.vmem [#allocation2], %s627
    %v631 = vld [vmem:[%s630] sm:$0x1]
    %v632 = vsub.f32 %v629, %v631
    %633 = vst [vmem:[#allocation3 + $0x2] sm:$0x1] %v632
    %s634 = sld [smem:[#allocation10 + $0x3]]
    %s635 = sld [smem:[#allocation12 + $0x3]]
    %s636 = scalar_lea.vmem [#allocation4], %s634
    %v637 = vld [vmem:[%s636] sm:$0x1]
    %s638 = scalar_lea.vmem [#allocation2], %s635
    %v639 = vld [vmem:[%s638] sm:$0x1]
    %v640 = vsub.f32 %v637, %v639
    %641 = vst [vmem:[#allocation3 + $0x3] sm:$0x1] %v640
    %s642 = sld [smem:[#allocation10 + $0x4]]
    %s643 = sld [smem:[#allocation12 + $0x4]]
    %s644 = scalar_lea.vmem [#allocation4], %s642
    %v645 = vld [vmem:[%s644] sm:$0x1]
    %s646 = scalar_lea.vmem [#allocation2], %s643
    %v647 = vld [vmem:[%s646] sm:$0x1]
    %v648 = vsub.f32 %v645, %v647
    %649 = vst [vmem:[#allocation3 + $0x4] sm:$0x1] %v648
    %s650 = sld [smem:[#allocation10 + $0x5]]
    %s651 = sld [smem:[#allocation12 + $0x5]]
    %s652 = scalar_lea.vmem [#allocation4], %s650
    %v653 = vld [vmem:[%s652] sm:$0x1]
    %s654 = scalar_lea.vmem [#allocation2], %s651
    %v655 = vld [vmem:[%s654] sm:$0x1]
    %v656 = vsub.f32 %v653, %v655
    %657 = vst [vmem:[#allocation3 + $0x5] sm:$0x1] %v656
    %s658 = sld [smem:[#allocation10 + $0x6]]
    %s659 = sld [smem:[#allocation12 + $0x6]]
    %s660 = scalar_lea.vmem [#allocation4], %s658
    %v661 = vld [vmem:[%s660] sm:$0x1]
    %s662 = scalar_lea.vmem [#allocation2], %s659
    %v663 = vld [vmem:[%s662] sm:$0x1]
    %v664 = vsub.f32 %v661, %v663
    %665 = vst [vmem:[#allocation3 + $0x6] sm:$0x1] %v664
    %s666 = sld [smem:[#allocation10 + $0x7]]
    %s667 = sld [smem:[#allocation12 + $0x7]]
    %s668 = scalar_lea.vmem [#allocation4], %s666
    %v669 = vld [vmem:[%s668] sm:$0x1]
    %s670 = scalar_lea.vmem [#allocation2], %s667
    %v671 = vld [vmem:[%s670] sm:$0x1]
    %v672 = vsub.f32 %v669, %v671
    %673 = vst [vmem:[#allocation3 + $0x7] sm:$0x1] %v672
    %s674 = sld [smem:[#allocation10 + $0x8]]
    %s675 = sld [smem:[#allocation12 + $0x8]]
    %s676 = scalar_lea.vmem [#allocation4], %s674
    %v677 = vld [vmem:[%s676] sm:$0x1]
    %s678 = scalar_lea.vmem [#allocation2], %s675
    %v679 = vld [vmem:[%s678] sm:$0x1]
    %v680 = vsub.f32 %v677, %v679
    %681 = vst [vmem:[#allocation3 + $0x8] sm:$0x1] %v680
    %s682 = sld [smem:[#allocation10 + $0x9]]
    %s683 = sld [smem:[#allocation12 + $0x9]]
    %s684 = scalar_lea.vmem [#allocation4], %s682
    %v685 = vld [vmem:[%s684] sm:$0x1]
    %s686 = scalar_lea.vmem [#allocation2], %s683
    %v687 = vld [vmem:[%s686] sm:$0x1]
    %v688 = vsub.f32 %v685, %v687
    %689 = vst [vmem:[#allocation3 + $0x9] sm:$0x1] %v688
    %s690 = sld [smem:[#allocation10 + $0xa]]
    %s691 = sld [smem:[#allocation12 + $0xa]]
    %s692 = scalar_lea.vmem [#allocation4], %s690
    %v693 = vld [vmem:[%s692] sm:$0x1]
    %s694 = scalar_lea.vmem [#allocation2], %s691
    %v695 = vld [vmem:[%s694] sm:$0x1]
    %v696 = vsub.f32 %v693, %v695
    %697 = vst [vmem:[#allocation3 + $0xa] sm:$0x1] %v696
    %s698 = sld [smem:[#allocation10 + $0xb]]
    %s699 = sld [smem:[#allocation12 + $0xb]]
    %s700 = scalar_lea.vmem [#allocation4], %s698
    %v701 = vld [vmem:[%s700] sm:$0x1]
    %s702 = scalar_lea.vmem [#allocation2], %s699
    %v703 = vld [vmem:[%s702] sm:$0x1]
    %v704 = vsub.f32 %v701, %v703
    %705 = vst [vmem:[#allocation3 + $0xb] sm:$0x1] %v704
    %s706 = sld [smem:[#allocation10 + $0xc]]
    %s707 = sld [smem:[#allocation12 + $0xc]]
    %s708 = scalar_lea.vmem [#allocation4], %s706
    %v709 = vld [vmem:[%s708] sm:$0x1]
    %s710 = scalar_lea.vmem [#allocation2], %s707
    %v711 = vld [vmem:[%s710] sm:$0x1]
    %v712 = vsub.f32 %v709, %v711
    %713 = vst [vmem:[#allocation3 + $0xc] sm:$0x1] %v712
    %s714 = sld [smem:[#allocation10 + $0xd]]
    %s715 = sld [smem:[#allocation12 + $0xd]]
    %s716 = scalar_lea.vmem [#allocation4], %s714
    %v717 = vld [vmem:[%s716] sm:$0x1]
    %s718 = scalar_lea.vmem [#allocation2], %s715
    %v719 = vld [vmem:[%s718] sm:$0x1]
    %v720 = vsub.f32 %v717, %v719
    %721 = vst [vmem:[#allocation3 + $0xd] sm:$0x1] %v720
    %s722 = sld [smem:[#allocation10 + $0xe]]
    %s723 = sld [smem:[#allocation12 + $0xe]]
    %s724 = scalar_lea.vmem [#allocation4], %s722
    %v725 = vld [vmem:[%s724] sm:$0x1]
    %s726 = scalar_lea.vmem [#allocation2], %s723
    %v727 = vld [vmem:[%s726] sm:$0x1]
    %v728 = vsub.f32 %v725, %v727
    %729 = vst [vmem:[#allocation3 + $0xe] sm:$0x1] %v728
    %s730 = sld [smem:[#allocation10 + $0xf]]
    %s731 = sld [smem:[#allocation12 + $0xf]]
    %s732 = scalar_lea.vmem [#allocation4], %s730
    %v733 = vld [vmem:[%s732] sm:$0x1]
    %s734 = scalar_lea.vmem [#allocation2], %s731
    %v735 = vld [vmem:[%s734] sm:$0x1]
    %v736 = vsub.f32 %v733, %v735
    %737 = vst [vmem:[#allocation3 + $0xf] sm:$0x1] %v736
    %s738 = sld [smem:[#allocation10 + $0x10]]
    %s739 = sld [smem:[#allocation12 + $0x10]]
    %s740 = scalar_lea.vmem [#allocation4], %s738
    %v741 = vld [vmem:[%s740] sm:$0x1]
    %s742 = scalar_lea.vmem [#allocation2], %s739
    %v743 = vld [vmem:[%s742] sm:$0x1]
    %v744 = vsub.f32 %v741, %v743
    %745 = vst [vmem:[#allocation3 + $0x10] sm:$0x1] %v744
    %s746 = sld [smem:[#allocation10 + $0x11]]
    %s747 = sld [smem:[#allocation12 + $0x11]]
    %s748 = scalar_lea.vmem [#allocation4], %s746
    %v749 = vld [vmem:[%s748] sm:$0x1]
    %s750 = scalar_lea.vmem [#allocation2], %s747
    %v751 = vld [vmem:[%s750] sm:$0x1]
    %v752 = vsub.f32 %v749, %v751
    %753 = vst [vmem:[#allocation3 + $0x11] sm:$0x1] %v752
    %s754 = sld [smem:[#allocation10 + $0x12]]
    %s755 = sld [smem:[#allocation12 + $0x12]]
    %s756 = scalar_lea.vmem [#allocation4], %s754
    %v757 = vld [vmem:[%s756] sm:$0x1]
    %s758 = scalar_lea.vmem [#allocation2], %s755
    %v759 = vld [vmem:[%s758] sm:$0x1]
    %v760 = vsub.f32 %v757, %v759
    %761 = vst [vmem:[#allocation3 + $0x12] sm:$0x1] %v760
    %s762 = sld [smem:[#allocation10 + $0x13]]
    %s763 = sld [smem:[#allocation12 + $0x13]]
    %s764 = scalar_lea.vmem [#allocation4], %s762
    %v765 = vld [vmem:[%s764] sm:$0x1]
    %s766 = scalar_lea.vmem [#allocation2], %s763
    %v767 = vld [vmem:[%s766] sm:$0x1]
    %v768 = vsub.f32 %v765, %v767
    %769 = vst [vmem:[#allocation3 + $0x13] sm:$0x1] %v768
    %s770 = sld [smem:[#allocation10 + $0x14]]
    %s771 = sld [smem:[#allocation12 + $0x14]]
    %s772 = scalar_lea.vmem [#allocation4], %s770
    %v773 = vld [vmem:[%s772] sm:$0x1]
    %s774 = scalar_lea.vmem [#allocation2], %s771
    %v775 = vld [vmem:[%s774] sm:$0x1]
    %v776 = vsub.f32 %v773, %v775
    %777 = vst [vmem:[#allocation3 + $0x14] sm:$0x1] %v776
    %s778 = sld [smem:[#allocation10 + $0x15]]
    %s779 = sld [smem:[#allocation12 + $0x15]]
    %s780 = scalar_lea.vmem [#allocation4], %s778
    %v781 = vld [vmem:[%s780] sm:$0x1]
    %s782 = scalar_lea.vmem [#allocation2], %s779
    %v783 = vld [vmem:[%s782] sm:$0x1]
    %v784 = vsub.f32 %v781, %v783
    %785 = vst [vmem:[#allocation3 + $0x15] sm:$0x1] %v784
    %s786 = sld [smem:[#allocation10 + $0x16]]
    %s787 = sld [smem:[#allocation12 + $0x16]]
    %s788 = scalar_lea.vmem [#allocation4], %s786
    %v789 = vld [vmem:[%s788] sm:$0x1]
    %s790 = scalar_lea.vmem [#allocation2], %s787
    %v791 = vld [vmem:[%s790] sm:$0x1]
    %v792 = vsub.f32 %v789, %v791
    %793 = vst [vmem:[#allocation3 + $0x16] sm:$0x1] %v792
    %s794 = sld [smem:[#allocation10 + $0x17]]
    %s795 = sld [smem:[#allocation12 + $0x17]]
    %s796 = scalar_lea.vmem [#allocation4], %s794
    %v797 = vld [vmem:[%s796] sm:$0x1]
    %s798 = scalar_lea.vmem [#allocation2], %s795
    %v799 = vld [vmem:[%s798] sm:$0x1]
    %v800 = vsub.f32 %v797, %v799
    %801 = vst [vmem:[#allocation3 + $0x17] sm:$0x1] %v800
    %s802 = sld [smem:[#allocation10 + $0x18]]
    %s803 = sld [smem:[#allocation12 + $0x18]]
    %s804 = scalar_lea.vmem [#allocation4], %s802
    %v805 = vld [vmem:[%s804] sm:$0x1]
    %s806 = scalar_lea.vmem [#allocation2], %s803
    %v807 = vld [vmem:[%s806] sm:$0x1]
    %v808 = vsub.f32 %v805, %v807
    %809 = vst [vmem:[#allocation3 + $0x18] sm:$0x1] %v808
    %s810 = sld [smem:[#allocation10 + $0x19]]
    %s811 = sld [smem:[#allocation12 + $0x19]]
    %s812 = scalar_lea.vmem [#allocation4], %s810
    %v813 = vld [vmem:[%s812] sm:$0x1]
    %s814 = scalar_lea.vmem [#allocation2], %s811
    %v815 = vld [vmem:[%s814] sm:$0x1]
    %v816 = vsub.f32 %v813, %v815
    %817 = vst [vmem:[#allocation3 + $0x19] sm:$0x1] %v816
    %s818 = sld [smem:[#allocation10 + $0x1a]]
    %s819 = sld [smem:[#allocation12 + $0x1a]]
    %s820 = scalar_lea.vmem [#allocation4], %s818
    %v821 = vld [vmem:[%s820] sm:$0x1]
    %s822 = scalar_lea.vmem [#allocation2], %s819
    %v823 = vld [vmem:[%s822] sm:$0x1]
    %v824 = vsub.f32 %v821, %v823
    %825 = vst [vmem:[#allocation3 + $0x1a] sm:$0x1] %v824
    %s826 = sld [smem:[#allocation10 + $0x1b]]
    %s827 = sld [smem:[#allocation12 + $0x1b]]
    %s828 = scalar_lea.vmem [#allocation4], %s826
    %v829 = vld [vmem:[%s828] sm:$0x1]
    %s830 = scalar_lea.vmem [#allocation2], %s827
    %v831 = vld [vmem:[%s830] sm:$0x1]
    %v832 = vsub.f32 %v829, %v831
    %833 = vst [vmem:[#allocation3 + $0x1b] sm:$0x1] %v832
    %s834 = sld [smem:[#allocation10 + $0x1c]]
    %s835 = sld [smem:[#allocation12 + $0x1c]]
    %s836 = scalar_lea.vmem [#allocation4], %s834
    %v837 = vld [vmem:[%s836] sm:$0x1]
    %s838 = scalar_lea.vmem [#allocation2], %s835
    %v839 = vld [vmem:[%s838] sm:$0x1]
    %v840 = vsub.f32 %v837, %v839
    %841 = vst [vmem:[#allocation3 + $0x1c] sm:$0x1] %v840
    %s842 = sld [smem:[#allocation10 + $0x1d]]
    %s843 = sld [smem:[#allocation12 + $0x1d]]
    %s844 = scalar_lea.vmem [#allocation4], %s842
    %v845 = vld [vmem:[%s844] sm:$0x1]
    %s846 = scalar_lea.vmem [#allocation2], %s843
    %v847 = vld [vmem:[%s846] sm:$0x1]
    %v848 = vsub.f32 %v845, %v847
    %849 = vst [vmem:[#allocation3 + $0x1d] sm:$0x1] %v848
    %s850 = sld [smem:[#allocation10 + $0x1e]]
    %s851 = sld [smem:[#allocation12 + $0x1e]]
    %s852 = scalar_lea.vmem [#allocation4], %s850
    %v853 = vld [vmem:[%s852] sm:$0x1]
    %s854 = scalar_lea.vmem [#allocation2], %s851
    %v855 = vld [vmem:[%s854] sm:$0x1]
    %v856 = vsub.f32 %v853, %v855
    %857 = vst [vmem:[#allocation3 + $0x1e] sm:$0x1] %v856
    %s858 = sld [smem:[#allocation10 + $0x1f]]
    %s859 = sld [smem:[#allocation12 + $0x1f]]
    %s860 = scalar_lea.vmem [#allocation4], %s858
    %v861 = vld [vmem:[%s860] sm:$0x1]
    %s862 = scalar_lea.vmem [#allocation2], %s859
    %v863 = vld [vmem:[%s862] sm:$0x1]
    %v864 = vsub.f32 %v861, %v863
    %865 = vst [vmem:[#allocation3 + $0x1f] sm:$0x1] %v864
    %v866 = vld [vmem:[#allocation3] sm:$0xff]
    %v867 = vld [vmem:[#allocation3 + $0x8] sm:$0xff]
    %v868 = vld [vmem:[#allocation3 + $0x10] sm:$0xff]
    %v869 = vld [vmem:[#allocation3 + $0x18] sm:$0xff]
    %v870 = vpack.c.bf16 %v867, %v866
    %v871 = vpack.c.bf16 %v869, %v868
    %v888 = vunpack.c.l.b16 %v183
    %v889 = vunpack.c.l.b16 %v184
    %v890 = vunpack.c.l.b16 %v185
    %v891 = vunpack.c.l.b16 %v186
    %v892 = vunpack.c.l.b16 %v187
    %v893 = vunpack.c.l.b16 %v188
    %v894 = vunpack.c.l.b16 %v189
    %v895 = vunpack.c.l.b16 %v190
    %v896 = vunpack.c.l.b16 %v191
    %v897 = vunpack.c.l.b16 %v192
    %v898 = vunpack.c.l.b16 %v193
    %v899 = vunpack.c.l.b16 %v194
    %v900 = vunpack.c.l.b16 %v195
    %v901 = vunpack.c.l.b16 %v196
    %v902 = vunpack.c.l.b16 %v197
    %v903 = vunpack.c.l.b16 %v198
    %v904 = vpack.c.b16 %v889, %v888
    %v905 = vpack.c.b16 %v891, %v890
    %v906 = vpack.c.b16 %v893, %v892
    %v907 = vpack.c.b16 %v895, %v894
    %v908 = vpack.c.b16 %v897, %v896
    %v909 = vpack.c.b16 %v899, %v898
    %v910 = vpack.c.b16 %v901, %v900
    %v911 = vpack.c.b16 %v903, %v902
    %920 = vmatpush.bf16.msra.mxu0 %v911
    %921 = vmatpush.bf16.msra.mxu0 %v910
    %922 = vmatpush.bf16.msra.mxu0 %v909
    %923 = vmatpush.bf16.msra.mxu0 %v908
    %924 = vmatpush.bf16.msra.mxu0 %v907
    %925 = vmatpush.bf16.msra.mxu0 %v906
    %926 = vmatpush.bf16.msra.mxu0 %v905
    %927 = vmatpush.bf16.msra.mxu0 %v904
    %928 = vmatmul.bf16.gmra.mxu0 %v870
    %v929 = vpop.f32.mrf.mxu0
    %v930 = vadd.f32 0.0, %v929
    %v931 = vpop.f32.mrf.mxu0
    %v932 = vadd.f32 0.0, %v931
    %933 = vmatmul.bf16.gmra.mxu0 %v871
    %v934 = vpop.f32.mrf.mxu0
    %v935 = vadd.f32 0.0, %v934
    %v936 = vpop.f32.mrf.mxu0
    %v937 = vadd.f32 0.0, %v936
    %938 = vdwg.mxu0
    %v939 = vadd.f32 %v289, %v930
    %v940 = vadd.f32 %v291, %v932
    %v941 = vadd.f32 %v294, %v935
    %v942 = vadd.f32 %v296, %v937
    %v943 = vmax.f32 %v939, 0.0
    %v944 = vmax.f32 %v940, 0.0
    %v945 = vmax.f32 %v941, 0.0
    %v946 = vmax.f32 %v942, 0.0
    %947 = vst [vmem:[#allocation2] sm:$0xff] %v943
    %948 = vst [vmem:[#allocation2 + $0x8] sm:$0xff] %v944
    %949 = vst [vmem:[#allocation2 + $0x10] sm:$0xff] %v945
    %950 = vst [vmem:[#allocation2 + $0x18] sm:$0xff] %v946
    %s951 = sld [smem:[#allocation5]]
    %s952 = scalar_lea.vmem [#allocation2], %s951
    %v953 = vld [vmem:[%s952] sm:$0x1]
    %p954 = scmp.gt.s32.totalorder %s951, 0
    %s955 = scalar_select %p954, 1, 0
    %v956 = vstv %s955
    %vm957 = vcmp.eq.s32.totalorder %v956, 1
    %v958 = vsel %vm957, %v953, 0.0
    %v959 = vadd.f32 %v958, 0.0
    %s960 = sld [smem:[#allocation5 + $0x1]]
    %s961 = scalar_lea.vmem [#allocation2], %s960
    %v962 = vld [vmem:[%s961] sm:$0x1]
    %p963 = scmp.gt.s32.totalorder %s960, 0
    %s964 = scalar_select %p963, 1, 0
    %v965 = vstv %s964
    %vm966 = vcmp.eq.s32.totalorder %v965, 1
    %v967 = vsel %vm966, %v962, 0.0
    %v968 = vadd.f32 %v959, %v967
    %969 = vst [vmem:[#allocation4] sm:$0x1] %v968
    %s970 = sld [smem:[#allocation5 + $0x2]]
    %s971 = scalar_lea.vmem [#allocation2], %s970
    %v972 = vld [vmem:[%s971] sm:$0x1]
    %p973 = scmp.gt.s32.totalorder %s970, 0
    %s974 = scalar_select %p973, 1, 0
    %v975 = vstv %s974
    %vm976 = vcmp.eq.s32.totalorder %v975, 1
    %v977 = vsel %vm976, %v972, 0.0
    %v978 = vadd.f32 %v977, 0.0
    %s979 = sld [smem:[#allocation5 + $0x3]]
    %s980 = scalar_lea.vmem [#allocation2], %s979
    %v981 = vld [vmem:[%s980] sm:$0x1]
    %p982 = scmp.gt.s32.totalorder %s979, 0
    %s983 = scalar_select %p982, 1, 0
    %v984 = vstv %s983
    %vm985 = vcmp.eq.s32.totalorder %v984, 1
    %v986 = vsel %vm985, %v981, 0.0
    %v987 = vadd.f32 %v978, %v986
    %988 = vst [vmem:[#allocation4 + $0x1] sm:$0x1] %v987
    %s989 = sld [smem:[#allocation5 + $0x4]]
    %s990 = scalar_lea.vmem [#allocation2], %s989
    %v991 = vld [vmem:[%s990] sm:$0x1]
    %p992 = scmp.gt.s32.totalorder %s989, 0
    %s993 = scalar_select %p992, 1, 0
    %v994 = vstv %s993
    %vm995 = vcmp.eq.s32.totalorder %v994, 1
    %v996 = vsel %vm995, %v991, 0.0
    %v997 = vadd.f32 %v996, 0.0
    %s998 = sld [smem:[#allocation5 + $0x5]]
    %s999 = scalar_lea.vmem [#allocation2], %s998
    %v1000 = vld [vmem:[%s999] sm:$0x1]
    %p1001 = scmp.gt.s32.totalorder %s998, 0
    %s1002 = scalar_select %p1001, 1, 0
    %v1003 = vstv %s1002
    %vm1004 = vcmp.eq.s32.totalorder %v1003, 1
    %v1005 = vsel %vm1004, %v1000, 0.0
    %v1006 = vadd.f32 %v997, %v1005
    %1007 = vst [vmem:[#allocation4 + $0x2] sm:$0x1] %v1006
    %s1008 = sld [smem:[#allocation5 + $0x6]]
    %s1009 = scalar_lea.vmem [#allocation2], %s1008
    %v1010 = vld [vmem:[%s1009] sm:$0x1]
    %p1011 = scmp.gt.s32.totalorder %s1008, 0
    %s1012 = scalar_select %p1011, 1, 0
    %v1013 = vstv %s1012
    %vm1014 = vcmp.eq.s32.totalorder %v1013, 1
    %v1015 = vsel %vm1014, %v1010, 0.0
    %v1016 = vadd.f32 %v1015, 0.0
    %s1017 = sld [smem:[#allocation5 + $0x7]]
    %s1018 = scalar_lea.vmem [#allocation2], %s1017
    %v1019 = vld [vmem:[%s1018] sm:$0x1]
    %p1020 = scmp.gt.s32.totalorder %s1017, 0
    %s1021 = scalar_select %p1020, 1, 0
    %v1022 = vstv %s1021
    %vm1023 = vcmp.eq.s32.totalorder %v1022, 1
    %v1024 = vsel %vm1023, %v1019, 0.0
    %v1025 = vadd.f32 %v1016, %v1024
    %1026 = vst [vmem:[#allocation4 + $0x3] sm:$0x1] %v1025
    %s1027 = sld [smem:[#allocation5 + $0x8]]
    %s1028 = scalar_lea.vmem [#allocation2], %s1027
    %v1029 = vld [vmem:[%s1028] sm:$0x1]
    %p1030 = scmp.gt.s32.totalorder %s1027, 0
    %s1031 = scalar_select %p1030, 1, 0
    %v1032 = vstv %s1031
    %vm1033 = vcmp.eq.s32.totalorder %v1032, 1
    %v1034 = vsel %vm1033, %v1029, 0.0
    %v1035 = vadd.f32 %v1034, 0.0
    %s1036 = sld [smem:[#allocation5 + $0x9]]
    %s1037 = scalar_lea.vmem [#allocation2], %s1036
    %v1038 = vld [vmem:[%s1037] sm:$0x1]
    %p1039 = scmp.gt.s32.totalorder %s1036, 0
    %s1040 = scalar_select %p1039, 1, 0
    %v1041 = vstv %s1040
    %vm1042 = vcmp.eq.s32.totalorder %v1041, 1
    %v1043 = vsel %vm1042, %v1038, 0.0
    %v1044 = vadd.f32 %v1035, %v1043
    %1045 = vst [vmem:[#allocation4 + $0x4] sm:$0x1] %v1044
    %s1046 = sld [smem:[#allocation5 + $0xa]]
    %s1047 = scalar_lea.vmem [#allocation2], %s1046
    %v1048 = vld [vmem:[%s1047] sm:$0x1]
    %p1049 = scmp.gt.s32.totalorder %s1046, 0
    %s1050 = scalar_select %p1049, 1, 0
    %v1051 = vstv %s1050
    %vm1052 = vcmp.eq.s32.totalorder %v1051, 1
    %v1053 = vsel %vm1052, %v1048, 0.0
    %v1054 = vadd.f32 %v1053, 0.0
    %s1055 = sld [smem:[#allocation5 + $0xb]]
    %s1056 = scalar_lea.vmem [#allocation2], %s1055
    %v1057 = vld [vmem:[%s1056] sm:$0x1]
    %p1058 = scmp.gt.s32.totalorder %s1055, 0
    %s1059 = scalar_select %p1058, 1, 0
    %v1060 = vstv %s1059
    %vm1061 = vcmp.eq.s32.totalorder %v1060, 1
    %v1062 = vsel %vm1061, %v1057, 0.0
    %v1063 = vadd.f32 %v1054, %v1062
    %1064 = vst [vmem:[#allocation4 + $0x5] sm:$0x1] %v1063
    %s1065 = sld [smem:[#allocation5 + $0xc]]
    %s1066 = scalar_lea.vmem [#allocation2], %s1065
    %v1067 = vld [vmem:[%s1066] sm:$0x1]
    %p1068 = scmp.gt.s32.totalorder %s1065, 0
    %s1069 = scalar_select %p1068, 1, 0
    %v1070 = vstv %s1069
    %vm1071 = vcmp.eq.s32.totalorder %v1070, 1
    %v1072 = vsel %vm1071, %v1067, 0.0
    %v1073 = vadd.f32 %v1072, 0.0
    %s1074 = sld [smem:[#allocation5 + $0xd]]
    %s1075 = scalar_lea.vmem [#allocation2], %s1074
    %v1076 = vld [vmem:[%s1075] sm:$0x1]
    %p1077 = scmp.gt.s32.totalorder %s1074, 0
    %s1078 = scalar_select %p1077, 1, 0
    %v1079 = vstv %s1078
    %vm1080 = vcmp.eq.s32.totalorder %v1079, 1
    %v1081 = vsel %vm1080, %v1076, 0.0
    %v1082 = vadd.f32 %v1073, %v1081
    %1083 = vst [vmem:[#allocation4 + $0x6] sm:$0x1] %v1082
    %s1084 = sld [smem:[#allocation5 + $0xe]]
    %s1085 = scalar_lea.vmem [#allocation2], %s1084
    %v1086 = vld [vmem:[%s1085] sm:$0x1]
    %p1087 = scmp.gt.s32.totalorder %s1084, 0
    %s1088 = scalar_select %p1087, 1, 0
    %v1089 = vstv %s1088
    %vm1090 = vcmp.eq.s32.totalorder %v1089, 1
    %v1091 = vsel %vm1090, %v1086, 0.0
    %v1092 = vadd.f32 %v1091, 0.0
    %s1093 = sld [smem:[#allocation5 + $0xf]]
    %s1094 = scalar_lea.vmem [#allocation2], %s1093
    %v1095 = vld [vmem:[%s1094] sm:$0x1]
    %p1096 = scmp.gt.s32.totalorder %s1093, 0
    %s1097 = scalar_select %p1096, 1, 0
    %v1098 = vstv %s1097
    %vm1099 = vcmp.eq.s32.totalorder %v1098, 1
    %v1100 = vsel %vm1099, %v1095, 0.0
    %v1101 = vadd.f32 %v1092, %v1100
    %1102 = vst [vmem:[#allocation4 + $0x7] sm:$0x1] %v1101
    %s1103 = sld [smem:[#allocation5 + $0x10]]
    %s1104 = scalar_lea.vmem [#allocation2], %s1103
    %v1105 = vld [vmem:[%s1104] sm:$0x1]
    %p1106 = scmp.gt.s32.totalorder %s1103, 0
    %s1107 = scalar_select %p1106, 1, 0
    %v1108 = vstv %s1107
    %vm1109 = vcmp.eq.s32.totalorder %v1108, 1
    %v1110 = vsel %vm1109, %v1105, 0.0
    %v1111 = vadd.f32 %v1110, 0.0
    %s1112 = sld [smem:[#allocation5 + $0x11]]
    %s1113 = scalar_lea.vmem [#allocation2], %s1112
    %v1114 = vld [vmem:[%s1113] sm:$0x1]
    %p1115 = scmp.gt.s32.totalorder %s1112, 0
    %s1116 = scalar_select %p1115, 1, 0
    %v1117 = vstv %s1116
    %vm1118 = vcmp.eq.s32.totalorder %v1117, 1
    %v1119 = vsel %vm1118, %v1114, 0.0
    %v1120 = vadd.f32 %v1111, %v1119
    %1121 = vst [vmem:[#allocation4 + $0x8] sm:$0x1] %v1120
    %s1122 = sld [smem:[#allocation5 + $0x12]]
    %s1123 = scalar_lea.vmem [#allocation2], %s1122
    %v1124 = vld [vmem:[%s1123] sm:$0x1]
    %p1125 = scmp.gt.s32.totalorder %s1122, 0
    %s1126 = scalar_select %p1125, 1, 0
    %v1127 = vstv %s1126
    %vm1128 = vcmp.eq.s32.totalorder %v1127, 1
    %v1129 = vsel %vm1128, %v1124, 0.0
    %v1130 = vadd.f32 %v1129, 0.0
    %s1131 = sld [smem:[#allocation5 + $0x13]]
    %s1132 = scalar_lea.vmem [#allocation2], %s1131
    %v1133 = vld [vmem:[%s1132] sm:$0x1]
    %p1134 = scmp.gt.s32.totalorder %s1131, 0
    %s1135 = scalar_select %p1134, 1, 0
    %v1136 = vstv %s1135
    %vm1137 = vcmp.eq.s32.totalorder %v1136, 1
    %v1138 = vsel %vm1137, %v1133, 0.0
    %v1139 = vadd.f32 %v1130, %v1138
    %1140 = vst [vmem:[#allocation4 + $0x9] sm:$0x1] %v1139
    %s1141 = sld [smem:[#allocation5 + $0x14]]
    %s1142 = scalar_lea.vmem [#allocation2], %s1141
    %v1143 = vld [vmem:[%s1142] sm:$0x1]
    %p1144 = scmp.gt.s32.totalorder %s1141, 0
    %s1145 = scalar_select %p1144, 1, 0
    %v1146 = vstv %s1145
    %vm1147 = vcmp.eq.s32.totalorder %v1146, 1
    %v1148 = vsel %vm1147, %v1143, 0.0
    %v1149 = vadd.f32 %v1148, 0.0
    %s1150 = sld [smem:[#allocation5 + $0x15]]
    %s1151 = scalar_lea.vmem [#allocation2], %s1150
    %v1152 = vld [vmem:[%s1151] sm:$0x1]
    %p1153 = scmp.gt.s32.totalorder %s1150, 0
    %s1154 = scalar_select %p1153, 1, 0
    %v1155 = vstv %s1154
    %vm1156 = vcmp.eq.s32.totalorder %v1155, 1
    %v1157 = vsel %vm1156, %v1152, 0.0
    %v1158 = vadd.f32 %v1149, %v1157
    %1159 = vst [vmem:[#allocation4 + $0xa] sm:$0x1] %v1158
    %s1160 = sld [smem:[#allocation5 + $0x16]]
    %s1161 = scalar_lea.vmem [#allocation2], %s1160
    %v1162 = vld [vmem:[%s1161] sm:$0x1]
    %p1163 = scmp.gt.s32.totalorder %s1160, 0
    %s1164 = scalar_select %p1163, 1, 0
    %v1165 = vstv %s1164
    %vm1166 = vcmp.eq.s32.totalorder %v1165, 1
    %v1167 = vsel %vm1166, %v1162, 0.0
    %v1168 = vadd.f32 %v1167, 0.0
    %s1169 = sld [smem:[#allocation5 + $0x17]]
    %s1170 = scalar_lea.vmem [#allocation2], %s1169
    %v1171 = vld [vmem:[%s1170] sm:$0x1]
    %p1172 = scmp.gt.s32.totalorder %s1169, 0
    %s1173 = scalar_select %p1172, 1, 0
    %v1174 = vstv %s1173
    %vm1175 = vcmp.eq.s32.totalorder %v1174, 1
    %v1176 = vsel %vm1175, %v1171, 0.0
    %v1177 = vadd.f32 %v1168, %v1176
    %1178 = vst [vmem:[#allocation4 + $0xb] sm:$0x1] %v1177
    %s1179 = sld [smem:[#allocation5 + $0x18]]
    %s1180 = scalar_lea.vmem [#allocation2], %s1179
    %v1181 = vld [vmem:[%s1180] sm:$0x1]
    %p1182 = scmp.gt.s32.totalorder %s1179, 0
    %s1183 = scalar_select %p1182, 1, 0
    %v1184 = vstv %s1183
    %vm1185 = vcmp.eq.s32.totalorder %v1184, 1
    %v1186 = vsel %vm1185, %v1181, 0.0
    %v1187 = vadd.f32 %v1186, 0.0
    %s1188 = sld [smem:[#allocation5 + $0x19]]
    %s1189 = scalar_lea.vmem [#allocation2], %s1188
    %v1190 = vld [vmem:[%s1189] sm:$0x1]
    %p1191 = scmp.gt.s32.totalorder %s1188, 0
    %s1192 = scalar_select %p1191, 1, 0
    %v1193 = vstv %s1192
    %vm1194 = vcmp.eq.s32.totalorder %v1193, 1
    %v1195 = vsel %vm1194, %v1190, 0.0
    %v1196 = vadd.f32 %v1187, %v1195
    %1197 = vst [vmem:[#allocation4 + $0xc] sm:$0x1] %v1196
    %s1198 = sld [smem:[#allocation5 + $0x1a]]
    %s1199 = scalar_lea.vmem [#allocation2], %s1198
    %v1200 = vld [vmem:[%s1199] sm:$0x1]
    %p1201 = scmp.gt.s32.totalorder %s1198, 0
    %s1202 = scalar_select %p1201, 1, 0
    %v1203 = vstv %s1202
    %vm1204 = vcmp.eq.s32.totalorder %v1203, 1
    %v1205 = vsel %vm1204, %v1200, 0.0
    %v1206 = vadd.f32 %v1205, 0.0
    %s1207 = sld [smem:[#allocation5 + $0x1b]]
    %s1208 = scalar_lea.vmem [#allocation2], %s1207
    %v1209 = vld [vmem:[%s1208] sm:$0x1]
    %p1210 = scmp.gt.s32.totalorder %s1207, 0
    %s1211 = scalar_select %p1210, 1, 0
    %v1212 = vstv %s1211
    %vm1213 = vcmp.eq.s32.totalorder %v1212, 1
    %v1214 = vsel %vm1213, %v1209, 0.0
    %v1215 = vadd.f32 %v1206, %v1214
    %1216 = vst [vmem:[#allocation4 + $0xd] sm:$0x1] %v1215
    %s1217 = sld [smem:[#allocation5 + $0x1c]]
    %s1218 = scalar_lea.vmem [#allocation2], %s1217
    %v1219 = vld [vmem:[%s1218] sm:$0x1]
    %p1220 = scmp.gt.s32.totalorder %s1217, 0
    %s1221 = scalar_select %p1220, 1, 0
    %v1222 = vstv %s1221
    %vm1223 = vcmp.eq.s32.totalorder %v1222, 1
    %v1224 = vsel %vm1223, %v1219, 0.0
    %v1225 = vadd.f32 %v1224, 0.0
    %s1226 = sld [smem:[#allocation5 + $0x1d]]
    %s1227 = scalar_lea.vmem [#allocation2], %s1226
    %v1228 = vld [vmem:[%s1227] sm:$0x1]
    %p1229 = scmp.gt.s32.totalorder %s1226, 0
    %s1230 = scalar_select %p1229, 1, 0
    %v1231 = vstv %s1230
    %vm1232 = vcmp.eq.s32.totalorder %v1231, 1
    %v1233 = vsel %vm1232, %v1228, 0.0
    %v1234 = vadd.f32 %v1225, %v1233
    %1235 = vst [vmem:[#allocation4 + $0xe] sm:$0x1] %v1234
    %s1236 = sld [smem:[#allocation5 + $0x1e]]
    %s1237 = scalar_lea.vmem [#allocation2], %s1236
    %v1238 = vld [vmem:[%s1237] sm:$0x1]
    %p1239 = scmp.gt.s32.totalorder %s1236, 0
    %s1240 = scalar_select %p1239, 1, 0
    %v1241 = vstv %s1240
    %vm1242 = vcmp.eq.s32.totalorder %v1241, 1
    %v1243 = vsel %vm1242, %v1238, 0.0
    %v1244 = vadd.f32 %v1243, 0.0
    %s1245 = sld [smem:[#allocation5 + $0x1f]]
    %s1246 = scalar_lea.vmem [#allocation2], %s1245
    %v1247 = vld [vmem:[%s1246] sm:$0x1]
    %p1248 = scmp.gt.s32.totalorder %s1245, 0
    %s1249 = scalar_select %p1248, 1, 0
    %v1250 = vstv %s1249
    %vm1251 = vcmp.eq.s32.totalorder %v1250, 1
    %v1252 = vsel %vm1251, %v1247, 0.0
    %v1253 = vadd.f32 %v1244, %v1252
    %1254 = vst [vmem:[#allocation4 + $0xf] sm:$0x1] %v1253
    %s1255 = sld [smem:[#allocation10]]
    %s1256 = sld [smem:[#allocation12]]
    %s1257 = scalar_lea.vmem [#allocation4], %s1255
    %v1258 = vld [vmem:[%s1257] sm:$0x1]
    %s1259 = scalar_lea.vmem [#allocation2], %s1256
    %v1260 = vld [vmem:[%s1259] sm:$0x1]
    %v1261 = vsub.f32 %v1258, %v1260
    %1262 = vst [vmem:[#allocation3] sm:$0x1] %v1261
    %s1263 = sld [smem:[#allocation10 + $0x1]]
    %s1264 = sld [smem:[#allocation12 + $0x1]]
    %s1265 = scalar_lea.vmem [#allocation4], %s1263
    %v1266 = vld [vmem:[%s1265] sm:$0x1]
    %s1267 = scalar_lea.vmem [#allocation2], %s1264
    %v1268 = vld [vmem:[%s1267] sm:$0x1]
    %v1269 = vsub.f32 %v1266, %v1268
    %1270 = vst [vmem:[#allocation3 + $0x1] sm:$0x1] %v1269
    %s1271 = sld [smem:[#allocation10 + $0x2]]
    %s1272 = sld [smem:[#allocation12 + $0x2]]
    %s1273 = scalar_lea.vmem [#allocation4], %s1271
    %v1274 = vld [vmem:[%s1273] sm:$0x1]
    %s1275 = scalar_lea.vmem [#allocation2], %s1272
    %v1276 = vld [vmem:[%s1275] sm:$0x1]
    %v1277 = vsub.f32 %v1274, %v1276
    %1278 = vst [vmem:[#allocation3 + $0x2] sm:$0x1] %v1277
    %s1279 = sld [smem:[#allocation10 + $0x3]]
    %s1280 = sld [smem:[#allocation12 + $0x3]]
    %s1281 = scalar_lea.vmem [#allocation4], %s1279
    %v1282 = vld [vmem:[%s1281] sm:$0x1]
    %s1283 = scalar_lea.vmem [#allocation2], %s1280
    %v1284 = vld [vmem:[%s1283] sm:$0x1]
    %v1285 = vsub.f32 %v1282, %v1284
    %1286 = vst [vmem:[#allocation3 + $0x3] sm:$0x1] %v1285
    %s1287 = sld [smem:[#allocation10 + $0x4]]
    %s1288 = sld [smem:[#allocation12 + $0x4]]
    %s1289 = scalar_lea.vmem [#allocation4], %s1287
    %v1290 = vld [vmem:[%s1289] sm:$0x1]
    %s1291 = scalar_lea.vmem [#allocation2], %s1288
    %v1292 = vld [vmem:[%s1291] sm:$0x1]
    %v1293 = vsub.f32 %v1290, %v1292
    %1294 = vst [vmem:[#allocation3 + $0x4] sm:$0x1] %v1293
    %s1295 = sld [smem:[#allocation10 + $0x5]]
    %s1296 = sld [smem:[#allocation12 + $0x5]]
    %s1297 = scalar_lea.vmem [#allocation4], %s1295
    %v1298 = vld [vmem:[%s1297] sm:$0x1]
    %s1299 = scalar_lea.vmem [#allocation2], %s1296
    %v1300 = vld [vmem:[%s1299] sm:$0x1]
    %v1301 = vsub.f32 %v1298, %v1300
    %1302 = vst [vmem:[#allocation3 + $0x5] sm:$0x1] %v1301
    %s1303 = sld [smem:[#allocation10 + $0x6]]
    %s1304 = sld [smem:[#allocation12 + $0x6]]
    %s1305 = scalar_lea.vmem [#allocation4], %s1303
    %v1306 = vld [vmem:[%s1305] sm:$0x1]
    %s1307 = scalar_lea.vmem [#allocation2], %s1304
    %v1308 = vld [vmem:[%s1307] sm:$0x1]
    %v1309 = vsub.f32 %v1306, %v1308
    %1310 = vst [vmem:[#allocation3 + $0x6] sm:$0x1] %v1309
    %s1311 = sld [smem:[#allocation10 + $0x7]]
    %s1312 = sld [smem:[#allocation12 + $0x7]]
    %s1313 = scalar_lea.vmem [#allocation4], %s1311
    %v1314 = vld [vmem:[%s1313] sm:$0x1]
    %s1315 = scalar_lea.vmem [#allocation2], %s1312
    %v1316 = vld [vmem:[%s1315] sm:$0x1]
    %v1317 = vsub.f32 %v1314, %v1316
    %1318 = vst [vmem:[#allocation3 + $0x7] sm:$0x1] %v1317
    %s1319 = sld [smem:[#allocation10 + $0x8]]
    %s1320 = sld [smem:[#allocation12 + $0x8]]
    %s1321 = scalar_lea.vmem [#allocation4], %s1319
    %v1322 = vld [vmem:[%s1321] sm:$0x1]
    %s1323 = scalar_lea.vmem [#allocation2], %s1320
    %v1324 = vld [vmem:[%s1323] sm:$0x1]
    %v1325 = vsub.f32 %v1322, %v1324
    %1326 = vst [vmem:[#allocation3 + $0x8] sm:$0x1] %v1325
    %s1327 = sld [smem:[#allocation10 + $0x9]]
    %s1328 = sld [smem:[#allocation12 + $0x9]]
    %s1329 = scalar_lea.vmem [#allocation4], %s1327
    %v1330 = vld [vmem:[%s1329] sm:$0x1]
    %s1331 = scalar_lea.vmem [#allocation2], %s1328
    %v1332 = vld [vmem:[%s1331] sm:$0x1]
    %v1333 = vsub.f32 %v1330, %v1332
    %1334 = vst [vmem:[#allocation3 + $0x9] sm:$0x1] %v1333
    %s1335 = sld [smem:[#allocation10 + $0xa]]
    %s1336 = sld [smem:[#allocation12 + $0xa]]
    %s1337 = scalar_lea.vmem [#allocation4], %s1335
    %v1338 = vld [vmem:[%s1337] sm:$0x1]
    %s1339 = scalar_lea.vmem [#allocation2], %s1336
    %v1340 = vld [vmem:[%s1339] sm:$0x1]
    %v1341 = vsub.f32 %v1338, %v1340
    %1342 = vst [vmem:[#allocation3 + $0xa] sm:$0x1] %v1341
    %s1343 = sld [smem:[#allocation10 + $0xb]]
    %s1344 = sld [smem:[#allocation12 + $0xb]]
    %s1345 = scalar_lea.vmem [#allocation4], %s1343
    %v1346 = vld [vmem:[%s1345] sm:$0x1]
    %s1347 = scalar_lea.vmem [#allocation2], %s1344
    %v1348 = vld [vmem:[%s1347] sm:$0x1]
    %v1349 = vsub.f32 %v1346, %v1348
    %1350 = vst [vmem:[#allocation3 + $0xb] sm:$0x1] %v1349
    %s1351 = sld [smem:[#allocation10 + $0xc]]
    %s1352 = sld [smem:[#allocation12 + $0xc]]
    %s1353 = scalar_lea.vmem [#allocation4], %s1351
    %v1354 = vld [vmem:[%s1353] sm:$0x1]
    %s1355 = scalar_lea.vmem [#allocation2], %s1352
    %v1356 = vld [vmem:[%s1355] sm:$0x1]
    %v1357 = vsub.f32 %v1354, %v1356
    %1358 = vst [vmem:[#allocation3 + $0xc] sm:$0x1] %v1357
    %s1359 = sld [smem:[#allocation10 + $0xd]]
    %s1360 = sld [smem:[#allocation12 + $0xd]]
    %s1361 = scalar_lea.vmem [#allocation4], %s1359
    %v1362 = vld [vmem:[%s1361] sm:$0x1]
    %s1363 = scalar_lea.vmem [#allocation2], %s1360
    %v1364 = vld [vmem:[%s1363] sm:$0x1]
    %v1365 = vsub.f32 %v1362, %v1364
    %1366 = vst [vmem:[#allocation3 + $0xd] sm:$0x1] %v1365
    %s1367 = sld [smem:[#allocation10 + $0xe]]
    %s1368 = sld [smem:[#allocation12 + $0xe]]
    %s1369 = scalar_lea.vmem [#allocation4], %s1367
    %v1370 = vld [vmem:[%s1369] sm:$0x1]
    %s1371 = scalar_lea.vmem [#allocation2], %s1368
    %v1372 = vld [vmem:[%s1371] sm:$0x1]
    %v1373 = vsub.f32 %v1370, %v1372
    %1374 = vst [vmem:[#allocation3 + $0xe] sm:$0x1] %v1373
    %s1375 = sld [smem:[#allocation10 + $0xf]]
    %s1376 = sld [smem:[#allocation12 + $0xf]]
    %s1377 = scalar_lea.vmem [#allocation4], %s1375
    %v1378 = vld [vmem:[%s1377] sm:$0x1]
    %s1379 = scalar_lea.vmem [#allocation2], %s1376
    %v1380 = vld [vmem:[%s1379] sm:$0x1]
    %v1381 = vsub.f32 %v1378, %v1380
    %1382 = vst [vmem:[#allocation3 + $0xf] sm:$0x1] %v1381
    %s1383 = sld [smem:[#allocation10 + $0x10]]
    %s1384 = sld [smem:[#allocation12 + $0x10]]
    %s1385 = scalar_lea.vmem [#allocation4], %s1383
    %v1386 = vld [vmem:[%s1385] sm:$0x1]
    %s1387 = scalar_lea.vmem [#allocation2], %s1384
    %v1388 = vld [vmem:[%s1387] sm:$0x1]
    %v1389 = vsub.f32 %v1386, %v1388
    %1390 = vst [vmem:[#allocation3 + $0x10] sm:$0x1] %v1389
    %s1391 = sld [smem:[#allocation10 + $0x11]]
    %s1392 = sld [smem:[#allocation12 + $0x11]]
    %s1393 = scalar_lea.vmem [#allocation4], %s1391
    %v1394 = vld [vmem:[%s1393] sm:$0x1]
    %s1395 = scalar_lea.vmem [#allocation2], %s1392
    %v1396 = vld [vmem:[%s1395] sm:$0x1]
    %v1397 = vsub.f32 %v1394, %v1396
    %1398 = vst [vmem:[#allocation3 + $0x11] sm:$0x1] %v1397
    %s1399 = sld [smem:[#allocation10 + $0x12]]
    %s1400 = sld [smem:[#allocation12 + $0x12]]
    %s1401 = scalar_lea.vmem [#allocation4], %s1399
    %v1402 = vld [vmem:[%s1401] sm:$0x1]
    %s1403 = scalar_lea.vmem [#allocation2], %s1400
    %v1404 = vld [vmem:[%s1403] sm:$0x1]
    %v1405 = vsub.f32 %v1402, %v1404
    %1406 = vst [vmem:[#allocation3 + $0x12] sm:$0x1] %v1405
    %s1407 = sld [smem:[#allocation10 + $0x13]]
    %s1408 = sld [smem:[#allocation12 + $0x13]]
    %s1409 = scalar_lea.vmem [#allocation4], %s1407
    %v1410 = vld [vmem:[%s1409] sm:$0x1]
    %s1411 = scalar_lea.vmem [#allocation2], %s1408
    %v1412 = vld [vmem:[%s1411] sm:$0x1]
    %v1413 = vsub.f32 %v1410, %v1412
    %1414 = vst [vmem:[#allocation3 + $0x13] sm:$0x1] %v1413
    %s1415 = sld [smem:[#allocation10 + $0x14]]
    %s1416 = sld [smem:[#allocation12 + $0x14]]
    %s1417 = scalar_lea.vmem [#allocation4], %s1415
    %v1418 = vld [vmem:[%s1417] sm:$0x1]
    %s1419 = scalar_lea.vmem [#allocation2], %s1416
    %v1420 = vld [vmem:[%s1419] sm:$0x1]
    %v1421 = vsub.f32 %v1418, %v1420
    %1422 = vst [vmem:[#allocation3 + $0x14] sm:$0x1] %v1421
    %s1423 = sld [smem:[#allocation10 + $0x15]]
    %s1424 = sld [smem:[#allocation12 + $0x15]]
    %s1425 = scalar_lea.vmem [#allocation4], %s1423
    %v1426 = vld [vmem:[%s1425] sm:$0x1]
    %s1427 = scalar_lea.vmem [#allocation2], %s1424
    %v1428 = vld [vmem:[%s1427] sm:$0x1]
    %v1429 = vsub.f32 %v1426, %v1428
    %1430 = vst [vmem:[#allocation3 + $0x15] sm:$0x1] %v1429
    %s1431 = sld [smem:[#allocation10 + $0x16]]
    %s1432 = sld [smem:[#allocation12 + $0x16]]
    %s1433 = scalar_lea.vmem [#allocation4], %s1431
    %v1434 = vld [vmem:[%s1433] sm:$0x1]
    %s1435 = scalar_lea.vmem [#allocation2], %s1432
    %v1436 = vld [vmem:[%s1435] sm:$0x1]
    %v1437 = vsub.f32 %v1434, %v1436
    %1438 = vst [vmem:[#allocation3 + $0x16] sm:$0x1] %v1437
    %s1439 = sld [smem:[#allocation10 + $0x17]]
    %s1440 = sld [smem:[#allocation12 + $0x17]]
    %s1441 = scalar_lea.vmem [#allocation4], %s1439
    %v1442 = vld [vmem:[%s1441] sm:$0x1]
    %s1443 = scalar_lea.vmem [#allocation2], %s1440
    %v1444 = vld [vmem:[%s1443] sm:$0x1]
    %v1445 = vsub.f32 %v1442, %v1444
    %1446 = vst [vmem:[#allocation3 + $0x17] sm:$0x1] %v1445
    %s1447 = sld [smem:[#allocation10 + $0x18]]
    %s1448 = sld [smem:[#allocation12 + $0x18]]
    %s1449 = scalar_lea.vmem [#allocation4], %s1447
    %v1450 = vld [vmem:[%s1449] sm:$0x1]
    %s1451 = scalar_lea.vmem [#allocation2], %s1448
    %v1452 = vld [vmem:[%s1451] sm:$0x1]
    %v1453 = vsub.f32 %v1450, %v1452
    %1454 = vst [vmem:[#allocation3 + $0x18] sm:$0x1] %v1453
    %s1455 = sld [smem:[#allocation10 + $0x19]]
    %s1456 = sld [smem:[#allocation12 + $0x19]]
    %s1457 = scalar_lea.vmem [#allocation4], %s1455
    %v1458 = vld [vmem:[%s1457] sm:$0x1]
    %s1459 = scalar_lea.vmem [#allocation2], %s1456
    %v1460 = vld [vmem:[%s1459] sm:$0x1]
    %v1461 = vsub.f32 %v1458, %v1460
    %1462 = vst [vmem:[#allocation3 + $0x19] sm:$0x1] %v1461
    %s1463 = sld [smem:[#allocation10 + $0x1a]]
    %s1464 = sld [smem:[#allocation12 + $0x1a]]
    %s1465 = scalar_lea.vmem [#allocation4], %s1463
    %v1466 = vld [vmem:[%s1465] sm:$0x1]
    %s1467 = scalar_lea.vmem [#allocation2], %s1464
    %v1468 = vld [vmem:[%s1467] sm:$0x1]
    %v1469 = vsub.f32 %v1466, %v1468
    %1470 = vst [vmem:[#allocation3 + $0x1a] sm:$0x1] %v1469
    %s1471 = sld [smem:[#allocation10 + $0x1b]]
    %s1472 = sld [smem:[#allocation12 + $0x1b]]
    %s1473 = scalar_lea.vmem [#allocation4], %s1471
    %v1474 = vld [vmem:[%s1473] sm:$0x1]
    %s1475 = scalar_lea.vmem [#allocation2], %s1472
    %v1476 = vld [vmem:[%s1475] sm:$0x1]
    %v1477 = vsub.f32 %v1474, %v1476
    %1478 = vst [vmem:[#allocation3 + $0x1b] sm:$0x1] %v1477
    %s1479 = sld [smem:[#allocation10 + $0x1c]]
    %s1480 = sld [smem:[#allocation12 + $0x1c]]
    %s1481 = scalar_lea.vmem [#allocation4], %s1479
    %v1482 = vld [vmem:[%s1481] sm:$0x1]
    %s1483 = scalar_lea.vmem [#allocation2], %s1480
    %v1484 = vld [vmem:[%s1483] sm:$0x1]
    %v1485 = vsub.f32 %v1482, %v1484
    %1486 = vst [vmem:[#allocation3 + $0x1c] sm:$0x1] %v1485
    %s1487 = sld [smem:[#allocation10 + $0x1d]]
    %s1488 = sld [smem:[#allocation12 + $0x1d]]
    %s1489 = scalar_lea.vmem [#allocation4], %s1487
    %v1490 = vld [vmem:[%s1489] sm:$0x1]
    %s1491 = scalar_lea.vmem [#allocation2], %s1488
    %v1492 = vld [vmem:[%s1491] sm:$0x1]
    %v1493 = vsub.f32 %v1490, %v1492
    %1494 = vst [vmem:[#allocation3 + $0x1d] sm:$0x1] %v1493
    %s1495 = sld [smem:[#allocation10 + $0x1e]]
    %s1496 = sld [smem:[#allocation12 + $0x1e]]
    %s1497 = scalar_lea.vmem [#allocation4], %s1495
    %v1498 = vld [vmem:[%s1497] sm:$0x1]
    %s1499 = scalar_lea.vmem [#allocation2], %s1496
    %v1500 = vld [vmem:[%s1499] sm:$0x1]
    %v1501 = vsub.f32 %v1498, %v1500
    %1502 = vst [vmem:[#allocation3 + $0x1e] sm:$0x1] %v1501
    %s1503 = sld [smem:[#allocation10 + $0x1f]]
    %s1504 = sld [smem:[#allocation12 + $0x1f]]
    %s1505 = scalar_lea.vmem [#allocation4], %s1503
    %v1506 = vld [vmem:[%s1505] sm:$0x1]
    %s1507 = scalar_lea.vmem [#allocation2], %s1504
    %v1508 = vld [vmem:[%s1507] sm:$0x1]
    %v1509 = vsub.f32 %v1506, %v1508
    %1510 = vst [vmem:[#allocation3 + $0x1f] sm:$0x1] %v1509
    %v1511 = vld [vmem:[#allocation3] sm:$0xff]
    %v1512 = vld [vmem:[#allocation3 + $0x8] sm:$0xff]
    %v1513 = vld [vmem:[#allocation3 + $0x10] sm:$0xff]
    %v1514 = vld [vmem:[#allocation3 + $0x18] sm:$0xff]
    %v1515 = vpack.c.bf16 %v1512, %v1511
    %v1516 = vpack.c.bf16 %v1514, %v1513
    %1517 = vmatpush.bf16.msra.mxu0 %v911
    %1518 = vmatpush.bf16.msra.mxu0 %v910
    %1519 = vmatpush.bf16.msra.mxu0 %v909
    %1520 = vmatpush.bf16.msra.mxu0 %v908
    %1521 = vmatpush.bf16.msra.mxu0 %v907
    %1522 = vmatpush.bf16.msra.mxu0 %v906
    %1523 = vmatpush.bf16.msra.mxu0 %v905
    %1524 = vmatpush.bf16.msra.mxu0 %v904
    %1525 = vmatmul.bf16.gmra.mxu0 %v1515
    %v1526 = vpop.f32.mrf.mxu0
    %v1527 = vadd.f32 0.0, %v1526
    %v1528 = vpop.f32.mrf.mxu0
    %v1529 = vadd.f32 0.0, %v1528
    %1530 = vmatmul.bf16.gmra.mxu0 %v1516
    %v1531 = vpop.f32.mrf.mxu0
    %v1532 = vadd.f32 0.0, %v1531
    %v1533 = vpop.f32.mrf.mxu0
    %v1534 = vadd.f32 0.0, %v1533
    %1535 = vdwg.mxu0
    %v1536 = vadd.f32 %v289, %v1527
    %v1537 = vadd.f32 %v291, %v1529
    %v1538 = vadd.f32 %v294, %v1532
    %v1539 = vadd.f32 %v296, %v1534
    %v1540 = vmax.f32 %v1536, 0.0
    %v1541 = vmax.f32 %v1537, 0.0
    %v1542 = vmax.f32 %v1538, 0.0
    %v1543 = vmax.f32 %v1539, 0.0
    %1544 = vst [vmem:[#allocation2] sm:$0xff] %v1540
    %1545 = vst [vmem:[#allocation2 + $0x8] sm:$0xff] %v1541
    %1546 = vst [vmem:[#allocation2 + $0x10] sm:$0xff] %v1542
    %1547 = vst [vmem:[#allocation2 + $0x18] sm:$0xff] %v1543
    %s1548 = sld [smem:[#allocation5]]
    %s1549 = scalar_lea.vmem [#allocation2], %s1548
    %v1550 = vld [vmem:[%s1549] sm:$0x1]
    %p1551 = scmp.gt.s32.totalorder %s1548, 0
    %s1552 = scalar_select %p1551, 1, 0
    %v1553 = vstv %s1552
    %vm1554 = vcmp.eq.s32.totalorder %v1553, 1
    %v1555 = vsel %vm1554, %v1550, 0.0
    %v1556 = vadd.f32 %v1555, 0.0
    %s1557 = sld [smem:[#allocation5 + $0x1]]
    %s1558 = scalar_lea.vmem [#allocation2], %s1557
    %v1559 = vld [vmem:[%s1558] sm:$0x1]
    %p1560 = scmp.gt.s32.totalorder %s1557, 0
    %s1561 = scalar_select %p1560, 1, 0
    %v1562 = vstv %s1561
    %vm1563 = vcmp.eq.s32.totalorder %v1562, 1
    %v1564 = vsel %vm1563, %v1559, 0.0
    %v1565 = vadd.f32 %v1556, %v1564
    %1566 = vst [vmem:[#allocation4] sm:$0x1] %v1565
    %s1567 = sld [smem:[#allocation5 + $0x2]]
    %s1568 = scalar_lea.vmem [#allocation2], %s1567
    %v1569 = vld [vmem:[%s1568] sm:$0x1]
    %p1570 = scmp.gt.s32.totalorder %s1567, 0
    %s1571 = scalar_select %p1570, 1, 0
    %v1572 = vstv %s1571
    %vm1573 = vcmp.eq.s32.totalorder %v1572, 1
    %v1574 = vsel %vm1573, %v1569, 0.0
    %v1575 = vadd.f32 %v1574, 0.0
    %s1576 = sld [smem:[#allocation5 + $0x3]]
    %s1577 = scalar_lea.vmem [#allocation2], %s1576
    %v1578 = vld [vmem:[%s1577] sm:$0x1]
    %p1579 = scmp.gt.s32.totalorder %s1576, 0
    %s1580 = scalar_select %p1579, 1, 0
    %v1581 = vstv %s1580
    %vm1582 = vcmp.eq.s32.totalorder %v1581, 1
    %v1583 = vsel %vm1582, %v1578, 0.0
    %v1584 = vadd.f32 %v1575, %v1583
    %1585 = vst [vmem:[#allocation4 + $0x1] sm:$0x1] %v1584
    %s1586 = sld [smem:[#allocation5 + $0x4]]
    %s1587 = scalar_lea.vmem [#allocation2], %s1586
    %v1588 = vld [vmem:[%s1587] sm:$0x1]
    %p1589 = scmp.gt.s32.totalorder %s1586, 0
    %s1590 = scalar_select %p1589, 1, 0
    %v1591 = vstv %s1590
    %vm1592 = vcmp.eq.s32.totalorder %v1591, 1
    %v1593 = vsel %vm1592, %v1588, 0.0
    %v1594 = vadd.f32 %v1593, 0.0
    %s1595 = sld [smem:[#allocation5 + $0x5]]
    %s1596 = scalar_lea.vmem [#allocation2], %s1595
    %v1597 = vld [vmem:[%s1596] sm:$0x1]
    %p1598 = scmp.gt.s32.totalorder %s1595, 0
    %s1599 = scalar_select %p1598, 1, 0
    %v1600 = vstv %s1599
    %vm1601 = vcmp.eq.s32.totalorder %v1600, 1
    %v1602 = vsel %vm1601, %v1597, 0.0
    %v1603 = vadd.f32 %v1594, %v1602
    %1604 = vst [vmem:[#allocation4 + $0x2] sm:$0x1] %v1603
    %s1605 = sld [smem:[#allocation5 + $0x6]]
    %s1606 = scalar_lea.vmem [#allocation2], %s1605
    %v1607 = vld [vmem:[%s1606] sm:$0x1]
    %p1608 = scmp.gt.s32.totalorder %s1605, 0
    %s1609 = scalar_select %p1608, 1, 0
    %v1610 = vstv %s1609
    %vm1611 = vcmp.eq.s32.totalorder %v1610, 1
    %v1612 = vsel %vm1611, %v1607, 0.0
    %v1613 = vadd.f32 %v1612, 0.0
    %s1614 = sld [smem:[#allocation5 + $0x7]]
    %s1615 = scalar_lea.vmem [#allocation2], %s1614
    %v1616 = vld [vmem:[%s1615] sm:$0x1]
    %p1617 = scmp.gt.s32.totalorder %s1614, 0
    %s1618 = scalar_select %p1617, 1, 0
    %v1619 = vstv %s1618
    %vm1620 = vcmp.eq.s32.totalorder %v1619, 1
    %v1621 = vsel %vm1620, %v1616, 0.0
    %v1622 = vadd.f32 %v1613, %v1621
    %1623 = vst [vmem:[#allocation4 + $0x3] sm:$0x1] %v1622
    %s1624 = sld [smem:[#allocation5 + $0x8]]
    %s1625 = scalar_lea.vmem [#allocation2], %s1624
    %v1626 = vld [vmem:[%s1625] sm:$0x1]
    %p1627 = scmp.gt.s32.totalorder %s1624, 0
    %s1628 = scalar_select %p1627, 1, 0
    %v1629 = vstv %s1628
    %vm1630 = vcmp.eq.s32.totalorder %v1629, 1
    %v1631 = vsel %vm1630, %v1626, 0.0
    %v1632 = vadd.f32 %v1631, 0.0
    %s1633 = sld [smem:[#allocation5 + $0x9]]
    %s1634 = scalar_lea.vmem [#allocation2], %s1633
    %v1635 = vld [vmem:[%s1634] sm:$0x1]
    %p1636 = scmp.gt.s32.totalorder %s1633, 0
    %s1637 = scalar_select %p1636, 1, 0
    %v1638 = vstv %s1637
    %vm1639 = vcmp.eq.s32.totalorder %v1638, 1
    %v1640 = vsel %vm1639, %v1635, 0.0
    %v1641 = vadd.f32 %v1632, %v1640
    %1642 = vst [vmem:[#allocation4 + $0x4] sm:$0x1] %v1641
    %s1643 = sld [smem:[#allocation5 + $0xa]]
    %s1644 = scalar_lea.vmem [#allocation2], %s1643
    %v1645 = vld [vmem:[%s1644] sm:$0x1]
    %p1646 = scmp.gt.s32.totalorder %s1643, 0
    %s1647 = scalar_select %p1646, 1, 0
    %v1648 = vstv %s1647
    %vm1649 = vcmp.eq.s32.totalorder %v1648, 1
    %v1650 = vsel %vm1649, %v1645, 0.0
    %v1651 = vadd.f32 %v1650, 0.0
    %s1652 = sld [smem:[#allocation5 + $0xb]]
    %s1653 = scalar_lea.vmem [#allocation2], %s1652
    %v1654 = vld [vmem:[%s1653] sm:$0x1]
    %p1655 = scmp.gt.s32.totalorder %s1652, 0
    %s1656 = scalar_select %p1655, 1, 0
    %v1657 = vstv %s1656
    %vm1658 = vcmp.eq.s32.totalorder %v1657, 1
    %v1659 = vsel %vm1658, %v1654, 0.0
    %v1660 = vadd.f32 %v1651, %v1659
    %1661 = vst [vmem:[#allocation4 + $0x5] sm:$0x1] %v1660
    %s1662 = sld [smem:[#allocation5 + $0xc]]
    %s1663 = scalar_lea.vmem [#allocation2], %s1662
    %v1664 = vld [vmem:[%s1663] sm:$0x1]
    %p1665 = scmp.gt.s32.totalorder %s1662, 0
    %s1666 = scalar_select %p1665, 1, 0
    %v1667 = vstv %s1666
    %vm1668 = vcmp.eq.s32.totalorder %v1667, 1
    %v1669 = vsel %vm1668, %v1664, 0.0
    %v1670 = vadd.f32 %v1669, 0.0
    %s1671 = sld [smem:[#allocation5 + $0xd]]
    %s1672 = scalar_lea.vmem [#allocation2], %s1671
    %v1673 = vld [vmem:[%s1672] sm:$0x1]
    %p1674 = scmp.gt.s32.totalorder %s1671, 0
    %s1675 = scalar_select %p1674, 1, 0
    %v1676 = vstv %s1675
    %vm1677 = vcmp.eq.s32.totalorder %v1676, 1
    %v1678 = vsel %vm1677, %v1673, 0.0
    %v1679 = vadd.f32 %v1670, %v1678
    %1680 = vst [vmem:[#allocation4 + $0x6] sm:$0x1] %v1679
    %s1681 = sld [smem:[#allocation5 + $0xe]]
    %s1682 = scalar_lea.vmem [#allocation2], %s1681
    %v1683 = vld [vmem:[%s1682] sm:$0x1]
    %p1684 = scmp.gt.s32.totalorder %s1681, 0
    %s1685 = scalar_select %p1684, 1, 0
    %v1686 = vstv %s1685
    %vm1687 = vcmp.eq.s32.totalorder %v1686, 1
    %v1688 = vsel %vm1687, %v1683, 0.0
    %v1689 = vadd.f32 %v1688, 0.0
    %s1690 = sld [smem:[#allocation5 + $0xf]]
    %s1691 = scalar_lea.vmem [#allocation2], %s1690
    %v1692 = vld [vmem:[%s1691] sm:$0x1]
    %p1693 = scmp.gt.s32.totalorder %s1690, 0
    %s1694 = scalar_select %p1693, 1, 0
    %v1695 = vstv %s1694
    %vm1696 = vcmp.eq.s32.totalorder %v1695, 1
    %v1697 = vsel %vm1696, %v1692, 0.0
    %v1698 = vadd.f32 %v1689, %v1697
    %1699 = vst [vmem:[#allocation4 + $0x7] sm:$0x1] %v1698
    %s1700 = sld [smem:[#allocation5 + $0x10]]
    %s1701 = scalar_lea.vmem [#allocation2], %s1700
    %v1702 = vld [vmem:[%s1701] sm:$0x1]
    %p1703 = scmp.gt.s32.totalorder %s1700, 0
    %s1704 = scalar_select %p1703, 1, 0
    %v1705 = vstv %s1704
    %vm1706 = vcmp.eq.s32.totalorder %v1705, 1
    %v1707 = vsel %vm1706, %v1702, 0.0
    %v1708 = vadd.f32 %v1707, 0.0
    %s1709 = sld [smem:[#allocation5 + $0x11]]
    %s1710 = scalar_lea.vmem [#allocation2], %s1709
    %v1711 = vld [vmem:[%s1710] sm:$0x1]
    %p1712 = scmp.gt.s32.totalorder %s1709, 0
    %s1713 = scalar_select %p1712, 1, 0
    %v1714 = vstv %s1713
    %vm1715 = vcmp.eq.s32.totalorder %v1714, 1
    %v1716 = vsel %vm1715, %v1711, 0.0
    %v1717 = vadd.f32 %v1708, %v1716
    %1718 = vst [vmem:[#allocation4 + $0x8] sm:$0x1] %v1717
    %s1719 = sld [smem:[#allocation5 + $0x12]]
    %s1720 = scalar_lea.vmem [#allocation2], %s1719
    %v1721 = vld [vmem:[%s1720] sm:$0x1]
    %p1722 = scmp.gt.s32.totalorder %s1719, 0
    %s1723 = scalar_select %p1722, 1, 0
    %v1724 = vstv %s1723
    %vm1725 = vcmp.eq.s32.totalorder %v1724, 1
    %v1726 = vsel %vm1725, %v1721, 0.0
    %v1727 = vadd.f32 %v1726, 0.0
    %s1728 = sld [smem:[#allocation5 + $0x13]]
    %s1729 = scalar_lea.vmem [#allocation2], %s1728
    %v1730 = vld [vmem:[%s1729] sm:$0x1]
    %p1731 = scmp.gt.s32.totalorder %s1728, 0
    %s1732 = scalar_select %p1731, 1, 0
    %v1733 = vstv %s1732
    %vm1734 = vcmp.eq.s32.totalorder %v1733, 1
    %v1735 = vsel %vm1734, %v1730, 0.0
    %v1736 = vadd.f32 %v1727, %v1735
    %1737 = vst [vmem:[#allocation4 + $0x9] sm:$0x1] %v1736
    %s1738 = sld [smem:[#allocation5 + $0x14]]
    %s1739 = scalar_lea.vmem [#allocation2], %s1738
    %v1740 = vld [vmem:[%s1739] sm:$0x1]
    %p1741 = scmp.gt.s32.totalorder %s1738, 0
    %s1742 = scalar_select %p1741, 1, 0
    %v1743 = vstv %s1742
    %vm1744 = vcmp.eq.s32.totalorder %v1743, 1
    %v1745 = vsel %vm1744, %v1740, 0.0
    %v1746 = vadd.f32 %v1745, 0.0
    %s1747 = sld [smem:[#allocation5 + $0x15]]
    %s1748 = scalar_lea.vmem [#allocation2], %s1747
    %v1749 = vld [vmem:[%s1748] sm:$0x1]
    %p1750 = scmp.gt.s32.totalorder %s1747, 0
    %s1751 = scalar_select %p1750, 1, 0
    %v1752 = vstv %s1751
    %vm1753 = vcmp.eq.s32.totalorder %v1752, 1
    %v1754 = vsel %vm1753, %v1749, 0.0
    %v1755 = vadd.f32 %v1746, %v1754
    %1756 = vst [vmem:[#allocation4 + $0xa] sm:$0x1] %v1755
    %s1757 = sld [smem:[#allocation5 + $0x16]]
    %s1758 = scalar_lea.vmem [#allocation2], %s1757
    %v1759 = vld [vmem:[%s1758] sm:$0x1]
    %p1760 = scmp.gt.s32.totalorder %s1757, 0
    %s1761 = scalar_select %p1760, 1, 0
    %v1762 = vstv %s1761
    %vm1763 = vcmp.eq.s32.totalorder %v1762, 1
    %v1764 = vsel %vm1763, %v1759, 0.0
    %v1765 = vadd.f32 %v1764, 0.0
    %s1766 = sld [smem:[#allocation5 + $0x17]]
    %s1767 = scalar_lea.vmem [#allocation2], %s1766
    %v1768 = vld [vmem:[%s1767] sm:$0x1]
    %p1769 = scmp.gt.s32.totalorder %s1766, 0
    %s1770 = scalar_select %p1769, 1, 0
    %v1771 = vstv %s1770
    %vm1772 = vcmp.eq.s32.totalorder %v1771, 1
    %v1773 = vsel %vm1772, %v1768, 0.0
    %v1774 = vadd.f32 %v1765, %v1773
    %1775 = vst [vmem:[#allocation4 + $0xb] sm:$0x1] %v1774
    %s1776 = sld [smem:[#allocation5 + $0x18]]
    %s1777 = scalar_lea.vmem [#allocation2], %s1776
    %v1778 = vld [vmem:[%s1777] sm:$0x1]
    %p1779 = scmp.gt.s32.totalorder %s1776, 0
    %s1780 = scalar_select %p1779, 1, 0
    %v1781 = vstv %s1780
    %vm1782 = vcmp.eq.s32.totalorder %v1781, 1
    %v1783 = vsel %vm1782, %v1778, 0.0
    %v1784 = vadd.f32 %v1783, 0.0
    %s1785 = sld [smem:[#allocation5 + $0x19]]
    %s1786 = scalar_lea.vmem [#allocation2], %s1785
    %v1787 = vld [vmem:[%s1786] sm:$0x1]
    %p1788 = scmp.gt.s32.totalorder %s1785, 0
    %s1789 = scalar_select %p1788, 1, 0
    %v1790 = vstv %s1789
    %vm1791 = vcmp.eq.s32.totalorder %v1790, 1
    %v1792 = vsel %vm1791, %v1787, 0.0
    %v1793 = vadd.f32 %v1784, %v1792
    %1794 = vst [vmem:[#allocation4 + $0xc] sm:$0x1] %v1793
    %s1795 = sld [smem:[#allocation5 + $0x1a]]
    %s1796 = scalar_lea.vmem [#allocation2], %s1795
    %v1797 = vld [vmem:[%s1796] sm:$0x1]
    %p1798 = scmp.gt.s32.totalorder %s1795, 0
    %s1799 = scalar_select %p1798, 1, 0
    %v1800 = vstv %s1799
    %vm1801 = vcmp.eq.s32.totalorder %v1800, 1
    %v1802 = vsel %vm1801, %v1797, 0.0
    %v1803 = vadd.f32 %v1802, 0.0
    %s1804 = sld [smem:[#allocation5 + $0x1b]]
    %s1805 = scalar_lea.vmem [#allocation2], %s1804
    %v1806 = vld [vmem:[%s1805] sm:$0x1]
    %p1807 = scmp.gt.s32.totalorder %s1804, 0
    %s1808 = scalar_select %p1807, 1, 0
    %v1809 = vstv %s1808
    %vm1810 = vcmp.eq.s32.totalorder %v1809, 1
    %v1811 = vsel %vm1810, %v1806, 0.0
    %v1812 = vadd.f32 %v1803, %v1811
    %1813 = vst [vmem:[#allocation4 + $0xd] sm:$0x1] %v1812
    %s1814 = sld [smem:[#allocation5 + $0x1c]]
    %s1815 = scalar_lea.vmem [#allocation2], %s1814
    %v1816 = vld [vmem:[%s1815] sm:$0x1]
    %p1817 = scmp.gt.s32.totalorder %s1814, 0
    %s1818 = scalar_select %p1817, 1, 0
    %v1819 = vstv %s1818
    %vm1820 = vcmp.eq.s32.totalorder %v1819, 1
    %v1821 = vsel %vm1820, %v1816, 0.0
    %v1822 = vadd.f32 %v1821, 0.0
    %s1823 = sld [smem:[#allocation5 + $0x1d]]
    %s1824 = scalar_lea.vmem [#allocation2], %s1823
    %v1825 = vld [vmem:[%s1824] sm:$0x1]
    %p1826 = scmp.gt.s32.totalorder %s1823, 0
    %s1827 = scalar_select %p1826, 1, 0
    %v1828 = vstv %s1827
    %vm1829 = vcmp.eq.s32.totalorder %v1828, 1
    %v1830 = vsel %vm1829, %v1825, 0.0
    %v1831 = vadd.f32 %v1822, %v1830
    %1832 = vst [vmem:[#allocation4 + $0xe] sm:$0x1] %v1831
    %s1833 = sld [smem:[#allocation5 + $0x1e]]
    %s1834 = scalar_lea.vmem [#allocation2], %s1833
    %v1835 = vld [vmem:[%s1834] sm:$0x1]
    %p1836 = scmp.gt.s32.totalorder %s1833, 0
    %s1837 = scalar_select %p1836, 1, 0
    %v1838 = vstv %s1837
    %vm1839 = vcmp.eq.s32.totalorder %v1838, 1
    %v1840 = vsel %vm1839, %v1835, 0.0
    %v1841 = vadd.f32 %v1840, 0.0
    %s1842 = sld [smem:[#allocation5 + $0x1f]]
    %s1843 = scalar_lea.vmem [#allocation2], %s1842
    %v1844 = vld [vmem:[%s1843] sm:$0x1]
    %p1845 = scmp.gt.s32.totalorder %s1842, 0
    %s1846 = scalar_select %p1845, 1, 0
    %v1847 = vstv %s1846
    %vm1848 = vcmp.eq.s32.totalorder %v1847, 1
    %v1849 = vsel %vm1848, %v1844, 0.0
    %v1850 = vadd.f32 %v1841, %v1849
    %1851 = vst [vmem:[#allocation4 + $0xf] sm:$0x1] %v1850
    %v1852 = vld [vmem:[#allocation13] sm:$0xf]
    %v1853 = vld [vmem:[#allocation13 + $0x4] sm:$0xf]
    %v1854 = vld [vmem:[#allocation19] sm:$0xf]
    %v1855 = vld [vmem:[#allocation19 + $0x4] sm:$0xf]
    %v1856 = vld [vmem:[#allocation19 + $0x8] sm:$0xf]
    %v1857 = vld [vmem:[#allocation19 + $0xc] sm:$0xf]
    %v1858 = vld [vmem:[#allocation19 + $0x10] sm:$0xf]
    %v1859 = vld [vmem:[#allocation19 + $0x14] sm:$0xf]
    %v1860 = vld [vmem:[#allocation19 + $0x18] sm:$0xf]
    %v1861 = vld [vmem:[#allocation19 + $0x1c] sm:$0xf]
    %v1862 = vld [vmem:[#allocation19 + $0x20] sm:$0xf]
    %v1863 = vld [vmem:[#allocation19 + $0x24] sm:$0xf]
    %v1864 = vld [vmem:[#allocation19 + $0x28] sm:$0xf]
    %v1865 = vld [vmem:[#allocation19 + $0x2c] sm:$0xf]
    %v1866 = vld [vmem:[#allocation19 + $0x30] sm:$0xf]
    %v1867 = vld [vmem:[#allocation19 + $0x34] sm:$0xf]
    %v1868 = vld [vmem:[#allocation19 + $0x38] sm:$0xf]
    %v1869 = vld [vmem:[#allocation19 + $0x3c] sm:$0xf]
    %v1870 = vld [vmem:[#allocation4] sm:$0xff]
    %v1871 = vld [vmem:[#allocation4 + $0x8] sm:$0xff]
    %v1872 = vpack.c.bf16 %v1871, %v1870
    %v1873 = vld [vmem:[#allocation20] sm:$0xf]
    %v1874 = vld [vmem:[#allocation20 + $0x4] sm:$0xf]
    %v1875 = vld [vmem:[#allocation20 + $0x8] sm:$0xf]
    %v1876 = vld [vmem:[#allocation20 + $0xc] sm:$0xf]
    %v1877 = vld [vmem:[#allocation20 + $0x10] sm:$0xf]
    %v1878 = vld [vmem:[#allocation20 + $0x14] sm:$0xf]
    %v1879 = vld [vmem:[#allocation20 + $0x18] sm:$0xf]
    %v1880 = vld [vmem:[#allocation20 + $0x1c] sm:$0xf]
    %v1881 = vld [vmem:[#allocation20 + $0x20] sm:$0xf]
    %v1882 = vld [vmem:[#allocation20 + $0x24] sm:$0xf]
    %v1883 = vld [vmem:[#allocation20 + $0x28] sm:$0xf]
    %v1884 = vld [vmem:[#allocation20 + $0x2c] sm:$0xf]
    %v1885 = vld [vmem:[#allocation20 + $0x30] sm:$0xf]
    %v1886 = vld [vmem:[#allocation20 + $0x34] sm:$0xf]
    %v1887 = vld [vmem:[#allocation20 + $0x38] sm:$0xf]
    %v1888 = vld [vmem:[#allocation20 + $0x3c] sm:$0xf]
    %v1905 = vunpack.c.l.b16 %v1873
    %v1906 = vunpack.c.l.b16 %v1874
    %v1907 = vunpack.c.l.b16 %v1875
    %v1908 = vunpack.c.l.b16 %v1876
    %v1909 = vunpack.c.l.b16 %v1877
    %v1910 = vunpack.c.l.b16 %v1878
    %v1911 = vunpack.c.l.b16 %v1879
    %v1912 = vunpack.c.l.b16 %v1880
    %v1913 = vunpack.c.l.b16 %v1881
    %v1914 = vunpack.c.l.b16 %v1882
    %v1915 = vunpack.c.l.b16 %v1883
    %v1916 = vunpack.c.l.b16 %v1884
    %v1917 = vunpack.c.l.b16 %v1885
    %v1918 = vunpack.c.l.b16 %v1886
    %v1919 = vunpack.c.l.b16 %v1887
    %v1920 = vunpack.c.l.b16 %v1888
    %v1921 = vpack.c.b16 %v1906, %v1905
    %v1922 = vpack.c.b16 %v1908, %v1907
    %v1923 = vpack.c.b16 %v1910, %v1909
    %v1924 = vpack.c.b16 %v1912, %v1911
    %v1925 = vpack.c.b16 %v1914, %v1913
    %v1926 = vpack.c.b16 %v1916, %v1915
    %v1927 = vpack.c.b16 %v1918, %v1917
    %v1928 = vpack.c.b16 %v1920, %v1919
    %1937 = vmatpush.bf16.msra.mxu0 %v1928
    %1938 = vmatpush.bf16.msra.mxu0 %v1927
    %1939 = vmatpush.bf16.msra.mxu0 %v1926
    %1940 = vmatpush.bf16.msra.mxu0 %v1925
    %1941 = vmatpush.bf16.msra.mxu0 %v1924
    %1942 = vmatpush.bf16.msra.mxu0 %v1923
    %1943 = vmatpush.bf16.msra.mxu0 %v1922
    %1944 = vmatpush.bf16.msra.mxu0 %v1921
    %1945 = vmatmul.bf16.gmra.mxu0 %v1872
    %v1946 = vpop.f32.mrf.mxu0
    %v1947 = vadd.f32 0.0, %v1946
    %v1948 = vpop.f32.mrf.mxu0
    %v1949 = vadd.f32 0.0, %v1948
    %1950 = vdwg.mxu0
    %v1953 = vunpack.c.l.b16 %v1852
    %v1954 = vunpack.c.l.b16 %v1853
    %v1955 = vpack.c.b16 %v1954, %v1953
    %v1973 = vunpack.c.l.b16 %v1854
    %v1974 = vunpack.c.l.b16 %v1855
    %v1975 = vunpack.c.l.b16 %v1856
    %v1976 = vunpack.c.l.b16 %v1857
    %v1977 = vunpack.c.l.b16 %v1858
    %v1978 = vunpack.c.l.b16 %v1859
    %v1979 = vunpack.c.l.b16 %v1860
    %v1980 = vunpack.c.l.b16 %v1861
    %v1981 = vunpack.c.l.b16 %v1862
    %v1982 = vunpack.c.l.b16 %v1863
    %v1983 = vunpack.c.l.b16 %v1864
    %v1984 = vunpack.c.l.b16 %v1865
    %v1985 = vunpack.c.l.b16 %v1866
    %v1986 = vunpack.c.l.b16 %v1867
    %v1987 = vunpack.c.l.b16 %v1868
    %v1988 = vunpack.c.l.b16 %v1869
    %v1989 = vpack.c.b16 %v1974, %v1973
    %v1990 = vpack.c.b16 %v1976, %v1975
    %v1991 = vpack.c.b16 %v1978, %v1977
    %v1992 = vpack.c.b16 %v1980, %v1979
    %v1993 = vpack.c.b16 %v1982, %v1981
    %v1994 = vpack.c.b16 %v1984, %v1983
    %v1995 = vpack.c.b16 %v1986, %v1985
    %v1996 = vpack.c.b16 %v1988, %v1987
    %2005 = vmatpush.bf16.msra.mxu0 %v1996
    %2006 = vmatpush.bf16.msra.mxu0 %v1995
    %2007 = vmatpush.bf16.msra.mxu0 %v1994
    %2008 = vmatpush.bf16.msra.mxu0 %v1993
    %2009 = vmatpush.bf16.msra.mxu0 %v1992
    %2010 = vmatpush.bf16.msra.mxu0 %v1991
    %2011 = vmatpush.bf16.msra.mxu0 %v1990
    %2012 = vmatpush.bf16.msra.mxu0 %v1989
    %2013 = vmatmul.bf16.gmra.mxu0 %v1955
    %v2014 = vpop.f32.mrf.mxu0
    %v2015 = vadd.f32 %v1947, %v2014
    %v2016 = vpop.f32.mrf.mxu0
    %v2017 = vadd.f32 %v1949, %v2016
    %2018 = vdwg.mxu0
    %v2019 = vld [vmem:[#allocation22] sm:$0x1]
    %v2021 = vperm.slane %v2019, 0
    %v2023 = vadd.f32 %v2015, %v2021
    %v2024 = vadd.f32 %v2017, %v2021
    %v2025 = vld [vmem:[%s10] sm:$0xff]
    %vm2026 = vcmask 130048
    %v2028 = vsel %vm2026, %v2025, 0
    %2030 = vmatpush.msra.mxu0 0.0
    %2031 = vmatpush.msra.mxu0 0.0
    %2032 = vmatpush.msra.mxu0 0.0
    %2033 = vmatpush.msra.mxu0 0.0
    %2034 = vmatpush.msra.mxu0 0.0
    %2035 = vmatpush.msra.mxu0 0.0
    %2036 = vmatpush.msra.mxu0 0.0
    %2037 = vmatpush.msra.mxu0 0.0
    %2038 = vmatpush.msra.mxu0 0.0
    %2039 = vmatpush.msra.mxu0 0.0
    %2040 = vmatpush.msra.mxu0 0.0
    %2041 = vmatpush.msra.mxu0 0.0
    %2042 = vmatpush.msra.mxu0 0.0
    %2043 = vmatpush.msra.mxu0 0.0
    %2044 = vmatpush.msra.mxu0 %v2024
    %2045 = vmatpush.msra.mxu0 %v2023
    %2046 = vmatmul.f32.gmra.mxu0 %v2028
    %v2047 = vpop.f32.mrf.mxu0
    %v2048 = vadd.f32 0.0, %v2047
    %2049 = vdwg.mxu0
    %2050 = vst [vmem:[#allocation23] sm:$0xff] %v2048
    // Predicated region
    $region86: #{_mpn_pallas.1} parent=1 // pred_check
      _
    $region87: #{_mpn_pallas.1} parent=1 // pred_check_branch
      %2052 = sbr.rel (0) target = $region89
    $region88: #{_mpn_pallas.1} parent=1 // pred_region
      %2054 = vsyncadd [#allocation7], 0
      %s2056 = sshll.u32 [#allocation23], 4
      %s2057 = int_to_ptr.vmem [resolvable:$true] %s2056
      %s2058 = sshll.u32 %s11, 4
      %s2059 = int_to_ptr.hbm [resolvable:$true] %s2058
      %2061 = dma.vmem_to_hbm [thread:$0]  %s2057, 128, %s2059, [#allocation7]
    $region89: #{_mpn_pallas.1} parent=1 // pred_fallthru
      _
    // Predicated region
    $region90: #{_mpn_pallas.1} parent=1 // pred_check
      _
    $region91: #{_mpn_pallas.1} parent=1 // pred_check_branch
      %2063 = sbr.rel (0) target = $region93
    $region92: #{_mpn_pallas.1} parent=1 // pred_region
      %2065 = dma.done [#allocation7], 128
    $region93: #{_mpn_pallas.1} parent=1 // pred_fallthru
      _
    %2066 = vsyncpa [#allocation6], 1
    %2067 = vsyncpa [#allocation15], 1
    %2068 = vsyncpa [#allocation18], 1
    %2069 = vsyncpa [#allocation21], 1
    %2070 = vsyncpa [#allocation7], 1
    %2071 = vsyncpa [#allocation8], 1
    %2072 = vsyncpa [#allocation11], 1
    %2073 = vsyncpa [#allocation9], 1

</llo_original>
